<compile_context>
chip_gen: v6e
topology: v6e:2x2x1
jax: 0.10.0
libtpu: 0.0.40
codegen_flags: <defaults>
</compile_context>

<pallas_src>
import functools

import jax
import jax.numpy as jnp
from jax import lax
from jax.experimental import pallas as pl
from jax.experimental.pallas import tpu as pltpu


def _convt_up221_kernel(x_ref, w_ref, b_ref, o_ref, *, D, H, W, CIN, COUT4):
    # x_ref: (D+2, H+1, W+1, CIN) f32   depth/halo-padded NDHWC slab (one sample)
    # w_ref: (3, 2, 2, CIN, COUT4) bf16 phase-folded weight (COUT4 = 4*COUT)
    # b_ref: (1, COUT4) f32
    # o_ref: (D, H*W, COUT4) f32        all depth slices, phases folded in channels
    bias = b_ref[...]                                   # (1, COUT4)
    for d in range(D):   # unrolled; D is small.  TODO(synk): fori_loop for big D.
        acc = None
        for kd in range(3):
            for dh in range(2):
                for dw in range(2):
                    # direct ref slice (VMEM offset load), then cheap leading-dim
                    # collapse, then cast to bf16 for the MXU.
                    patch = x_ref[d + kd, dh:dh + H, dw:dw + W, :]
                    patch = patch.reshape(H * W, CIN).astype(jnp.bfloat16)
                    part = jnp.dot(patch, w_ref[kd, dh, dw],
                                   preferred_element_type=jnp.float32)
                    acc = part if acc is None else acc + part
        o_ref[d] = (acc + bias).astype(o_ref.dtype)


@jax.jit
def conv_transpose3d_up221(x_ncdhw, w_t, bias):
    """ConvTranspose3d k=(3,3,3), stride=(1,2,2), pad=(1,1,1), out_pad=(0,1,1).

    x_ncdhw: (N, Cin, D, H, W) float32  (PyTorch layout)
    w_t:     (Cin, Cout, 3, 3, 3)       (PyTorch ConvTranspose3d weight layout)
    bias:    (Cout,)
    returns: (N, Cout, D, 2H, 2W)
    """
    N, CIN, D, H, W = x_ncdhw.shape
    COUT = w_t.shape[1]
    COUT4 = 4 * COUT
    DO, HO, WO = D, 2 * H, 2 * W

    # ---- glue (plain JAX, cheap): layout + tiny halo pad (NO 4x dilation) ----
    x = jnp.transpose(x_ncdhw, (0, 2, 3, 4, 1)).astype(jnp.float32)  # NDHWC
    # depth halo (1,1); one extra zero row/col at the high end of H and W
    xp = jnp.pad(x, ((0, 0), (1, 1), (0, 1), (0, 1), (0, 0)))

    # Flipped / channel-transposed conv weight: w_conv[kd,kh,kw,ci,co]
    w_conv = jnp.transpose(w_t[:, :, ::-1, ::-1, ::-1],
                           (2, 3, 4, 0, 1)).astype(jnp.float32)   # (3,3,3,CIN,COUT)

    # Combined phase weight: wm[kd, dh, dw, ci, (ph,pw,co)]
    #   even output rows (ph=0) use only dh=0 with kh=1
    #   odd  output rows (ph=1) use dh=0 -> kh=0 and dh=1 -> kh=2  (same for W)
    wm = jnp.zeros((3, 2, 2, CIN, 2, 2, COUT), jnp.float32)
    for ph in range(2):
        for dh in range(2):
            if ph == 0 and dh == 1:
                continue
            kh = 1 if ph == 0 else 2 * dh
            for pw in range(2):
                for dw in range(2):
                    if pw == 0 and dw == 1:
                        continue
                    kw = 1 if pw == 0 else 2 * dw
                    wm = wm.at[:, dh, dw, :, ph, pw, :].set(w_conv[:, kh, kw, :, :])
    wm = wm.reshape(3, 2, 2, CIN, COUT4).astype(jnp.bfloat16)   # bf16 MXU operand
    b4 = jnp.tile(bias.astype(jnp.float32), 4).reshape(1, COUT4)

    kernel = functools.partial(_convt_up221_kernel,
                               D=D, H=H, W=W, CIN=CIN, COUT4=COUT4)

    # VMEM budget estimate (double-buffered input/output + weight + bias).
    in_bytes = (D + 2) * (H + 1) * (W + 1) * CIN * 4
    w_bytes = 3 * 2 * 2 * CIN * COUT4 * 2
    out_bytes = DO * H * W * COUT4 * 4
    est = 2 * (in_bytes + out_bytes) + 2 * (w_bytes + COUT4 * 4) + (1 << 20)
    vmem_limit = int(min(max(est, 32 << 20), 64 << 20))

    out_comb = pl.pallas_call(
        kernel,
        out_shape=jax.ShapeDtypeStruct((N, DO, H * W, COUT4), jnp.float32),
        grid_spec=pltpu.PrefetchScalarGridSpec(
            num_scalar_prefetch=0,
            grid=(N,),
            in_specs=[
                # whole depth-padded slab for one batch element (single pass)
                pl.BlockSpec((pl.Squeezed(), D + 2, H + 1, W + 1, CIN),
                             lambda n: (n, 0, 0, 0, 0)),
                # full combined weight / bias, constant across the grid
                pl.BlockSpec((3, 2, 2, CIN, COUT4), lambda n: (0, 0, 0, 0, 0)),
                pl.BlockSpec((1, COUT4), lambda n: (0, 0)),
            ],
            out_specs=pl.BlockSpec((pl.Squeezed(), DO, H * W, COUT4),
                                   lambda n: (n, 0, 0, 0)),
        ),
        compiler_params=pltpu.CompilerParams(
            dimension_semantics=("parallel",),
            vmem_limit_bytes=vmem_limit),
    )(xp, wm, b4)

    # De-interleave phases, fused with the NCDHW transpose we need anyway:
    # (N, D, H*W, 4*COUT) -> (N, D, h, w, ph, pw, co) -> (N, co, D, h, ph, w, pw)
    out = out_comb.reshape(N, DO, H, W, 2, 2, COUT)
    out = jnp.transpose(out, (0, 6, 1, 2, 4, 3, 5))
    out = out.reshape(N, COUT, DO, HO, WO)
    return out


if __name__ == "__main__":
    key = jax.random.PRNGKey(0)
    k1, k2, k3 = jax.random.split(key, 3)

    N, CIN, COUT, D, H, W = 2, 4, 8, 4, 8, 8
    x = jax.random.normal(k1, (N, CIN, D, H, W), jnp.float32)
    w_t = jax.random.normal(k2, (CIN, COUT, 3, 3, 3), jnp.float32) * 0.1
    bias = jax.random.normal(k3, (COUT,), jnp.float32) * 0.1

    out = conv_transpose3d_up221(x, w_t, bias)
    out = jax.block_until_ready(out)
    assert out.shape == (N, COUT, D, 2 * H, 2 * W), out.shape

    # Reference: ConvTranspose3d == lhs-dilated regular conv with flipped weight.
    # The kernel rounds its MXU operands to bf16 (f32 accumulation), so the
    # reference uses identically bf16-rounded operands in an f32 conv.
    x_ndhwc = jnp.transpose(x, (0, 2, 3, 4, 1))
    x_ndhwc = x_ndhwc.astype(jnp.bfloat16).astype(jnp.float32)
    w_dhwio = jnp.transpose(w_t[:, :, ::-1, ::-1, ::-1], (2, 3, 4, 0, 1))
    w_dhwio = w_dhwio.astype(jnp.bfloat16).astype(jnp.float32)
    ref = lax.conv_general_dilated(
        x_ndhwc, w_dhwio,
        window_strides=(1, 1, 1),
        padding=((1, 1), (1, 2), (1, 2)),
        lhs_dilation=(1, 2, 2),
        dimension_numbers=("NDHWC", "DHWIO", "NDHWC"),
    ) + bias
    ref = jnp.transpose(ref, (0, 4, 1, 2, 3))

    err = float(jnp.max(jnp.abs(out - ref)))
    assert jnp.allclose(out, ref, atol=1e-2, rtol=1e-2), err
    print("KERNEL_OK")
</pallas_src>

<mosaic_0001>
module attributes {stable_mosaic.version = 11 : i64} {
  func.func @_convt_up221_kernel(%arg0: i32, %arg1: memref<1x6x9x9x4xf32, #tpu.memory_space<vmem>>, %arg2: memref<3x2x2x4x32xbf16, #tpu.memory_space<vmem>>, %arg3: memref<1x32xf32, #tpu.memory_space<vmem>>, %arg4: memref<1x4x64x32xf32, #tpu.memory_space<vmem>>) attributes {dimension_semantics = [#tpu.dimension_semantics<parallel>], iteration_bounds = array<i64: 2>, scalar_prefetch = 0 : i64, scratch_operands = 0 : i64, tpu.core_type = #tpu.core_type<tc>, window_params = [{transform_indices = @transform_0, window_bounds = array<i64: 1, 6, 9, 9, 4>}, {pipeline_mode = #tpu.pipeline_mode<synchronous>, transform_indices = @transform_1, window_bounds = array<i64: 3, 2, 2, 4, 32>}, {pipeline_mode = #tpu.pipeline_mode<synchronous>, transform_indices = @transform_2, window_bounds = array<i64: 1, 32>}, {transform_indices = @transform_3, window_bounds = array<i64: 1, 4, 64, 32>}]} {
    %c0 = arith.constant 0 : index
    %c0_0 = arith.constant 0 : index
    %0 = vector.load %arg3[%c0, %c0_0] : memref<1x32xf32, #tpu.memory_space<vmem>>, vector<1x32xf32>
    %c0_1 = arith.constant 0 : index
    %c0_2 = arith.constant 0 : index
    %c0_3 = arith.constant 0 : index
    %c0_4 = arith.constant 0 : index
    %c0_5 = arith.constant 0 : index
    %1 = vector.load %arg1[%c0_1, %c0_2, %c0_3, %c0_4, %c0_5] : memref<1x6x9x9x4xf32, #tpu.memory_space<vmem>>, vector<1x1x8x8x4xf32>
    %2 = vector.shape_cast %1 : vector<1x1x8x8x4xf32> to vector<8x8x4xf32>
    %3 = vector.shape_cast %2 : vector<8x8x4xf32> to vector<64x4xf32>
    %4 = arith.truncf %3 : vector<64x4xf32> to vector<64x4xbf16>
    %c0_6 = arith.constant 0 : index
    %c0_7 = arith.constant 0 : index
    %c0_8 = arith.constant 0 : index
    %c0_9 = arith.constant 0 : index
    %c0_10 = arith.constant 0 : index
    %5 = vector.load %arg2[%c0_6, %c0_7, %c0_8, %c0_9, %c0_10] : memref<3x2x2x4x32xbf16, #tpu.memory_space<vmem>>, vector<1x1x1x4x32xbf16>
    %6 = vector.shape_cast %5 : vector<1x1x1x4x32xbf16> to vector<4x32xbf16>
    %cst = arith.constant dense<0.000000e+00> : vector<64x32xf32>
    %7 = tpu.matmul %4, %6, %cst {dimension_numbers = #tpu.dot_dimension_numbers<[1], [0], [0], [1], [0, 0, 1, 1], [], []>} : vector<64x4xbf16>, vector<4x32xbf16>, vector<64x32xf32> -> vector<64x32xf32>
    %c0_11 = arith.constant 0 : index
    %c0_12 = arith.constant 0 : index
    %c0_13 = arith.constant 0 : index
    %c1 = arith.constant 1 : index
    %c0_14 = arith.constant 0 : index
    %8 = vector.load %arg1[%c0_11, %c0_12, %c0_13, %c1, %c0_14] : memref<1x6x9x9x4xf32, #tpu.memory_space<vmem>>, vector<1x1x8x8x4xf32>
    %9 = vector.shape_cast %8 : vector<1x1x8x8x4xf32> to vector<8x8x4xf32>
    %10 = vector.shape_cast %9 : vector<8x8x4xf32> to vector<64x4xf32>
    %11 = arith.truncf %10 : vector<64x4xf32> to vector<64x4xbf16>
    %c0_15 = arith.constant 0 : index
    %c0_16 = arith.constant 0 : index
    %c1_17 = arith.constant 1 : index
    %c0_18 = arith.constant 0 : index
    %c0_19 = arith.constant 0 : index
    %12 = vector.load %arg2[%c0_15, %c0_16, %c1_17, %c0_18, %c0_19] : memref<3x2x2x4x32xbf16, #tpu.memory_space<vmem>>, vector<1x1x1x4x32xbf16>
    %13 = vector.shape_cast %12 : vector<1x1x1x4x32xbf16> to vector<4x32xbf16>
    %cst_20 = arith.constant dense<0.000000e+00> : vector<64x32xf32>
    %14 = tpu.matmul %11, %13, %cst_20 {dimension_numbers = #tpu.dot_dimension_numbers<[1], [0], [0], [1], [0, 0, 1, 1], [], []>} : vector<64x4xbf16>, vector<4x32xbf16>, vector<64x32xf32> -> vector<64x32xf32>
    %15 = arith.addf %7, %14 : vector<64x32xf32>
    %c0_21 = arith.constant 0 : index
    %c0_22 = arith.constant 0 : index
    %c1_23 = arith.constant 1 : index
    %c0_24 = arith.constant 0 : index
    %c0_25 = arith.constant 0 : index
    %16 = vector.load %arg1[%c0_21, %c0_22, %c1_23, %c0_24, %c0_25] : memref<1x6x9x9x4xf32, #tpu.memory_space<vmem>>, vector<1x1x8x8x4xf32>
    %17 = vector.shape_cast %16 : vector<1x1x8x8x4xf32> to vector<8x8x4xf32>
    %18 = vector.shape_cast %17 : vector<8x8x4xf32> to vector<64x4xf32>
    %19 = arith.truncf %18 : vector<64x4xf32> to vector<64x4xbf16>
    %c0_26 = arith.constant 0 : index
    %c1_27 = arith.constant 1 : index
    %c0_28 = arith.constant 0 : index
    %c0_29 = arith.constant 0 : index
    %c0_30 = arith.constant 0 : index
    %20 = vector.load %arg2[%c0_26, %c1_27, %c0_28, %c0_29, %c0_30] : memref<3x2x2x4x32xbf16, #tpu.memory_space<vmem>>, vector<1x1x1x4x32xbf16>
    %21 = vector.shape_cast %20 : vector<1x1x1x4x32xbf16> to vector<4x32xbf16>
    %cst_31 = arith.constant dense<0.000000e+00> : vector<64x32xf32>
    %22 = tpu.matmul %19, %21, %cst_31 {dimension_numbers = #tpu.dot_dimension_numbers<[1], [0], [0], [1], [0, 0, 1, 1], [], []>} : vector<64x4xbf16>, vector<4x32xbf16>, vector<64x32xf32> -> vector<64x32xf32>
    %23 = arith.addf %15, %22 : vector<64x32xf32>
    %c0_32 = arith.constant 0 : index
    %c0_33 = arith.constant 0 : index
    %c1_34 = arith.constant 1 : index
    %c1_35 = arith.constant 1 : index
    %c0_36 = arith.constant 0 : index
    %24 = vector.load %arg1[%c0_32, %c0_33, %c1_34, %c1_35, %c0_36] : memref<1x6x9x9x4xf32, #tpu.memory_space<vmem>>, vector<1x1x8x8x4xf32>
    %25 = vector.shape_cast %24 : vector<1x1x8x8x4xf32> to vector<8x8x4xf32>
    %26 = vector.shape_cast %25 : vector<8x8x4xf32> to vector<64x4xf32>
    %27 = arith.truncf %26 : vector<64x4xf32> to vector<64x4xbf16>
    %c0_37 = arith.constant 0 : index
    %c1_38 = arith.constant 1 : index
    %c1_39 = arith.constant 1 : index
    %c0_40 = arith.constant 0 : index
    %c0_41 = arith.constant 0 : index
    %28 = vector.load %arg2[%c0_37, %c1_38, %c1_39, %c0_40, %c0_41] : memref<3x2x2x4x32xbf16, #tpu.memory_space<vmem>>, vector<1x1x1x4x32xbf16>
    %29 = vector.shape_cast %28 : vector<1x1x1x4x32xbf16> to vector<4x32xbf16>
    %cst_42 = arith.constant dense<0.000000e+00> : vector<64x32xf32>
    %30 = tpu.matmul %27, %29, %cst_42 {dimension_numbers = #tpu.dot_dimension_numbers<[1], [0], [0], [1], [0, 0, 1, 1], [], []>} : vector<64x4xbf16>, vector<4x32xbf16>, vector<64x32xf32> -> vector<64x32xf32>
    %31 = arith.addf %23, %30 : vector<64x32xf32>
    %c0_43 = arith.constant 0 : index
    %c1_44 = arith.constant 1 : index
    %c0_45 = arith.constant 0 : index
    %c0_46 = arith.constant 0 : index
    %c0_47 = arith.constant 0 : index
    %32 = vector.load %arg1[%c0_43, %c1_44, %c0_45, %c0_46, %c0_47] : memref<1x6x9x9x4xf32, #tpu.memory_space<vmem>>, vector<1x1x8x8x4xf32>
    %33 = vector.shape_cast %32 : vector<1x1x8x8x4xf32> to vector<8x8x4xf32>
    %34 = vector.shape_cast %33 : vector<8x8x4xf32> to vector<64x4xf32>
    %35 = arith.truncf %34 : vector<64x4xf32> to vector<64x4xbf16>
    %c1_48 = arith.constant 1 : index
    %c0_49 = arith.constant 0 : index
    %c0_50 = arith.constant 0 : index
    %c0_51 = arith.constant 0 : index
    %c0_52 = arith.constant 0 : index
    %36 = vector.load %arg2[%c1_48, %c0_49, %c0_50, %c0_51, %c0_52] : memref<3x2x2x4x32xbf16, #tpu.memory_space<vmem>>, vector<1x1x1x4x32xbf16>
    %37 = vector.shape_cast %36 : vector<1x1x1x4x32xbf16> to vector<4x32xbf16>
    %cst_53 = arith.constant dense<0.000000e+00> : vector<64x32xf32>
    %38 = tpu.matmul %35, %37, %cst_53 {dimension_numbers = #tpu.dot_dimension_numbers<[1], [0], [0], [1], [0, 0, 1, 1], [], []>} : vector<64x4xbf16>, vector<4x32xbf16>, vector<64x32xf32> -> vector<64x32xf32>
    %39 = arith.addf %31, %38 : vector<64x32xf32>
    %c0_54 = arith.constant 0 : index
    %c1_55 = arith.constant 1 : index
    %c0_56 = arith.constant 0 : index
    %c1_57 = arith.constant 1 : index
    %c0_58 = arith.constant 0 : index
    %40 = vector.load %arg1[%c0_54, %c1_55, %c0_56, %c1_57, %c0_58] : memref<1x6x9x9x4xf32, #tpu.memory_space<vmem>>, vector<1x1x8x8x4xf32>
    %41 = vector.shape_cast %40 : vector<1x1x8x8x4xf32> to vector<8x8x4xf32>
    %42 = vector.shape_cast %41 : vector<8x8x4xf32> to vector<64x4xf32>
    %43 = arith.truncf %42 : vector<64x4xf32> to vector<64x4xbf16>
    %c1_59 = arith.constant 1 : index
    %c0_60 = arith.constant 0 : index
    %c1_61 = arith.constant 1 : index
    %c0_62 = arith.constant 0 : index
    %c0_63 = arith.constant 0 : index
    %44 = vector.load %arg2[%c1_59, %c0_60, %c1_61, %c0_62, %c0_63] : memref<3x2x2x4x32xbf16, #tpu.memory_space<vmem>>, vector<1x1x1x4x32xbf16>
    %45 = vector.shape_cast %44 : vector<1x1x1x4x32xbf16> to vector<4x32xbf16>
    %cst_64 = arith.constant dense<0.000000e+00> : vector<64x32xf32>
    %46 = tpu.matmul %43, %45, %cst_64 {dimension_numbers = #tpu.dot_dimension_numbers<[1], [0], [0], [1], [0, 0, 1, 1], [], []>} : vector<64x4xbf16>, vector<4x32xbf16>, vector<64x32xf32> -> vector<64x32xf32>
    %47 = arith.addf %39, %46 : vector<64x32xf32>
    %c0_65 = arith.constant 0 : index
    %c1_66 = arith.constant 1 : index
    %c1_67 = arith.constant 1 : index
    %c0_68 = arith.constant 0 : index
    %c0_69 = arith.constant 0 : index
    %48 = vector.load %arg1[%c0_65, %c1_66, %c1_67, %c0_68, %c0_69] : memref<1x6x9x9x4xf32, #tpu.memory_space<vmem>>, vector<1x1x8x8x4xf32>
    %49 = vector.shape_cast %48 : vector<1x1x8x8x4xf32> to vector<8x8x4xf32>
    %50 = vector.shape_cast %49 : vector<8x8x4xf32> to vector<64x4xf32>
    %51 = arith.truncf %50 : vector<64x4xf32> to vector<64x4xbf16>
    %c1_70 = arith.constant 1 : index
    %c1_71 = arith.constant 1 : index
    %c0_72 = arith.constant 0 : index
    %c0_73 = arith.constant 0 : index
    %c0_74 = arith.constant 0 : index
    %52 = vector.load %arg2[%c1_70, %c1_71, %c0_72, %c0_73, %c0_74] : memref<3x2x2x4x32xbf16, #tpu.memory_space<vmem>>, vector<1x1x1x4x32xbf16>
    %53 = vector.shape_cast %52 : vector<1x1x1x4x32xbf16> to vector<4x32xbf16>
    %cst_75 = arith.constant dense<0.000000e+00> : vector<64x32xf32>
    %54 = tpu.matmul %51, %53, %cst_75 {dimension_numbers = #tpu.dot_dimension_numbers<[1], [0], [0], [1], [0, 0, 1, 1], [], []>} : vector<64x4xbf16>, vector<4x32xbf16>, vector<64x32xf32> -> vector<64x32xf32>
    %55 = arith.addf %47, %54 : vector<64x32xf32>
    %c0_76 = arith.constant 0 : index
    %c1_77 = arith.constant 1 : index
    %c1_78 = arith.constant 1 : index
    %c1_79 = arith.constant 1 : index
    %c0_80 = arith.constant 0 : index
    %56 = vector.load %arg1[%c0_76, %c1_77, %c1_78, %c1_79, %c0_80] : memref<1x6x9x9x4xf32, #tpu.memory_space<vmem>>, vector<1x1x8x8x4xf32>
    %57 = vector.shape_cast %56 : vector<1x1x8x8x4xf32> to vector<8x8x4xf32>
    %58 = vector.shape_cast %57 : vector<8x8x4xf32> to vector<64x4xf32>
    %59 = arith.truncf %58 : vector<64x4xf32> to vector<64x4xbf16>
    %c1_81 = arith.constant 1 : index
    %c1_82 = arith.constant 1 : index
    %c1_83 = arith.constant 1 : index
    %c0_84 = arith.constant 0 : index
    %c0_85 = arith.constant 0 : index
    %60 = vector.load %arg2[%c1_81, %c1_82, %c1_83, %c0_84, %c0_85] : memref<3x2x2x4x32xbf16, #tpu.memory_space<vmem>>, vector<1x1x1x4x32xbf16>
    %61 = vector.shape_cast %60 : vector<1x1x1x4x32xbf16> to vector<4x32xbf16>
    %cst_86 = arith.constant dense<0.000000e+00> : vector<64x32xf32>
    %62 = tpu.matmul %59, %61, %cst_86 {dimension_numbers = #tpu.dot_dimension_numbers<[1], [0], [0], [1], [0, 0, 1, 1], [], []>} : vector<64x4xbf16>, vector<4x32xbf16>, vector<64x32xf32> -> vector<64x32xf32>
    %63 = arith.addf %55, %62 : vector<64x32xf32>
    %c0_87 = arith.constant 0 : index
    %c2 = arith.constant 2 : index
    %c0_88 = arith.constant 0 : index
    %c0_89 = arith.constant 0 : index
    %c0_90 = arith.constant 0 : index
    %64 = vector.load %arg1[%c0_87, %c2, %c0_88, %c0_89, %c0_90] : memref<1x6x9x9x4xf32, #tpu.memory_space<vmem>>, vector<1x1x8x8x4xf32>
    %65 = vector.shape_cast %64 : vector<1x1x8x8x4xf32> to vector<8x8x4xf32>
    %66 = vector.shape_cast %65 : vector<8x8x4xf32> to vector<64x4xf32>
    %67 = arith.truncf %66 : vector<64x4xf32> to vector<64x4xbf16>
    %c2_91 = arith.constant 2 : index
    %c0_92 = arith.constant 0 : index
    %c0_93 = arith.constant 0 : index
    %c0_94 = arith.constant 0 : index
    %c0_95 = arith.constant 0 : index
    %68 = vector.load %arg2[%c2_91, %c0_92, %c0_93, %c0_94, %c0_95] : memref<3x2x2x4x32xbf16, #tpu.memory_space<vmem>>, vector<1x1x1x4x32xbf16>
    %69 = vector.shape_cast %68 : vector<1x1x1x4x32xbf16> to vector<4x32xbf16>
    %cst_96 = arith.constant dense<0.000000e+00> : vector<64x32xf32>
    %70 = tpu.matmul %67, %69, %cst_96 {dimension_numbers = #tpu.dot_dimension_numbers<[1], [0], [0], [1], [0, 0, 1, 1], [], []>} : vector<64x4xbf16>, vector<4x32xbf16>, vector<64x32xf32> -> vector<64x32xf32>
    %71 = arith.addf %63, %70 : vector<64x32xf32>
    %c0_97 = arith.constant 0 : index
    %c2_98 = arith.constant 2 : index
    %c0_99 = arith.constant 0 : index
    %c1_100 = arith.constant 1 : index
    %c0_101 = arith.constant 0 : index
    %72 = vector.load %arg1[%c0_97, %c2_98, %c0_99, %c1_100, %c0_101] : memref<1x6x9x9x4xf32, #tpu.memory_space<vmem>>, vector<1x1x8x8x4xf32>
    %73 = vector.shape_cast %72 : vector<1x1x8x8x4xf32> to vector<8x8x4xf32>
    %74 = vector.shape_cast %73 : vector<8x8x4xf32> to vector<64x4xf32>
    %75 = arith.truncf %74 : vector<64x4xf32> to vector<64x4xbf16>
    %c2_102 = arith.constant 2 : index
    %c0_103 = arith.constant 0 : index
    %c1_104 = arith.constant 1 : index
    %c0_105 = arith.constant 0 : index
    %c0_106 = arith.constant 0 : index
    %76 = vector.load %arg2[%c2_102, %c0_103, %c1_104, %c0_105, %c0_106] : memref<3x2x2x4x32xbf16, #tpu.memory_space<vmem>>, vector<1x1x1x4x32xbf16>
    %77 = vector.shape_cast %76 : vector<1x1x1x4x32xbf16> to vector<4x32xbf16>
    %cst_107 = arith.constant dense<0.000000e+00> : vector<64x32xf32>
    %78 = tpu.matmul %75, %77, %cst_107 {dimension_numbers = #tpu.dot_dimension_numbers<[1], [0], [0], [1], [0, 0, 1, 1], [], []>} : vector<64x4xbf16>, vector<4x32xbf16>, vector<64x32xf32> -> vector<64x32xf32>
    %79 = arith.addf %71, %78 : vector<64x32xf32>
    %c0_108 = arith.constant 0 : index
    %c2_109 = arith.constant 2 : index
    %c1_110 = arith.constant 1 : index
    %c0_111 = arith.constant 0 : index
    %c0_112 = arith.constant 0 : index
    %80 = vector.load %arg1[%c0_108, %c2_109, %c1_110, %c0_111, %c0_112] : memref<1x6x9x9x4xf32, #tpu.memory_space<vmem>>, vector<1x1x8x8x4xf32>
    %81 = vector.shape_cast %80 : vector<1x1x8x8x4xf32> to vector<8x8x4xf32>
    %82 = vector.shape_cast %81 : vector<8x8x4xf32> to vector<64x4xf32>
    %83 = arith.truncf %82 : vector<64x4xf32> to vector<64x4xbf16>
    %c2_113 = arith.constant 2 : index
    %c1_114 = arith.constant 1 : index
    %c0_115 = arith.constant 0 : index
    %c0_116 = arith.constant 0 : index
    %c0_117 = arith.constant 0 : index
    %84 = vector.load %arg2[%c2_113, %c1_114, %c0_115, %c0_116, %c0_117] : memref<3x2x2x4x32xbf16, #tpu.memory_space<vmem>>, vector<1x1x1x4x32xbf16>
    %85 = vector.shape_cast %84 : vector<1x1x1x4x32xbf16> to vector<4x32xbf16>
    %cst_118 = arith.constant dense<0.000000e+00> : vector<64x32xf32>
    %86 = tpu.matmul %83, %85, %cst_118 {dimension_numbers = #tpu.dot_dimension_numbers<[1], [0], [0], [1], [0, 0, 1, 1], [], []>} : vector<64x4xbf16>, vector<4x32xbf16>, vector<64x32xf32> -> vector<64x32xf32>
    %87 = arith.addf %79, %86 : vector<64x32xf32>
    %c0_119 = arith.constant 0 : index
    %c2_120 = arith.constant 2 : index
    %c1_121 = arith.constant 1 : index
    %c1_122 = arith.constant 1 : index
    %c0_123 = arith.constant 0 : index
    %88 = vector.load %arg1[%c0_119, %c2_120, %c1_121, %c1_122, %c0_123] : memref<1x6x9x9x4xf32, #tpu.memory_space<vmem>>, vector<1x1x8x8x4xf32>
    %89 = vector.shape_cast %88 : vector<1x1x8x8x4xf32> to vector<8x8x4xf32>
    %90 = vector.shape_cast %89 : vector<8x8x4xf32> to vector<64x4xf32>
    %91 = arith.truncf %90 : vector<64x4xf32> to vector<64x4xbf16>
    %c2_124 = arith.constant 2 : index
    %c1_125 = arith.constant 1 : index
    %c1_126 = arith.constant 1 : index
    %c0_127 = arith.constant 0 : index
    %c0_128 = arith.constant 0 : index
    %92 = vector.load %arg2[%c2_124, %c1_125, %c1_126, %c0_127, %c0_128] : memref<3x2x2x4x32xbf16, #tpu.memory_space<vmem>>, vector<1x1x1x4x32xbf16>
    %93 = vector.shape_cast %92 : vector<1x1x1x4x32xbf16> to vector<4x32xbf16>
    %cst_129 = arith.constant dense<0.000000e+00> : vector<64x32xf32>
    %94 = tpu.matmul %91, %93, %cst_129 {dimension_numbers = #tpu.dot_dimension_numbers<[1], [0], [0], [1], [0, 0, 1, 1], [], []>} : vector<64x4xbf16>, vector<4x32xbf16>, vector<64x32xf32> -> vector<64x32xf32>
    %95 = arith.addf %87, %94 : vector<64x32xf32>
    %96 = vector.broadcast %0 : vector<1x32xf32> to vector<64x32xf32>
    %97 = arith.addf %95, %96 : vector<64x32xf32>
    %c0_130 = arith.constant 0 : index
    %c0_131 = arith.constant 0 : index
    %c0_132 = arith.constant 0 : index
    %c0_133 = arith.constant 0 : index
    %98 = vector.load %arg4[%c0_130, %c0_131, %c0_132, %c0_133] : memref<1x4x64x32xf32, #tpu.memory_space<vmem>>, vector<1x1x64x32xf32>
    %99 = vector.shape_cast %98 : vector<1x1x64x32xf32> to vector<64x32xf32>
    %100 = vector.shape_cast %97 : vector<64x32xf32> to vector<1x1x64x32xf32>
    tpu.vector_store %arg4[%c0_130, %c0_131, %c0_132, %c0_133], %100 {strides = array<i32>} : memref<1x4x64x32xf32, #tpu.memory_space<vmem>>, vector<1x1x64x32xf32>,
    %c0_134 = arith.constant 0 : index
    %c1_135 = arith.constant 1 : index
    %c0_136 = arith.constant 0 : index
    %c0_137 = arith.constant 0 : index
    %c0_138 = arith.constant 0 : index
    %101 = vector.load %arg1[%c0_134, %c1_135, %c0_136, %c0_137, %c0_138] : memref<1x6x9x9x4xf32, #tpu.memory_space<vmem>>, vector<1x1x8x8x4xf32>
    %102 = vector.shape_cast %101 : vector<1x1x8x8x4xf32> to vector<8x8x4xf32>
    %103 = vector.shape_cast %102 : vector<8x8x4xf32> to vector<64x4xf32>
    %104 = arith.truncf %103 : vector<64x4xf32> to vector<64x4xbf16>
    %c0_139 = arith.constant 0 : index
    %c0_140 = arith.constant 0 : index
    %c0_141 = arith.constant 0 : index
    %c0_142 = arith.constant 0 : index
    %c0_143 = arith.constant 0 : index
    %105 = vector.load %arg2[%c0_139, %c0_140, %c0_141, %c0_142, %c0_143] : memref<3x2x2x4x32xbf16, #tpu.memory_space<vmem>>, vector<1x1x1x4x32xbf16>
    %106 = vector.shape_cast %105 : vector<1x1x1x4x32xbf16> to vector<4x32xbf16>
    %cst_144 = arith.constant dense<0.000000e+00> : vector<64x32xf32>
    %107 = tpu.matmul %104, %106, %cst_144 {dimension_numbers = #tpu.dot_dimension_numbers<[1], [0], [0], [1], [0, 0, 1, 1], [], []>} : vector<64x4xbf16>, vector<4x32xbf16>, vector<64x32xf32> -> vector<64x32xf32>
    %c0_145 = arith.constant 0 : index
    %c1_146 = arith.constant 1 : index
    %c0_147 = arith.constant 0 : index
    %c1_148 = arith.constant 1 : index
    %c0_149 = arith.constant 0 : index
    %108 = vector.load %arg1[%c0_145, %c1_146, %c0_147, %c1_148, %c0_149] : memref<1x6x9x9x4xf32, #tpu.memory_space<vmem>>, vector<1x1x8x8x4xf32>
    %109 = vector.shape_cast %108 : vector<1x1x8x8x4xf32> to vector<8x8x4xf32>
    %110 = vector.shape_cast %109 : vector<8x8x4xf32> to vector<64x4xf32>
    %111 = arith.truncf %110 : vector<64x4xf32> to vector<64x4xbf16>
    %c0_150 = arith.constant 0 : index
    %c0_151 = arith.constant 0 : index
    %c1_152 = arith.constant 1 : index
    %c0_153 = arith.constant 0 : index
    %c0_154 = arith.constant 0 : index
    %112 = vector.load %arg2[%c0_150, %c0_151, %c1_152, %c0_153, %c0_154] : memref<3x2x2x4x32xbf16, #tpu.memory_space<vmem>>, vector<1x1x1x4x32xbf16>
    %113 = vector.shape_cast %112 : vector<1x1x1x4x32xbf16> to vector<4x32xbf16>
    %cst_155 = arith.constant dense<0.000000e+00> : vector<64x32xf32>
    %114 = tpu.matmul %111, %113, %cst_155 {dimension_numbers = #tpu.dot_dimension_numbers<[1], [0], [0], [1], [0, 0, 1, 1], [], []>} : vector<64x4xbf16>, vector<4x32xbf16>, vector<64x32xf32> -> vector<64x32xf32>
    %115 = arith.addf %107, %114 : vector<64x32xf32>
    %c0_156 = arith.constant 0 : index
    %c1_157 = arith.constant 1 : index
    %c1_158 = arith.constant 1 : index
    %c0_159 = arith.constant 0 : index
    %c0_160 = arith.constant 0 : index
    %116 = vector.load %arg1[%c0_156, %c1_157, %c1_158, %c0_159, %c0_160] : memref<1x6x9x9x4xf32, #tpu.memory_space<vmem>>, vector<1x1x8x8x4xf32>
    %117 = vector.shape_cast %116 : vector<1x1x8x8x4xf32> to vector<8x8x4xf32>
    %118 = vector.shape_cast %117 : vector<8x8x4xf32> to vector<64x4xf32>
    %119 = arith.truncf %118 : vector<64x4xf32> to vector<64x4xbf16>
    %c0_161 = arith.constant 0 : index
    %c1_162 = arith.constant 1 : index
    %c0_163 = arith.constant 0 : index
    %c0_164 = arith.constant 0 : index
    %c0_165 = arith.constant 0 : index
    %120 = vector.load %arg2[%c0_161, %c1_162, %c0_163, %c0_164, %c0_165] : memref<3x2x2x4x32xbf16, #tpu.memory_space<vmem>>, vector<1x1x1x4x32xbf16>
    %121 = vector.shape_cast %120 : vector<1x1x1x4x32xbf16> to vector<4x32xbf16>
    %cst_166 = arith.constant dense<0.000000e+00> : vector<64x32xf32>
    %122 = tpu.matmul %119, %121, %cst_166 {dimension_numbers = #tpu.dot_dimension_numbers<[1], [0], [0], [1], [0, 0, 1, 1], [], []>} : vector<64x4xbf16>, vector<4x32xbf16>, vector<64x32xf32> -> vector<64x32xf32>
    %123 = arith.addf %115, %122 : vector<64x32xf32>
    %c0_167 = arith.constant 0 : index
    %c1_168 = arith.constant 1 : index
    %c1_169 = arith.constant 1 : index
    %c1_170 = arith.constant 1 : index
    %c0_171 = arith.constant 0 : index
    %124 = vector.load %arg1[%c0_167, %c1_168, %c1_169, %c1_170, %c0_171] : memref<1x6x9x9x4xf32, #tpu.memory_space<vmem>>, vector<1x1x8x8x4xf32>
    %125 = vector.shape_cast %124 : vector<1x1x8x8x4xf32> to vector<8x8x4xf32>
    %126 = vector.shape_cast %125 : vector<8x8x4xf32> to vector<64x4xf32>
    %127 = arith.truncf %126 : vector<64x4xf32> to vector<64x4xbf16>
    %c0_172 = arith.constant 0 : index
    %c1_173 = arith.constant 1 : index
    %c1_174 = arith.constant 1 : index
    %c0_175 = arith.constant 0 : index
    %c0_176 = arith.constant 0 : index
    %128 = vector.load %arg2[%c0_172, %c1_173, %c1_174, %c0_175, %c0_176] : memref<3x2x2x4x32xbf16, #tpu.memory_space<vmem>>, vector<1x1x1x4x32xbf16>
    %129 = vector.shape_cast %128 : vector<1x1x1x4x32xbf16> to vector<4x32xbf16>
    %cst_177 = arith.constant dense<0.000000e+00> : vector<64x32xf32>
    %130 = tpu.matmul %127, %129, %cst_177 {dimension_numbers = #tpu.dot_dimension_numbers<[1], [0], [0], [1], [0, 0, 1, 1], [], []>} : vector<64x4xbf16>, vector<4x32xbf16>, vector<64x32xf32> -> vector<64x32xf32>
    %131 = arith.addf %123, %130 : vector<64x32xf32>
    %c0_178 = arith.constant 0 : index
    %c2_179 = arith.constant 2 : index
    %c0_180 = arith.constant 0 : index
    %c0_181 = arith.constant 0 : index
    %c0_182 = arith.constant 0 : index
    %132 = vector.load %arg1[%c0_178, %c2_179, %c0_180, %c0_181, %c0_182] : memref<1x6x9x9x4xf32, #tpu.memory_space<vmem>>, vector<1x1x8x8x4xf32>
    %133 = vector.shape_cast %132 : vector<1x1x8x8x4xf32> to vector<8x8x4xf32>
    %134 = vector.shape_cast %133 : vector<8x8x4xf32> to vector<64x4xf32>
    %135 = arith.truncf %134 : vector<64x4xf32> to vector<64x4xbf16>
    %c1_183 = arith.constant 1 : index
    %c0_184 = arith.constant 0 : index
    %c0_185 = arith.constant 0 : index
    %c0_186 = arith.constant 0 : index
    %c0_187 = arith.constant 0 : index
    %136 = vector.load %arg2[%c1_183, %c0_184, %c0_185, %c0_186, %c0_187] : memref<3x2x2x4x32xbf16, #tpu.memory_space<vmem>>, vector<1x1x1x4x32xbf16>
    %137 = vector.shape_cast %136 : vector<1x1x1x4x32xbf16> to vector<4x32xbf16>
    %cst_188 = arith.constant dense<0.000000e+00> : vector<64x32xf32>
    %138 = tpu.matmul %135, %137, %cst_188 {dimension_numbers = #tpu.dot_dimension_numbers<[1], [0], [0], [1], [0, 0, 1, 1], [], []>} : vector<64x4xbf16>, vector<4x32xbf16>, vector<64x32xf32> -> vector<64x32xf32>
    %139 = arith.addf %131, %138 : vector<64x32xf32>
    %c0_189 = arith.constant 0 : index
    %c2_190 = arith.constant 2 : index
    %c0_191 = arith.constant 0 : index
    %c1_192 = arith.constant 1 : index
    %c0_193 = arith.constant 0 : index
    %140 = vector.load %arg1[%c0_189, %c2_190, %c0_191, %c1_192, %c0_193] : memref<1x6x9x9x4xf32, #tpu.memory_space<vmem>>, vector<1x1x8x8x4xf32>
    %141 = vector.shape_cast %140 : vector<1x1x8x8x4xf32> to vector<8x8x4xf32>
    %142 = vector.shape_cast %141 : vector<8x8x4xf32> to vector<64x4xf32>
    %143 = arith.truncf %142 : vector<64x4xf32> to vector<64x4xbf16>
    %c1_194 = arith.constant 1 : index
    %c0_195 = arith.constant 0 : index
    %c1_196 = arith.constant 1 : index
    %c0_197 = arith.constant 0 : index
    %c0_198 = arith.constant 0 : index
    %144 = vector.load %arg2[%c1_194, %c0_195, %c1_196, %c0_197, %c0_198] : memref<3x2x2x4x32xbf16, #tpu.memory_space<vmem>>, vector<1x1x1x4x32xbf16>
    %145 = vector.shape_cast %144 : vector<1x1x1x4x32xbf16> to vector<4x32xbf16>
    %cst_199 = arith.constant dense<0.000000e+00> : vector<64x32xf32>
    %146 = tpu.matmul %143, %145, %cst_199 {dimension_numbers = #tpu.dot_dimension_numbers<[1], [0], [0], [1], [0, 0, 1, 1], [], []>} : vector<64x4xbf16>, vector<4x32xbf16>, vector<64x32xf32> -> vector<64x32xf32>
    %147 = arith.addf %139, %146 : vector<64x32xf32>
    %c0_200 = arith.constant 0 : index
    %c2_201 = arith.constant 2 : index
    %c1_202 = arith.constant 1 : index
    %c0_203 = arith.constant 0 : index
    %c0_204 = arith.constant 0 : index
    %148 = vector.load %arg1[%c0_200, %c2_201, %c1_202, %c0_203, %c0_204] : memref<1x6x9x9x4xf32, #tpu.memory_space<vmem>>, vector<1x1x8x8x4xf32>
    %149 = vector.shape_cast %148 : vector<1x1x8x8x4xf32> to vector<8x8x4xf32>
    %150 = vector.shape_cast %149 : vector<8x8x4xf32> to vector<64x4xf32>
    %151 = arith.truncf %150 : vector<64x4xf32> to vector<64x4xbf16>
    %c1_205 = arith.constant 1 : index
    %c1_206 = arith.constant 1 : index
    %c0_207 = arith.constant 0 : index
    %c0_208 = arith.constant 0 : index
    %c0_209 = arith.constant 0 : index
    %152 = vector.load %arg2[%c1_205, %c1_206, %c0_207, %c0_208, %c0_209] : memref<3x2x2x4x32xbf16, #tpu.memory_space<vmem>>, vector<1x1x1x4x32xbf16>
    %153 = vector.shape_cast %152 : vector<1x1x1x4x32xbf16> to vector<4x32xbf16>
    %cst_210 = arith.constant dense<0.000000e+00> : vector<64x32xf32>
    %154 = tpu.matmul %151, %153, %cst_210 {dimension_numbers = #tpu.dot_dimension_numbers<[1], [0], [0], [1], [0, 0, 1, 1], [], []>} : vector<64x4xbf16>, vector<4x32xbf16>, vector<64x32xf32> -> vector<64x32xf32>
    %155 = arith.addf %147, %154 : vector<64x32xf32>
    %c0_211 = arith.constant 0 : index
    %c2_212 = arith.constant 2 : index
    %c1_213 = arith.constant 1 : index
    %c1_214 = arith.constant 1 : index
    %c0_215 = arith.constant 0 : index
    %156 = vector.load %arg1[%c0_211, %c2_212, %c1_213, %c1_214, %c0_215] : memref<1x6x9x9x4xf32, #tpu.memory_space<vmem>>, vector<1x1x8x8x4xf32>
    %157 = vector.shape_cast %156 : vector<1x1x8x8x4xf32> to vector<8x8x4xf32>
    %158 = vector.shape_cast %157 : vector<8x8x4xf32> to vector<64x4xf32>
    %159 = arith.truncf %158 : vector<64x4xf32> to vector<64x4xbf16>
    %c1_216 = arith.constant 1 : index
    %c1_217 = arith.constant 1 : index
    %c1_218 = arith.constant 1 : index
    %c0_219 = arith.constant 0 : index
    %c0_220 = arith.constant 0 : index
    %160 = vector.load %arg2[%c1_216, %c1_217, %c1_218, %c0_219, %c0_220] : memref<3x2x2x4x32xbf16, #tpu.memory_space<vmem>>, vector<1x1x1x4x32xbf16>
    %161 = vector.shape_cast %160 : vector<1x1x1x4x32xbf16> to vector<4x32xbf16>
    %cst_221 = arith.constant dense<0.000000e+00> : vector<64x32xf32>
    %162 = tpu.matmul %159, %161, %cst_221 {dimension_numbers = #tpu.dot_dimension_numbers<[1], [0], [0], [1], [0, 0, 1, 1], [], []>} : vector<64x4xbf16>, vector<4x32xbf16>, vector<64x32xf32> -> vector<64x32xf32>
    %163 = arith.addf %155, %162 : vector<64x32xf32>
    %c0_222 = arith.constant 0 : index
    %c3 = arith.constant 3 : index
    %c0_223 = arith.constant 0 : index
    %c0_224 = arith.constant 0 : index
    %c0_225 = arith.constant 0 : index
    %164 = vector.load %arg1[%c0_222, %c3, %c0_223, %c0_224, %c0_225] : memref<1x6x9x9x4xf32, #tpu.memory_space<vmem>>, vector<1x1x8x8x4xf32>
    %165 = vector.shape_cast %164 : vector<1x1x8x8x4xf32> to vector<8x8x4xf32>
    %166 = vector.shape_cast %165 : vector<8x8x4xf32> to vector<64x4xf32>
    %167 = arith.truncf %166 : vector<64x4xf32> to vector<64x4xbf16>
    %c2_226 = arith.constant 2 : index
    %c0_227 = arith.constant 0 : index
    %c0_228 = arith.constant 0 : index
    %c0_229 = arith.constant 0 : index
    %c0_230 = arith.constant 0 : index
    %168 = vector.load %arg2[%c2_226, %c0_227, %c0_228, %c0_229, %c0_230] : memref<3x2x2x4x32xbf16, #tpu.memory_space<vmem>>, vector<1x1x1x4x32xbf16>
    %169 = vector.shape_cast %168 : vector<1x1x1x4x32xbf16> to vector<4x32xbf16>
    %cst_231 = arith.constant dense<0.000000e+00> : vector<64x32xf32>
    %170 = tpu.matmul %167, %169, %cst_231 {dimension_numbers = #tpu.dot_dimension_numbers<[1], [0], [0], [1], [0, 0, 1, 1], [], []>} : vector<64x4xbf16>, vector<4x32xbf16>, vector<64x32xf32> -> vector<64x32xf32>
    %171 = arith.addf %163, %170 : vector<64x32xf32>
    %c0_232 = arith.constant 0 : index
    %c3_233 = arith.constant 3 : index
    %c0_234 = arith.constant 0 : index
    %c1_235 = arith.constant 1 : index
    %c0_236 = arith.constant 0 : index
    %172 = vector.load %arg1[%c0_232, %c3_233, %c0_234, %c1_235, %c0_236] : memref<1x6x9x9x4xf32, #tpu.memory_space<vmem>>, vector<1x1x8x8x4xf32>
    %173 = vector.shape_cast %172 : vector<1x1x8x8x4xf32> to vector<8x8x4xf32>
    %174 = vector.shape_cast %173 : vector<8x8x4xf32> to vector<64x4xf32>
    %175 = arith.truncf %174 : vector<64x4xf32> to vector<64x4xbf16>
    %c2_237 = arith.constant 2 : index
    %c0_238 = arith.constant 0 : index
    %c1_239 = arith.constant 1 : index
    %c0_240 = arith.constant 0 : index
    %c0_241 = arith.constant 0 : index
    %176 = vector.load %arg2[%c2_237, %c0_238, %c1_239, %c0_240, %c0_241] : memref<3x2x2x4x32xbf16, #tpu.memory_space<vmem>>, vector<1x1x1x4x32xbf16>
    %177 = vector.shape_cast %176 : vector<1x1x1x4x32xbf16> to vector<4x32xbf16>
    %cst_242 = arith.constant dense<0.000000e+00> : vector<64x32xf32>
    %178 = tpu.matmul %175, %177, %cst_242 {dimension_numbers = #tpu.dot_dimension_numbers<[1], [0], [0], [1], [0, 0, 1, 1], [], []>} : vector<64x4xbf16>, vector<4x32xbf16>, vector<64x32xf32> -> vector<64x32xf32>
    %179 = arith.addf %171, %178 : vector<64x32xf32>
    %c0_243 = arith.constant 0 : index
    %c3_244 = arith.constant 3 : index
    %c1_245 = arith.constant 1 : index
    %c0_246 = arith.constant 0 : index
    %c0_247 = arith.constant 0 : index
    %180 = vector.load %arg1[%c0_243, %c3_244, %c1_245, %c0_246, %c0_247] : memref<1x6x9x9x4xf32, #tpu.memory_space<vmem>>, vector<1x1x8x8x4xf32>
    %181 = vector.shape_cast %180 : vector<1x1x8x8x4xf32> to vector<8x8x4xf32>
    %182 = vector.shape_cast %181 : vector<8x8x4xf32> to vector<64x4xf32>
    %183 = arith.truncf %182 : vector<64x4xf32> to vector<64x4xbf16>
    %c2_248 = arith.constant 2 : index
    %c1_249 = arith.constant 1 : index
    %c0_250 = arith.constant 0 : index
    %c0_251 = arith.constant 0 : index
    %c0_252 = arith.constant 0 : index
    %184 = vector.load %arg2[%c2_248, %c1_249, %c0_250, %c0_251, %c0_252] : memref<3x2x2x4x32xbf16, #tpu.memory_space<vmem>>, vector<1x1x1x4x32xbf16>
    %185 = vector.shape_cast %184 : vector<1x1x1x4x32xbf16> to vector<4x32xbf16>
    %cst_253 = arith.constant dense<0.000000e+00> : vector<64x32xf32>
    %186 = tpu.matmul %183, %185, %cst_253 {dimension_numbers = #tpu.dot_dimension_numbers<[1], [0], [0], [1], [0, 0, 1, 1], [], []>} : vector<64x4xbf16>, vector<4x32xbf16>, vector<64x32xf32> -> vector<64x32xf32>
    %187 = arith.addf %179, %186 : vector<64x32xf32>
    %c0_254 = arith.constant 0 : index
    %c3_255 = arith.constant 3 : index
    %c1_256 = arith.constant 1 : index
    %c1_257 = arith.constant 1 : index
    %c0_258 = arith.constant 0 : index
    %188 = vector.load %arg1[%c0_254, %c3_255, %c1_256, %c1_257, %c0_258] : memref<1x6x9x9x4xf32, #tpu.memory_space<vmem>>, vector<1x1x8x8x4xf32>
    %189 = vector.shape_cast %188 : vector<1x1x8x8x4xf32> to vector<8x8x4xf32>
    %190 = vector.shape_cast %189 : vector<8x8x4xf32> to vector<64x4xf32>
    %191 = arith.truncf %190 : vector<64x4xf32> to vector<64x4xbf16>
    %c2_259 = arith.constant 2 : index
    %c1_260 = arith.constant 1 : index
    %c1_261 = arith.constant 1 : index
    %c0_262 = arith.constant 0 : index
    %c0_263 = arith.constant 0 : index
    %192 = vector.load %arg2[%c2_259, %c1_260, %c1_261, %c0_262, %c0_263] : memref<3x2x2x4x32xbf16, #tpu.memory_space<vmem>>, vector<1x1x1x4x32xbf16>
    %193 = vector.shape_cast %192 : vector<1x1x1x4x32xbf16> to vector<4x32xbf16>
    %cst_264 = arith.constant dense<0.000000e+00> : vector<64x32xf32>
    %194 = tpu.matmul %191, %193, %cst_264 {dimension_numbers = #tpu.dot_dimension_numbers<[1], [0], [0], [1], [0, 0, 1, 1], [], []>} : vector<64x4xbf16>, vector<4x32xbf16>, vector<64x32xf32> -> vector<64x32xf32>
    %195 = arith.addf %187, %194 : vector<64x32xf32>
    %196 = vector.broadcast %0 : vector<1x32xf32> to vector<64x32xf32>
    %197 = arith.addf %195, %196 : vector<64x32xf32>
    %c0_265 = arith.constant 0 : index
    %c1_266 = arith.constant 1 : index
    %c0_267 = arith.constant 0 : index
    %c0_268 = arith.constant 0 : index
    %198 = vector.load %arg4[%c0_265, %c1_266, %c0_267, %c0_268] : memref<1x4x64x32xf32, #tpu.memory_space<vmem>>, vector<1x1x64x32xf32>
    %199 = vector.shape_cast %198 : vector<1x1x64x32xf32> to vector<64x32xf32>
    %200 = vector.shape_cast %197 : vector<64x32xf32> to vector<1x1x64x32xf32>
    tpu.vector_store %arg4[%c0_265, %c1_266, %c0_267, %c0_268], %200 {strides = array<i32>} : memref<1x4x64x32xf32, #tpu.memory_space<vmem>>, vector<1x1x64x32xf32>,
    %c0_269 = arith.constant 0 : index
    %c2_270 = arith.constant 2 : index
    %c0_271 = arith.constant 0 : index
    %c0_272 = arith.constant 0 : index
    %c0_273 = arith.constant 0 : index
    %201 = vector.load %arg1[%c0_269, %c2_270, %c0_271, %c0_272, %c0_273] : memref<1x6x9x9x4xf32, #tpu.memory_space<vmem>>, vector<1x1x8x8x4xf32>
    %202 = vector.shape_cast %201 : vector<1x1x8x8x4xf32> to vector<8x8x4xf32>
    %203 = vector.shape_cast %202 : vector<8x8x4xf32> to vector<64x4xf32>
    %204 = arith.truncf %203 : vector<64x4xf32> to vector<64x4xbf16>
    %c0_274 = arith.constant 0 : index
    %c0_275 = arith.constant 0 : index
    %c0_276 = arith.constant 0 : index
    %c0_277 = arith.constant 0 : index
    %c0_278 = arith.constant 0 : index
    %205 = vector.load %arg2[%c0_274, %c0_275, %c0_276, %c0_277, %c0_278] : memref<3x2x2x4x32xbf16, #tpu.memory_space<vmem>>, vector<1x1x1x4x32xbf16>
    %206 = vector.shape_cast %205 : vector<1x1x1x4x32xbf16> to vector<4x32xbf16>
    %cst_279 = arith.constant dense<0.000000e+00> : vector<64x32xf32>
    %207 = tpu.matmul %204, %206, %cst_279 {dimension_numbers = #tpu.dot_dimension_numbers<[1], [0], [0], [1], [0, 0, 1, 1], [], []>} : vector<64x4xbf16>, vector<4x32xbf16>, vector<64x32xf32> -> vector<64x32xf32>
    %c0_280 = arith.constant 0 : index
    %c2_281 = arith.constant 2 : index
    %c0_282 = arith.constant 0 : index
    %c1_283 = arith.constant 1 : index
    %c0_284 = arith.constant 0 : index
    %208 = vector.load %arg1[%c0_280, %c2_281, %c0_282, %c1_283, %c0_284] : memref<1x6x9x9x4xf32, #tpu.memory_space<vmem>>, vector<1x1x8x8x4xf32>
    %209 = vector.shape_cast %208 : vector<1x1x8x8x4xf32> to vector<8x8x4xf32>
    %210 = vector.shape_cast %209 : vector<8x8x4xf32> to vector<64x4xf32>
    %211 = arith.truncf %210 : vector<64x4xf32> to vector<64x4xbf16>
    %c0_285 = arith.constant 0 : index
    %c0_286 = arith.constant 0 : index
    %c1_287 = arith.constant 1 : index
    %c0_288 = arith.constant 0 : index
    %c0_289 = arith.constant 0 : index
    %212 = vector.load %arg2[%c0_285, %c0_286, %c1_287, %c0_288, %c0_289] : memref<3x2x2x4x32xbf16, #tpu.memory_space<vmem>>, vector<1x1x1x4x32xbf16>
    %213 = vector.shape_cast %212 : vector<1x1x1x4x32xbf16> to vector<4x32xbf16>
    %cst_290 = arith.constant dense<0.000000e+00> : vector<64x32xf32>
    %214 = tpu.matmul %211, %213, %cst_290 {dimension_numbers = #tpu.dot_dimension_numbers<[1], [0], [0], [1], [0, 0, 1, 1], [], []>} : vector<64x4xbf16>, vector<4x32xbf16>, vector<64x32xf32> -> vector<64x32xf32>
    %215 = arith.addf %207, %214 : vector<64x32xf32>
    %c0_291 = arith.constant 0 : index
    %c2_292 = arith.constant 2 : index
    %c1_293 = arith.constant 1 : index
    %c0_294 = arith.constant 0 : index
    %c0_295 = arith.constant 0 : index
    %216 = vector.load %arg1[%c0_291, %c2_292, %c1_293, %c0_294, %c0_295] : memref<1x6x9x9x4xf32, #tpu.memory_space<vmem>>, vector<1x1x8x8x4xf32>
    %217 = vector.shape_cast %216 : vector<1x1x8x8x4xf32> to vector<8x8x4xf32>
    %218 = vector.shape_cast %217 : vector<8x8x4xf32> to vector<64x4xf32>
    %219 = arith.truncf %218 : vector<64x4xf32> to vector<64x4xbf16>
    %c0_296 = arith.constant 0 : index
    %c1_297 = arith.constant 1 : index
    %c0_298 = arith.constant 0 : index
    %c0_299 = arith.constant 0 : index
    %c0_300 = arith.constant 0 : index
    %220 = vector.load %arg2[%c0_296, %c1_297, %c0_298, %c0_299, %c0_300] : memref<3x2x2x4x32xbf16, #tpu.memory_space<vmem>>, vector<1x1x1x4x32xbf16>
    %221 = vector.shape_cast %220 : vector<1x1x1x4x32xbf16> to vector<4x32xbf16>
    %cst_301 = arith.constant dense<0.000000e+00> : vector<64x32xf32>
    %222 = tpu.matmul %219, %221, %cst_301 {dimension_numbers = #tpu.dot_dimension_numbers<[1], [0], [0], [1], [0, 0, 1, 1], [], []>} : vector<64x4xbf16>, vector<4x32xbf16>, vector<64x32xf32> -> vector<64x32xf32>
    %223 = arith.addf %215, %222 : vector<64x32xf32>
    %c0_302 = arith.constant 0 : index
    %c2_303 = arith.constant 2 : index
    %c1_304 = arith.constant 1 : index
    %c1_305 = arith.constant 1 : index
    %c0_306 = arith.constant 0 : index
    %224 = vector.load %arg1[%c0_302, %c2_303, %c1_304, %c1_305, %c0_306] : memref<1x6x9x9x4xf32, #tpu.memory_space<vmem>>, vector<1x1x8x8x4xf32>
    %225 = vector.shape_cast %224 : vector<1x1x8x8x4xf32> to vector<8x8x4xf32>
    %226 = vector.shape_cast %225 : vector<8x8x4xf32> to vector<64x4xf32>
    %227 = arith.truncf %226 : vector<64x4xf32> to vector<64x4xbf16>
    %c0_307 = arith.constant 0 : index
    %c1_308 = arith.constant 1 : index
    %c1_309 = arith.constant 1 : index
    %c0_310 = arith.constant 0 : index
    %c0_311 = arith.constant 0 : index
    %228 = vector.load %arg2[%c0_307, %c1_308, %c1_309, %c0_310, %c0_311] : memref<3x2x2x4x32xbf16, #tpu.memory_space<vmem>>, vector<1x1x1x4x32xbf16>
    %229 = vector.shape_cast %228 : vector<1x1x1x4x32xbf16> to vector<4x32xbf16>
    %cst_312 = arith.constant dense<0.000000e+00> : vector<64x32xf32>
    %230 = tpu.matmul %227, %229, %cst_312 {dimension_numbers = #tpu.dot_dimension_numbers<[1], [0], [0], [1], [0, 0, 1, 1], [], []>} : vector<64x4xbf16>, vector<4x32xbf16>, vector<64x32xf32> -> vector<64x32xf32>
    %231 = arith.addf %223, %230 : vector<64x32xf32>
    %c0_313 = arith.constant 0 : index
    %c3_314 = arith.constant 3 : index
    %c0_315 = arith.constant 0 : index
    %c0_316 = arith.constant 0 : index
    %c0_317 = arith.constant 0 : index
    %232 = vector.load %arg1[%c0_313, %c3_314, %c0_315, %c0_316, %c0_317] : memref<1x6x9x9x4xf32, #tpu.memory_space<vmem>>, vector<1x1x8x8x4xf32>
    %233 = vector.shape_cast %232 : vector<1x1x8x8x4xf32> to vector<8x8x4xf32>
    %234 = vector.shape_cast %233 : vector<8x8x4xf32> to vector<64x4xf32>
    %235 = arith.truncf %234 : vector<64x4xf32> to vector<64x4xbf16>
    %c1_318 = arith.constant 1 : index
    %c0_319 = arith.constant 0 : index
    %c0_320 = arith.constant 0 : index
    %c0_321 = arith.constant 0 : index
    %c0_322 = arith.constant 0 : index
    %236 = vector.load %arg2[%c1_318, %c0_319, %c0_320, %c0_321, %c0_322] : memref<3x2x2x4x32xbf16, #tpu.memory_space<vmem>>, vector<1x1x1x4x32xbf16>
    %237 = vector.shape_cast %236 : vector<1x1x1x4x32xbf16> to vector<4x32xbf16>
    %cst_323 = arith.constant dense<0.000000e+00> : vector<64x32xf32>
    %238 = tpu.matmul %235, %237, %cst_323 {dimension_numbers = #tpu.dot_dimension_numbers<[1], [0], [0], [1], [0, 0, 1, 1], [], []>} : vector<64x4xbf16>, vector<4x32xbf16>, vector<64x32xf32> -> vector<64x32xf32>
    %239 = arith.addf %231, %238 : vector<64x32xf32>
    %c0_324 = arith.constant 0 : index
    %c3_325 = arith.constant 3 : index
    %c0_326 = arith.constant 0 : index
    %c1_327 = arith.constant 1 : index
    %c0_328 = arith.constant 0 : index
    %240 = vector.load %arg1[%c0_324, %c3_325, %c0_326, %c1_327, %c0_328] : memref<1x6x9x9x4xf32, #tpu.memory_space<vmem>>, vector<1x1x8x8x4xf32>
    %241 = vector.shape_cast %240 : vector<1x1x8x8x4xf32> to vector<8x8x4xf32>
    %242 = vector.shape_cast %241 : vector<8x8x4xf32> to vector<64x4xf32>
    %243 = arith.truncf %242 : vector<64x4xf32> to vector<64x4xbf16>
    %c1_329 = arith.constant 1 : index
    %c0_330 = arith.constant 0 : index
    %c1_331 = arith.constant 1 : index
    %c0_332 = arith.constant 0 : index
    %c0_333 = arith.constant 0 : index
    %244 = vector.load %arg2[%c1_329, %c0_330, %c1_331, %c0_332, %c0_333] : memref<3x2x2x4x32xbf16, #tpu.memory_space<vmem>>, vector<1x1x1x4x32xbf16>
    %245 = vector.shape_cast %244 : vector<1x1x1x4x32xbf16> to vector<4x32xbf16>
    %cst_334 = arith.constant dense<0.000000e+00> : vector<64x32xf32>
    %246 = tpu.matmul %243, %245, %cst_334 {dimension_numbers = #tpu.dot_dimension_numbers<[1], [0], [0], [1], [0, 0, 1, 1], [], []>} : vector<64x4xbf16>, vector<4x32xbf16>, vector<64x32xf32> -> vector<64x32xf32>
    %247 = arith.addf %239, %246 : vector<64x32xf32>
    %c0_335 = arith.constant 0 : index
    %c3_336 = arith.constant 3 : index
    %c1_337 = arith.constant 1 : index
    %c0_338 = arith.constant 0 : index
    %c0_339 = arith.constant 0 : index
    %248 = vector.load %arg1[%c0_335, %c3_336, %c1_337, %c0_338, %c0_339] : memref<1x6x9x9x4xf32, #tpu.memory_space<vmem>>, vector<1x1x8x8x4xf32>
    %249 = vector.shape_cast %248 : vector<1x1x8x8x4xf32> to vector<8x8x4xf32>
    %250 = vector.shape_cast %249 : vector<8x8x4xf32> to vector<64x4xf32>
    %251 = arith.truncf %250 : vector<64x4xf32> to vector<64x4xbf16>
    %c1_340 = arith.constant 1 : index
    %c1_341 = arith.constant 1 : index
    %c0_342 = arith.constant 0 : index
    %c0_343 = arith.constant 0 : index
    %c0_344 = arith.constant 0 : index
    %252 = vector.load %arg2[%c1_340, %c1_341, %c0_342, %c0_343, %c0_344] : memref<3x2x2x4x32xbf16, #tpu.memory_space<vmem>>, vector<1x1x1x4x32xbf16>
    %253 = vector.shape_cast %252 : vector<1x1x1x4x32xbf16> to vector<4x32xbf16>
    %cst_345 = arith.constant dense<0.000000e+00> : vector<64x32xf32>
    %254 = tpu.matmul %251, %253, %cst_345 {dimension_numbers = #tpu.dot_dimension_numbers<[1], [0], [0], [1], [0, 0, 1, 1], [], []>} : vector<64x4xbf16>, vector<4x32xbf16>, vector<64x32xf32> -> vector<64x32xf32>
    %255 = arith.addf %247, %254 : vector<64x32xf32>
    %c0_346 = arith.constant 0 : index
    %c3_347 = arith.constant 3 : index
    %c1_348 = arith.constant 1 : index
    %c1_349 = arith.constant 1 : index
    %c0_350 = arith.constant 0 : index
    %256 = vector.load %arg1[%c0_346, %c3_347, %c1_348, %c1_349, %c0_350] : memref<1x6x9x9x4xf32, #tpu.memory_space<vmem>>, vector<1x1x8x8x4xf32>
    %257 = vector.shape_cast %256 : vector<1x1x8x8x4xf32> to vector<8x8x4xf32>
    %258 = vector.shape_cast %257 : vector<8x8x4xf32> to vector<64x4xf32>
    %259 = arith.truncf %258 : vector<64x4xf32> to vector<64x4xbf16>
    %c1_351 = arith.constant 1 : index
    %c1_352 = arith.constant 1 : index
    %c1_353 = arith.constant 1 : index
    %c0_354 = arith.constant 0 : index
    %c0_355 = arith.constant 0 : index
    %260 = vector.load %arg2[%c1_351, %c1_352, %c1_353, %c0_354, %c0_355] : memref<3x2x2x4x32xbf16, #tpu.memory_space<vmem>>, vector<1x1x1x4x32xbf16>
    %261 = vector.shape_cast %260 : vector<1x1x1x4x32xbf16> to vector<4x32xbf16>
    %cst_356 = arith.constant dense<0.000000e+00> : vector<64x32xf32>
    %262 = tpu.matmul %259, %261, %cst_356 {dimension_numbers = #tpu.dot_dimension_numbers<[1], [0], [0], [1], [0, 0, 1, 1], [], []>} : vector<64x4xbf16>, vector<4x32xbf16>, vector<64x32xf32> -> vector<64x32xf32>
    %263 = arith.addf %255, %262 : vector<64x32xf32>
    %c0_357 = arith.constant 0 : index
    %c4 = arith.constant 4 : index
    %c0_358 = arith.constant 0 : index
    %c0_359 = arith.constant 0 : index
    %c0_360 = arith.constant 0 : index
    %264 = vector.load %arg1[%c0_357, %c4, %c0_358, %c0_359, %c0_360] : memref<1x6x9x9x4xf32, #tpu.memory_space<vmem>>, vector<1x1x8x8x4xf32>
    %265 = vector.shape_cast %264 : vector<1x1x8x8x4xf32> to vector<8x8x4xf32>
    %266 = vector.shape_cast %265 : vector<8x8x4xf32> to vector<64x4xf32>
    %267 = arith.truncf %266 : vector<64x4xf32> to vector<64x4xbf16>
    %c2_361 = arith.constant 2 : index
    %c0_362 = arith.constant 0 : index
    %c0_363 = arith.constant 0 : index
    %c0_364 = arith.constant 0 : index
    %c0_365 = arith.constant 0 : index
    %268 = vector.load %arg2[%c2_361, %c0_362, %c0_363, %c0_364, %c0_365] : memref<3x2x2x4x32xbf16, #tpu.memory_space<vmem>>, vector<1x1x1x4x32xbf16>
    %269 = vector.shape_cast %268 : vector<1x1x1x4x32xbf16> to vector<4x32xbf16>
    %cst_366 = arith.constant dense<0.000000e+00> : vector<64x32xf32>
    %270 = tpu.matmul %267, %269, %cst_366 {dimension_numbers = #tpu.dot_dimension_numbers<[1], [0], [0], [1], [0, 0, 1, 1], [], []>} : vector<64x4xbf16>, vector<4x32xbf16>, vector<64x32xf32> -> vector<64x32xf32>
    %271 = arith.addf %263, %270 : vector<64x32xf32>
    %c0_367 = arith.constant 0 : index
    %c4_368 = arith.constant 4 : index
    %c0_369 = arith.constant 0 : index
    %c1_370 = arith.constant 1 : index
    %c0_371 = arith.constant 0 : index
    %272 = vector.load %arg1[%c0_367, %c4_368, %c0_369, %c1_370, %c0_371] : memref<1x6x9x9x4xf32, #tpu.memory_space<vmem>>, vector<1x1x8x8x4xf32>
    %273 = vector.shape_cast %272 : vector<1x1x8x8x4xf32> to vector<8x8x4xf32>
    %274 = vector.shape_cast %273 : vector<8x8x4xf32> to vector<64x4xf32>
    %275 = arith.truncf %274 : vector<64x4xf32> to vector<64x4xbf16>
    %c2_372 = arith.constant 2 : index
    %c0_373 = arith.constant 0 : index
    %c1_374 = arith.constant 1 : index
    %c0_375 = arith.constant 0 : index
    %c0_376 = arith.constant 0 : index
    %276 = vector.load %arg2[%c2_372, %c0_373, %c1_374, %c0_375, %c0_376] : memref<3x2x2x4x32xbf16, #tpu.memory_space<vmem>>, vector<1x1x1x4x32xbf16>
    %277 = vector.shape_cast %276 : vector<1x1x1x4x32xbf16> to vector<4x32xbf16>
    %cst_377 = arith.constant dense<0.000000e+00> : vector<64x32xf32>
    %278 = tpu.matmul %275, %277, %cst_377 {dimension_numbers = #tpu.dot_dimension_numbers<[1], [0], [0], [1], [0, 0, 1, 1], [], []>} : vector<64x4xbf16>, vector<4x32xbf16>, vector<64x32xf32> -> vector<64x32xf32>
    %279 = arith.addf %271, %278 : vector<64x32xf32>
    %c0_378 = arith.constant 0 : index
    %c4_379 = arith.constant 4 : index
    %c1_380 = arith.constant 1 : index
    %c0_381 = arith.constant 0 : index
    %c0_382 = arith.constant 0 : index
    %280 = vector.load %arg1[%c0_378, %c4_379, %c1_380, %c0_381, %c0_382] : memref<1x6x9x9x4xf32, #tpu.memory_space<vmem>>, vector<1x1x8x8x4xf32>
    %281 = vector.shape_cast %280 : vector<1x1x8x8x4xf32> to vector<8x8x4xf32>
    %282 = vector.shape_cast %281 : vector<8x8x4xf32> to vector<64x4xf32>
    %283 = arith.truncf %282 : vector<64x4xf32> to vector<64x4xbf16>
    %c2_383 = arith.constant 2 : index
    %c1_384 = arith.constant 1 : index
    %c0_385 = arith.constant 0 : index
    %c0_386 = arith.constant 0 : index
    %c0_387 = arith.constant 0 : index
    %284 = vector.load %arg2[%c2_383, %c1_384, %c0_385, %c0_386, %c0_387] : memref<3x2x2x4x32xbf16, #tpu.memory_space<vmem>>, vector<1x1x1x4x32xbf16>
    %285 = vector.shape_cast %284 : vector<1x1x1x4x32xbf16> to vector<4x32xbf16>
    %cst_388 = arith.constant dense<0.000000e+00> : vector<64x32xf32>
    %286 = tpu.matmul %283, %285, %cst_388 {dimension_numbers = #tpu.dot_dimension_numbers<[1], [0], [0], [1], [0, 0, 1, 1], [], []>} : vector<64x4xbf16>, vector<4x32xbf16>, vector<64x32xf32> -> vector<64x32xf32>
    %287 = arith.addf %279, %286 : vector<64x32xf32>
    %c0_389 = arith.constant 0 : index
    %c4_390 = arith.constant 4 : index
    %c1_391 = arith.constant 1 : index
    %c1_392 = arith.constant 1 : index
    %c0_393 = arith.constant 0 : index
    %288 = vector.load %arg1[%c0_389, %c4_390, %c1_391, %c1_392, %c0_393] : memref<1x6x9x9x4xf32, #tpu.memory_space<vmem>>, vector<1x1x8x8x4xf32>
    %289 = vector.shape_cast %288 : vector<1x1x8x8x4xf32> to vector<8x8x4xf32>
    %290 = vector.shape_cast %289 : vector<8x8x4xf32> to vector<64x4xf32>
    %291 = arith.truncf %290 : vector<64x4xf32> to vector<64x4xbf16>
    %c2_394 = arith.constant 2 : index
    %c1_395 = arith.constant 1 : index
    %c1_396 = arith.constant 1 : index
    %c0_397 = arith.constant 0 : index
    %c0_398 = arith.constant 0 : index
    %292 = vector.load %arg2[%c2_394, %c1_395, %c1_396, %c0_397, %c0_398] : memref<3x2x2x4x32xbf16, #tpu.memory_space<vmem>>, vector<1x1x1x4x32xbf16>
    %293 = vector.shape_cast %292 : vector<1x1x1x4x32xbf16> to vector<4x32xbf16>
    %cst_399 = arith.constant dense<0.000000e+00> : vector<64x32xf32>
    %294 = tpu.matmul %291, %293, %cst_399 {dimension_numbers = #tpu.dot_dimension_numbers<[1], [0], [0], [1], [0, 0, 1, 1], [], []>} : vector<64x4xbf16>, vector<4x32xbf16>, vector<64x32xf32> -> vector<64x32xf32>
    %295 = arith.addf %287, %294 : vector<64x32xf32>
    %296 = vector.broadcast %0 : vector<1x32xf32> to vector<64x32xf32>
    %297 = arith.addf %295, %296 : vector<64x32xf32>
    %c0_400 = arith.constant 0 : index
    %c2_401 = arith.constant 2 : index
    %c0_402 = arith.constant 0 : index
    %c0_403 = arith.constant 0 : index
    %298 = vector.load %arg4[%c0_400, %c2_401, %c0_402, %c0_403] : memref<1x4x64x32xf32, #tpu.memory_space<vmem>>, vector<1x1x64x32xf32>
    %299 = vector.shape_cast %298 : vector<1x1x64x32xf32> to vector<64x32xf32>
    %300 = vector.shape_cast %297 : vector<64x32xf32> to vector<1x1x64x32xf32>
    tpu.vector_store %arg4[%c0_400, %c2_401, %c0_402, %c0_403], %300 {strides = array<i32>} : memref<1x4x64x32xf32, #tpu.memory_space<vmem>>, vector<1x1x64x32xf32>,
    %c0_404 = arith.constant 0 : index
    %c3_405 = arith.constant 3 : index
    %c0_406 = arith.constant 0 : index
    %c0_407 = arith.constant 0 : index
    %c0_408 = arith.constant 0 : index
    %301 = vector.load %arg1[%c0_404, %c3_405, %c0_406, %c0_407, %c0_408] : memref<1x6x9x9x4xf32, #tpu.memory_space<vmem>>, vector<1x1x8x8x4xf32>
    %302 = vector.shape_cast %301 : vector<1x1x8x8x4xf32> to vector<8x8x4xf32>
    %303 = vector.shape_cast %302 : vector<8x8x4xf32> to vector<64x4xf32>
    %304 = arith.truncf %303 : vector<64x4xf32> to vector<64x4xbf16>
    %c0_409 = arith.constant 0 : index
    %c0_410 = arith.constant 0 : index
    %c0_411 = arith.constant 0 : index
    %c0_412 = arith.constant 0 : index
    %c0_413 = arith.constant 0 : index
    %305 = vector.load %arg2[%c0_409, %c0_410, %c0_411, %c0_412, %c0_413] : memref<3x2x2x4x32xbf16, #tpu.memory_space<vmem>>, vector<1x1x1x4x32xbf16>
    %306 = vector.shape_cast %305 : vector<1x1x1x4x32xbf16> to vector<4x32xbf16>
    %cst_414 = arith.constant dense<0.000000e+00> : vector<64x32xf32>
    %307 = tpu.matmul %304, %306, %cst_414 {dimension_numbers = #tpu.dot_dimension_numbers<[1], [0], [0], [1], [0, 0, 1, 1], [], []>} : vector<64x4xbf16>, vector<4x32xbf16>, vector<64x32xf32> -> vector<64x32xf32>
    %c0_415 = arith.constant 0 : index
    %c3_416 = arith.constant 3 : index
    %c0_417 = arith.constant 0 : index
    %c1_418 = arith.constant 1 : index
    %c0_419 = arith.constant 0 : index
    %308 = vector.load %arg1[%c0_415, %c3_416, %c0_417, %c1_418, %c0_419] : memref<1x6x9x9x4xf32, #tpu.memory_space<vmem>>, vector<1x1x8x8x4xf32>
    %309 = vector.shape_cast %308 : vector<1x1x8x8x4xf32> to vector<8x8x4xf32>
    %310 = vector.shape_cast %309 : vector<8x8x4xf32> to vector<64x4xf32>
    %311 = arith.truncf %310 : vector<64x4xf32> to vector<64x4xbf16>
    %c0_420 = arith.constant 0 : index
    %c0_421 = arith.constant 0 : index
    %c1_422 = arith.constant 1 : index
    %c0_423 = arith.constant 0 : index
    %c0_424 = arith.constant 0 : index
    %312 = vector.load %arg2[%c0_420, %c0_421, %c1_422, %c0_423, %c0_424] : memref<3x2x2x4x32xbf16, #tpu.memory_space<vmem>>, vector<1x1x1x4x32xbf16>
    %313 = vector.shape_cast %312 : vector<1x1x1x4x32xbf16> to vector<4x32xbf16>
    %cst_425 = arith.constant dense<0.000000e+00> : vector<64x32xf32>
    %314 = tpu.matmul %311, %313, %cst_425 {dimension_numbers = #tpu.dot_dimension_numbers<[1], [0], [0], [1], [0, 0, 1, 1], [], []>} : vector<64x4xbf16>, vector<4x32xbf16>, vector<64x32xf32> -> vector<64x32xf32>
    %315 = arith.addf %307, %314 : vector<64x32xf32>
    %c0_426 = arith.constant 0 : index
    %c3_427 = arith.constant 3 : index
    %c1_428 = arith.constant 1 : index
    %c0_429 = arith.constant 0 : index
    %c0_430 = arith.constant 0 : index
    %316 = vector.load %arg1[%c0_426, %c3_427, %c1_428, %c0_429, %c0_430] : memref<1x6x9x9x4xf32, #tpu.memory_space<vmem>>, vector<1x1x8x8x4xf32>
    %317 = vector.shape_cast %316 : vector<1x1x8x8x4xf32> to vector<8x8x4xf32>
    %318 = vector.shape_cast %317 : vector<8x8x4xf32> to vector<64x4xf32>
    %319 = arith.truncf %318 : vector<64x4xf32> to vector<64x4xbf16>
    %c0_431 = arith.constant 0 : index
    %c1_432 = arith.constant 1 : index
    %c0_433 = arith.constant 0 : index
    %c0_434 = arith.constant 0 : index
    %c0_435 = arith.constant 0 : index
    %320 = vector.load %arg2[%c0_431, %c1_432, %c0_433, %c0_434, %c0_435] : memref<3x2x2x4x32xbf16, #tpu.memory_space<vmem>>, vector<1x1x1x4x32xbf16>
    %321 = vector.shape_cast %320 : vector<1x1x1x4x32xbf16> to vector<4x32xbf16>
    %cst_436 = arith.constant dense<0.000000e+00> : vector<64x32xf32>
    %322 = tpu.matmul %319, %321, %cst_436 {dimension_numbers = #tpu.dot_dimension_numbers<[1], [0], [0], [1], [0, 0, 1, 1], [], []>} : vector<64x4xbf16>, vector<4x32xbf16>, vector<64x32xf32> -> vector<64x32xf32>
    %323 = arith.addf %315, %322 : vector<64x32xf32>
    %c0_437 = arith.constant 0 : index
    %c3_438 = arith.constant 3 : index
    %c1_439 = arith.constant 1 : index
    %c1_440 = arith.constant 1 : index
    %c0_441 = arith.constant 0 : index
    %324 = vector.load %arg1[%c0_437, %c3_438, %c1_439, %c1_440, %c0_441] : memref<1x6x9x9x4xf32, #tpu.memory_space<vmem>>, vector<1x1x8x8x4xf32>
    %325 = vector.shape_cast %324 : vector<1x1x8x8x4xf32> to vector<8x8x4xf32>
    %326 = vector.shape_cast %325 : vector<8x8x4xf32> to vector<64x4xf32>
    %327 = arith.truncf %326 : vector<64x4xf32> to vector<64x4xbf16>
    %c0_442 = arith.constant 0 : index
    %c1_443 = arith.constant 1 : index
    %c1_444 = arith.constant 1 : index
    %c0_445 = arith.constant 0 : index
    %c0_446 = arith.constant 0 : index
    %328 = vector.load %arg2[%c0_442, %c1_443, %c1_444, %c0_445, %c0_446] : memref<3x2x2x4x32xbf16, #tpu.memory_space<vmem>>, vector<1x1x1x4x32xbf16>
    %329 = vector.shape_cast %328 : vector<1x1x1x4x32xbf16> to vector<4x32xbf16>
    %cst_447 = arith.constant dense<0.000000e+00> : vector<64x32xf32>
    %330 = tpu.matmul %327, %329, %cst_447 {dimension_numbers = #tpu.dot_dimension_numbers<[1], [0], [0], [1], [0, 0, 1, 1], [], []>} : vector<64x4xbf16>, vector<4x32xbf16>, vector<64x32xf32> -> vector<64x32xf32>
    %331 = arith.addf %323, %330 : vector<64x32xf32>
    %c0_448 = arith.constant 0 : index
    %c4_449 = arith.constant 4 : index
    %c0_450 = arith.constant 0 : index
    %c0_451 = arith.constant 0 : index
    %c0_452 = arith.constant 0 : index
    %332 = vector.load %arg1[%c0_448, %c4_449, %c0_450, %c0_451, %c0_452] : memref<1x6x9x9x4xf32, #tpu.memory_space<vmem>>, vector<1x1x8x8x4xf32>
    %333 = vector.shape_cast %332 : vector<1x1x8x8x4xf32> to vector<8x8x4xf32>
    %334 = vector.shape_cast %333 : vector<8x8x4xf32> to vector<64x4xf32>
    %335 = arith.truncf %334 : vector<64x4xf32> to vector<64x4xbf16>
    %c1_453 = arith.constant 1 : index
    %c0_454 = arith.constant 0 : index
    %c0_455 = arith.constant 0 : index
    %c0_456 = arith.constant 0 : index
    %c0_457 = arith.constant 0 : index
    %336 = vector.load %arg2[%c1_453, %c0_454, %c0_455, %c0_456, %c0_457] : memref<3x2x2x4x32xbf16, #tpu.memory_space<vmem>>, vector<1x1x1x4x32xbf16>
    %337 = vector.shape_cast %336 : vector<1x1x1x4x32xbf16> to vector<4x32xbf16>
    %cst_458 = arith.constant dense<0.000000e+00> : vector<64x32xf32>
    %338 = tpu.matmul %335, %337, %cst_458 {dimension_numbers = #tpu.dot_dimension_numbers<[1], [0], [0], [1], [0, 0, 1, 1], [], []>} : vector<64x4xbf16>, vector<4x32xbf16>, vector<64x32xf32> -> vector<64x32xf32>
    %339 = arith.addf %331, %338 : vector<64x32xf32>
    %c0_459 = arith.constant 0 : index
    %c4_460 = arith.constant 4 : index
    %c0_461 = arith.constant 0 : index
    %c1_462 = arith.constant 1 : index
    %c0_463 = arith.constant 0 : index
    %340 = vector.load %arg1[%c0_459, %c4_460, %c0_461, %c1_462, %c0_463] : memref<1x6x9x9x4xf32, #tpu.memory_space<vmem>>, vector<1x1x8x8x4xf32>
    %341 = vector.shape_cast %340 : vector<1x1x8x8x4xf32> to vector<8x8x4xf32>
    %342 = vector.shape_cast %341 : vector<8x8x4xf32> to vector<64x4xf32>
    %343 = arith.truncf %342 : vector<64x4xf32> to vector<64x4xbf16>
    %c1_464 = arith.constant 1 : index
    %c0_465 = arith.constant 0 : index
    %c1_466 = arith.constant 1 : index
    %c0_467 = arith.constant 0 : index
    %c0_468 = arith.constant 0 : index
    %344 = vector.load %arg2[%c1_464, %c0_465, %c1_466, %c0_467, %c0_468] : memref<3x2x2x4x32xbf16, #tpu.memory_space<vmem>>, vector<1x1x1x4x32xbf16>
    %345 = vector.shape_cast %344 : vector<1x1x1x4x32xbf16> to vector<4x32xbf16>
    %cst_469 = arith.constant dense<0.000000e+00> : vector<64x32xf32>
    %346 = tpu.matmul %343, %345, %cst_469 {dimension_numbers = #tpu.dot_dimension_numbers<[1], [0], [0], [1], [0, 0, 1, 1], [], []>} : vector<64x4xbf16>, vector<4x32xbf16>, vector<64x32xf32> -> vector<64x32xf32>
    %347 = arith.addf %339, %346 : vector<64x32xf32>
    %c0_470 = arith.constant 0 : index
    %c4_471 = arith.constant 4 : index
    %c1_472 = arith.constant 1 : index
    %c0_473 = arith.constant 0 : index
    %c0_474 = arith.constant 0 : index
    %348 = vector.load %arg1[%c0_470, %c4_471, %c1_472, %c0_473, %c0_474] : memref<1x6x9x9x4xf32, #tpu.memory_space<vmem>>, vector<1x1x8x8x4xf32>
    %349 = vector.shape_cast %348 : vector<1x1x8x8x4xf32> to vector<8x8x4xf32>
    %350 = vector.shape_cast %349 : vector<8x8x4xf32> to vector<64x4xf32>
    %351 = arith.truncf %350 : vector<64x4xf32> to vector<64x4xbf16>
    %c1_475 = arith.constant 1 : index
    %c1_476 = arith.constant 1 : index
    %c0_477 = arith.constant 0 : index
    %c0_478 = arith.constant 0 : index
    %c0_479 = arith.constant 0 : index
    %352 = vector.load %arg2[%c1_475, %c1_476, %c0_477, %c0_478, %c0_479] : memref<3x2x2x4x32xbf16, #tpu.memory_space<vmem>>, vector<1x1x1x4x32xbf16>
    %353 = vector.shape_cast %352 : vector<1x1x1x4x32xbf16> to vector<4x32xbf16>
    %cst_480 = arith.constant dense<0.000000e+00> : vector<64x32xf32>
    %354 = tpu.matmul %351, %353, %cst_480 {dimension_numbers = #tpu.dot_dimension_numbers<[1], [0], [0], [1], [0, 0, 1, 1], [], []>} : vector<64x4xbf16>, vector<4x32xbf16>, vector<64x32xf32> -> vector<64x32xf32>
    %355 = arith.addf %347, %354 : vector<64x32xf32>
    %c0_481 = arith.constant 0 : index
    %c4_482 = arith.constant 4 : index
    %c1_483 = arith.constant 1 : index
    %c1_484 = arith.constant 1 : index
    %c0_485 = arith.constant 0 : index
    %356 = vector.load %arg1[%c0_481, %c4_482, %c1_483, %c1_484, %c0_485] : memref<1x6x9x9x4xf32, #tpu.memory_space<vmem>>, vector<1x1x8x8x4xf32>
    %357 = vector.shape_cast %356 : vector<1x1x8x8x4xf32> to vector<8x8x4xf32>
    %358 = vector.shape_cast %357 : vector<8x8x4xf32> to vector<64x4xf32>
    %359 = arith.truncf %358 : vector<64x4xf32> to vector<64x4xbf16>
    %c1_486 = arith.constant 1 : index
    %c1_487 = arith.constant 1 : index
    %c1_488 = arith.constant 1 : index
    %c0_489 = arith.constant 0 : index
    %c0_490 = arith.constant 0 : index
    %360 = vector.load %arg2[%c1_486, %c1_487, %c1_488, %c0_489, %c0_490] : memref<3x2x2x4x32xbf16, #tpu.memory_space<vmem>>, vector<1x1x1x4x32xbf16>
    %361 = vector.shape_cast %360 : vector<1x1x1x4x32xbf16> to vector<4x32xbf16>
    %cst_491 = arith.constant dense<0.000000e+00> : vector<64x32xf32>
    %362 = tpu.matmul %359, %361, %cst_491 {dimension_numbers = #tpu.dot_dimension_numbers<[1], [0], [0], [1], [0, 0, 1, 1], [], []>} : vector<64x4xbf16>, vector<4x32xbf16>, vector<64x32xf32> -> vector<64x32xf32>
    %363 = arith.addf %355, %362 : vector<64x32xf32>
    %c0_492 = arith.constant 0 : index
    %c5 = arith.constant 5 : index
    %c0_493 = arith.constant 0 : index
    %c0_494 = arith.constant 0 : index
    %c0_495 = arith.constant 0 : index
    %364 = vector.load %arg1[%c0_492, %c5, %c0_493, %c0_494, %c0_495] : memref<1x6x9x9x4xf32, #tpu.memory_space<vmem>>, vector<1x1x8x8x4xf32>
    %365 = vector.shape_cast %364 : vector<1x1x8x8x4xf32> to vector<8x8x4xf32>
    %366 = vector.shape_cast %365 : vector<8x8x4xf32> to vector<64x4xf32>
    %367 = arith.truncf %366 : vector<64x4xf32> to vector<64x4xbf16>
    %c2_496 = arith.constant 2 : index
    %c0_497 = arith.constant 0 : index
    %c0_498 = arith.constant 0 : index
    %c0_499 = arith.constant 0 : index
    %c0_500 = arith.constant 0 : index
    %368 = vector.load %arg2[%c2_496, %c0_497, %c0_498, %c0_499, %c0_500] : memref<3x2x2x4x32xbf16, #tpu.memory_space<vmem>>, vector<1x1x1x4x32xbf16>
    %369 = vector.shape_cast %368 : vector<1x1x1x4x32xbf16> to vector<4x32xbf16>
    %cst_501 = arith.constant dense<0.000000e+00> : vector<64x32xf32>
    %370 = tpu.matmul %367, %369, %cst_501 {dimension_numbers = #tpu.dot_dimension_numbers<[1], [0], [0], [1], [0, 0, 1, 1], [], []>} : vector<64x4xbf16>, vector<4x32xbf16>, vector<64x32xf32> -> vector<64x32xf32>
    %371 = arith.addf %363, %370 : vector<64x32xf32>
    %c0_502 = arith.constant 0 : index
    %c5_503 = arith.constant 5 : index
    %c0_504 = arith.constant 0 : index
    %c1_505 = arith.constant 1 : index
    %c0_506 = arith.constant 0 : index
    %372 = vector.load %arg1[%c0_502, %c5_503, %c0_504, %c1_505, %c0_506] : memref<1x6x9x9x4xf32, #tpu.memory_space<vmem>>, vector<1x1x8x8x4xf32>
    %373 = vector.shape_cast %372 : vector<1x1x8x8x4xf32> to vector<8x8x4xf32>
    %374 = vector.shape_cast %373 : vector<8x8x4xf32> to vector<64x4xf32>
    %375 = arith.truncf %374 : vector<64x4xf32> to vector<64x4xbf16>
    %c2_507 = arith.constant 2 : index
    %c0_508 = arith.constant 0 : index
    %c1_509 = arith.constant 1 : index
    %c0_510 = arith.constant 0 : index
    %c0_511 = arith.constant 0 : index
    %376 = vector.load %arg2[%c2_507, %c0_508, %c1_509, %c0_510, %c0_511] : memref<3x2x2x4x32xbf16, #tpu.memory_space<vmem>>, vector<1x1x1x4x32xbf16>
    %377 = vector.shape_cast %376 : vector<1x1x1x4x32xbf16> to vector<4x32xbf16>
    %cst_512 = arith.constant dense<0.000000e+00> : vector<64x32xf32>
    %378 = tpu.matmul %375, %377, %cst_512 {dimension_numbers = #tpu.dot_dimension_numbers<[1], [0], [0], [1], [0, 0, 1, 1], [], []>} : vector<64x4xbf16>, vector<4x32xbf16>, vector<64x32xf32> -> vector<64x32xf32>
    %379 = arith.addf %371, %378 : vector<64x32xf32>
    %c0_513 = arith.constant 0 : index
    %c5_514 = arith.constant 5 : index
    %c1_515 = arith.constant 1 : index
    %c0_516 = arith.constant 0 : index
    %c0_517 = arith.constant 0 : index
    %380 = vector.load %arg1[%c0_513, %c5_514, %c1_515, %c0_516, %c0_517] : memref<1x6x9x9x4xf32, #tpu.memory_space<vmem>>, vector<1x1x8x8x4xf32>
    %381 = vector.shape_cast %380 : vector<1x1x8x8x4xf32> to vector<8x8x4xf32>
    %382 = vector.shape_cast %381 : vector<8x8x4xf32> to vector<64x4xf32>
    %383 = arith.truncf %382 : vector<64x4xf32> to vector<64x4xbf16>
    %c2_518 = arith.constant 2 : index
    %c1_519 = arith.constant 1 : index
    %c0_520 = arith.constant 0 : index
    %c0_521 = arith.constant 0 : index
    %c0_522 = arith.constant 0 : index
    %384 = vector.load %arg2[%c2_518, %c1_519, %c0_520, %c0_521, %c0_522] : memref<3x2x2x4x32xbf16, #tpu.memory_space<vmem>>, vector<1x1x1x4x32xbf16>
    %385 = vector.shape_cast %384 : vector<1x1x1x4x32xbf16> to vector<4x32xbf16>
    %cst_523 = arith.constant dense<0.000000e+00> : vector<64x32xf32>
    %386 = tpu.matmul %383, %385, %cst_523 {dimension_numbers = #tpu.dot_dimension_numbers<[1], [0], [0], [1], [0, 0, 1, 1], [], []>} : vector<64x4xbf16>, vector<4x32xbf16>, vector<64x32xf32> -> vector<64x32xf32>
    %387 = arith.addf %379, %386 : vector<64x32xf32>
    %c0_524 = arith.constant 0 : index
    %c5_525 = arith.constant 5 : index
    %c1_526 = arith.constant 1 : index
    %c1_527 = arith.constant 1 : index
    %c0_528 = arith.constant 0 : index
    %388 = vector.load %arg1[%c0_524, %c5_525, %c1_526, %c1_527, %c0_528] : memref<1x6x9x9x4xf32, #tpu.memory_space<vmem>>, vector<1x1x8x8x4xf32>
    %389 = vector.shape_cast %388 : vector<1x1x8x8x4xf32> to vector<8x8x4xf32>
    %390 = vector.shape_cast %389 : vector<8x8x4xf32> to vector<64x4xf32>
    %391 = arith.truncf %390 : vector<64x4xf32> to vector<64x4xbf16>
    %c2_529 = arith.constant 2 : index
    %c1_530 = arith.constant 1 : index
    %c1_531 = arith.constant 1 : index
    %c0_532 = arith.constant 0 : index
    %c0_533 = arith.constant 0 : index
    %392 = vector.load %arg2[%c2_529, %c1_530, %c1_531, %c0_532, %c0_533] : memref<3x2x2x4x32xbf16, #tpu.memory_space<vmem>>, vector<1x1x1x4x32xbf16>
    %393 = vector.shape_cast %392 : vector<1x1x1x4x32xbf16> to vector<4x32xbf16>
    %cst_534 = arith.constant dense<0.000000e+00> : vector<64x32xf32>
    %394 = tpu.matmul %391, %393, %cst_534 {dimension_numbers = #tpu.dot_dimension_numbers<[1], [0], [0], [1], [0, 0, 1, 1], [], []>} : vector<64x4xbf16>, vector<4x32xbf16>, vector<64x32xf32> -> vector<64x32xf32>
    %395 = arith.addf %387, %394 : vector<64x32xf32>
    %396 = vector.broadcast %0 : vector<1x32xf32> to vector<64x32xf32>
    %397 = arith.addf %395, %396 : vector<64x32xf32>
    %c0_535 = arith.constant 0 : index
    %c3_536 = arith.constant 3 : index
    %c0_537 = arith.constant 0 : index
    %c0_538 = arith.constant 0 : index
    %398 = vector.load %arg4[%c0_535, %c3_536, %c0_537, %c0_538] : memref<1x4x64x32xf32, #tpu.memory_space<vmem>>, vector<1x1x64x32xf32>
    %399 = vector.shape_cast %398 : vector<1x1x64x32xf32> to vector<64x32xf32>
    %400 = vector.shape_cast %397 : vector<64x32xf32> to vector<1x1x64x32xf32>
    tpu.vector_store %arg4[%c0_535, %c3_536, %c0_537, %c0_538], %400 {strides = array<i32>} : memref<1x4x64x32xf32, #tpu.memory_space<vmem>>, vector<1x1x64x32xf32>,
    return
  }
  func.func @transform_0(%arg0: i32) -> (i32, i32, i32, i32, i32) {
    %c0_i32 = arith.constant 0 : i32
    %c0_i32_0 = arith.constant 0 : i32
    %c0_i32_1 = arith.constant 0 : i32
    %c0_i32_2 = arith.constant 0 : i32
    %c0_i32_3 = arith.constant 0 : i32
    return %arg0, %c0_i32, %c0_i32_0, %c0_i32_1, %c0_i32_2 : i32, i32, i32, i32, i32
  }
  func.func @transform_1(%arg0: i32) -> (i32, i32, i32, i32, i32) {
    %c0_i32 = arith.constant 0 : i32
    %c0_i32_0 = arith.constant 0 : i32
    %c0_i32_1 = arith.constant 0 : i32
    %c0_i32_2 = arith.constant 0 : i32
    %c0_i32_3 = arith.constant 0 : i32
    %c0_i32_4 = arith.constant 0 : i32
    return %c0_i32, %c0_i32_0, %c0_i32_1, %c0_i32_2, %c0_i32_3 : i32, i32, i32, i32, i32
  }
  func.func @transform_2(%arg0: i32) -> (i32, i32) {
    %c0_i32 = arith.constant 0 : i32
    %c0_i32_0 = arith.constant 0 : i32
    %c0_i32_1 = arith.constant 0 : i32
    return %c0_i32, %c0_i32_0 : i32, i32
  }
  func.func @transform_3(%arg0: i32) -> (i32, i32, i32, i32) {
    %c0_i32 = arith.constant 0 : i32
    %c0_i32_0 = arith.constant 0 : i32
    %c0_i32_1 = arith.constant 0 : i32
    %c0_i32_2 = arith.constant 0 : i32
    return %arg0, %c0_i32, %c0_i32_0, %c0_i32_1 : i32, i32, i32, i32
  }
}

</mosaic_0001>

<llo_original>
// kernel: tile.8
$region0: #{tile.8}
  #allocation0 [shape = 's32[1]{0}', space=sflag, size = 0x4, scoped, tag = 'scoped memory for tile.8']
  %s0 = inlined_call_operand.vmem [shape: f32[8], index: 0, kind: input, shape index: {}]
  %s1 = inlined_call_operand.vmem [shape: f32[4,8], index: 1, kind: output, shape index: {}]
  // Predicated region
  $region2: #{tile.8} parent=0 // pred_check
    _
  $region3: #{tile.8} parent=0 // pred_check_branch
    %3 = sbr.rel (0) target = $region5
  $region4: #{tile.8} parent=0 // pred_region
    _
  $region5: #{tile.8} parent=0 // pred_fallthru
    _
  %v4 = vld [vmem:[%s0] ss:$0 sm:$0xff]
  %5 = vst [vmem:[%s1] sm:$0xf] %v4

// kernel: tile.9
$region0: #{tile.9}
  %s0 = inlined_call_operand.vmem [shape: f32[4,8], index: 0, kind: input, shape index: {}]
  %s1 = inlined_call_operand.vmem [shape: f32[1,32], index: 1, kind: output, shape index: {}]
  $region1: #{tile.9} parent=0
    #allocation0 [shape = 'u8[4096]{0}', space=vmem, size = 0x1000, scoped, tag = 'scoped mem for output reshape']
    #allocation1 [shape = 'u8[4096]{0}', space=vmem, size = 0x1000, scoped, tag = 'scoped mem for input reshape']
    %s3 = sshll.u32 1, 4
    %s4 = ssub.s32 %s3, 1
    %v5 = vld [vmem:[%s0] sm:%s4]
    %6 = vst [vmem:[#allocation1] sm:%s4] %v5
    %v7 = vld [vmem:[#allocation1] sm:$0x1]
    %vm8 = vcmask 64512
    %9 = vst.msk [vmem:[#allocation0] sm:$0x1] %vm8, %v7
    %s10 = scalar_lea.vmem [#allocation1], 3
    %v11 = vld [vmem:[%s10] sm:$0x1]
    %12 = vrot.lane.b32.xlu0 %v11, 24
    %v13 = vpop.permute.xlu0 %12
    %vm14 = vcmask 261312
    %15 = vst.msk [vmem:[#allocation0] sm:$0x1] %vm14, %v13
    %s16 = scalar_lea.vmem [#allocation1], 2
    %v17 = vld [vmem:[%s16] sm:$0x1]
    %18 = vrot.lane.b32.xlu0 %v17, 16
    %v19 = vpop.permute.xlu0 %18
    %vm20 = vcmask 195712
    %21 = vst.msk [vmem:[#allocation0] sm:$0x1] %vm20, %v19
    %s22 = scalar_lea.vmem [#allocation1], 1
    %v23 = vld [vmem:[%s22] sm:$0x1]
    %24 = vrot.lane.b32.xlu0 %v23, 8
    %v25 = vpop.permute.xlu0 %24
    %vm26 = vcmask 130112
    %27 = vst.msk [vmem:[#allocation0] sm:$0x1] %vm26, %v25
    %s29 = sshll.u32 1, 1
    %s30 = ssub.s32 %s29, 1
    %v32 = vld [vmem:[#allocation0] sm:%s30]
    %s33 = sshll.u32 1, 1
    %s34 = ssub.s32 %s33, 1
    %35 = vst [vmem:[%s1] sm:%s34] %v32

// kernel: conv_transpose3d_up221.1
$region0: #{conv_transpose3d_up221.1}
  #allocation0 [shape = 'u32[]', space=smem, size = 0x4, offset = 0x4, fixed_abs, tag = 'smem constant byte address 0x4 - core index']
  #allocation1 [shape = 'u32[144,128]{1,0:T(1,128)}', space=vmem, size = 0x12000, scoped, tag = 'internal scratch']
  %s0 = inlined_call_operand.vmem [shape: f32[2,6,9,9,4], index: 0, kind: input, shape index: {}]
  %s1 = inlined_call_operand.vmem [shape: bf16[3,2,2,4,32], index: 1, kind: input, shape index: {}]
  %s2 = inlined_call_operand.vmem [shape: f32[1,32], index: 2, kind: input, shape index: {}]
  %s3 = inlined_call_operand.vmem [shape: f32[2,4,64,32], index: 3, kind: output, shape index: {}]
  %s4 = sld [smem:[#allocation0]]
  $region45: #{conv_transpose3d_up221.1} parent=0
    _
  %s6 = ssub.s32 1, %s4
  %s7 = scalar_select 0, %s6, %s4
  loop: start=0, step=1, limit=4
  $region2: #{conv_transpose3d_up221.1} parent=0 // loop_pre_header
    _
  $region3: #{conv_transpose3d_up221.1} parent=0 // loop_header
    %s9 = sphi 0, %s13
    %p10 = scmp.ge.s32.totalorder %s9, 4
    %s19 = sphi 0, %s21
    %s22 = sphi 0, %s19
    %s23 = sphi 0, %s22
    %s39 = sphi 0, %s23
    %s43 = sphi 0, %s43
    %s45 = sphi 0, %s43
    %s46 = sphi 0, %s45
    %s60 = sphi 0, %s46
    %s64 = sphi 0, %s64
    %s66 = sphi 0, %s64
    %s67 = sphi 0, %s66
    %s81 = sphi 0, %s67
    %s87 = sphi 0, %s89
    %s90 = sphi 0, %s87
    %s91 = sphi 0, %s90
    %s107 = sphi 0, %s91
  $region4: #{conv_transpose3d_up221.1} parent=0 // loop_header_branch
    %12 = sbr.rel (%p10) target = $region8
  $region5: #{conv_transpose3d_up221.1} parent=0 // loop_body
    %s14 = ssub.s32 %s9, 1
    %s15 = ssub.s32 %s9, 2
    %s16 = sadd.s32 %s9, 1
    %s17 = ssub.s32 %s9, %s16
    %p18 = scmp.eq.s32.totalorder %s17, 0
    %s20 = sadd.s32 %s19, 1
    %s21 = scalar_select %p18, %s19, %s20
    %p24 = pneg %p18
    %p25 = scmp.eq.s32.totalorder %s9, 1
    %p26 = por %p24, %p25
    %p27 = scmp.ne.s32.totalorder %s19, %s22
    %p28 = scmp.eq.s32.totalorder %s9, 0
    %p29 = por %p27, %p28
    %p30 = scmp.ne.s32.totalorder %s19, %s22
    %p31 = scmp.eq.s32.totalorder %s14, 1
    %p32 = por %p30, %p31
    %p33 = scmp.ne.s32.totalorder %s22, %s23
    %p34 = scmp.eq.s32.totalorder %s14, 0
    %p35 = por %p33, %p34
    %p36 = scmp.ne.s32.totalorder %s22, %s23
    %p37 = scmp.eq.s32.totalorder %s15, 1
    %p38 = por %p36, %p37
    %p40 = scmp.ne.s32.totalorder %s23, %s39
    %p41 = scmp.eq.s32.totalorder %s15, 0
    %p42 = por %p40, %p41
    %s44 = sadd.s32 %s43, 1
    %p47 = scmp.eq.s32.totalorder %s9, 1
    %p48 = scmp.ne.s32.totalorder %s43, %s45
    %p49 = scmp.eq.s32.totalorder %s9, 0
    %p50 = por %p48, %p49
    %p51 = scmp.ne.s32.totalorder %s43, %s45
    %p52 = scmp.eq.s32.totalorder %s14, 1
    %p53 = por %p51, %p52
    %p54 = scmp.ne.s32.totalorder %s45, %s46
    %p55 = scmp.eq.s32.totalorder %s14, 0
    %p56 = por %p54, %p55
    %p57 = scmp.ne.s32.totalorder %s45, %s46
    %p58 = scmp.eq.s32.totalorder %s15, 1
    %p59 = por %p57, %p58
    %p61 = scmp.ne.s32.totalorder %s46, %s60
    %p62 = scmp.eq.s32.totalorder %s15, 0
    %p63 = por %p61, %p62
    %s65 = sadd.s32 %s64, 1
    %p68 = scmp.eq.s32.totalorder %s9, 1
    %p69 = scmp.ne.s32.totalorder %s64, %s66
    %p70 = scmp.eq.s32.totalorder %s9, 0
    %p71 = por %p69, %p70
    %p72 = scmp.ne.s32.totalorder %s64, %s66
    %p73 = scmp.eq.s32.totalorder %s14, 1
    %p74 = por %p72, %p73
    %p75 = scmp.ne.s32.totalorder %s66, %s67
    %p76 = scmp.eq.s32.totalorder %s14, 0
    %p77 = por %p75, %p76
    %p78 = scmp.ne.s32.totalorder %s66, %s67
    %p79 = scmp.eq.s32.totalorder %s15, 1
    %p80 = por %p78, %p79
    %p82 = scmp.ne.s32.totalorder %s67, %s81
    %p83 = scmp.eq.s32.totalorder %s15, 0
    %p84 = por %p82, %p83
    %s85 = ssub.s32 %s9, %s16
    %p86 = scmp.eq.s32.totalorder %s85, 0
    %s88 = sadd.s32 %s87, 1
    %s89 = scalar_select %p86, %s87, %s88
    %p92 = pneg %p86
    %p93 = scmp.eq.s32.totalorder %s9, 1
    %p94 = por %p92, %p93
    %p95 = scmp.ne.s32.totalorder %s87, %s90
    %p96 = scmp.eq.s32.totalorder %s9, 0
    %p97 = por %p95, %p96
    %p98 = scmp.ne.s32.totalorder %s87, %s90
    %p99 = scmp.eq.s32.totalorder %s14, 1
    %p100 = por %p98, %p99
    %p101 = scmp.ne.s32.totalorder %s90, %s91
    %p102 = scmp.eq.s32.totalorder %s14, 0
    %p103 = por %p101, %p102
    %p104 = scmp.ne.s32.totalorder %s90, %s91
    %p105 = scmp.eq.s32.totalorder %s15, 1
    %p106 = por %p104, %p105
    %p108 = scmp.ne.s32.totalorder %s91, %s107
    %p109 = scmp.eq.s32.totalorder %s15, 0
    %p110 = por %p108, %p109
    %p111 = scmp.le.s32.totalorder 1, %s9
    %p112 = scmp.lt.s32.totalorder %s9, 3
    %p113 = pnand %p111, %p112
    %p114 = pneg %p113
    // Predicated region
    $region9: #{conv_transpose3d_up221.1} parent=5 // pred_check
      _
    $region10: #{conv_transpose3d_up221.1} parent=5 // pred_check_branch
      %116 = sbr.rel (%p113) target = $region12
    $region11: #{conv_transpose3d_up221.1} parent=5 // pred_region
      %s117 = ssub.s32 %s9, 1
      // Predicated region
      $region13: #{conv_transpose3d_up221.1} parent=11 // pred_check
        %p118 = pneg %p56
      $region14: #{conv_transpose3d_up221.1} parent=11 // pred_check_branch
        %120 = sbr.rel (%p118) target = $region16
      $region15: #{conv_transpose3d_up221.1} parent=11 // pred_region
        _
      $region16: #{conv_transpose3d_up221.1} parent=11 // pred_fallthru
        _
      // Predicated region
      $region17: #{conv_transpose3d_up221.1} parent=11 // pred_check
        %p121 = pneg %p77
      $region18: #{conv_transpose3d_up221.1} parent=11 // pred_check_branch
        %123 = sbr.rel (%p121) target = $region20
      $region19: #{conv_transpose3d_up221.1} parent=11 // pred_region
        _
      $region20: #{conv_transpose3d_up221.1} parent=11 // pred_fallthru
        _
    $region12: #{conv_transpose3d_up221.1} parent=5 // pred_fallthru
      _
    %p124 = scmp.lt.s32.totalorder %s9, 2
    // Predicated region
    $region21: #{conv_transpose3d_up221.1} parent=5 // pred_check
      %p125 = pneg %p124
    $region22: #{conv_transpose3d_up221.1} parent=5 // pred_check_branch
      %127 = sbr.rel (%p125) target = $region24
    $region23: #{conv_transpose3d_up221.1} parent=5 // pred_region
      // Predicated region
      $region25: #{conv_transpose3d_up221.1} parent=23 // pred_check
        %p128 = pneg %p29
      $region26: #{conv_transpose3d_up221.1} parent=23 // pred_check_branch
        %130 = sbr.rel (%p128) target = $region28
      $region27: #{conv_transpose3d_up221.1} parent=23 // pred_region
        %p131 = scmp.lt.s32.totalorder %s9, 1
        %s132 = scalar_select %p131, %s9, 1
        %s133 = smul.addr %s132, 108
        %s134 = smul.addr %s133, 8
        %s135 = scalar_lea.vmem %s0, %s134
      $region28: #{conv_transpose3d_up221.1} parent=23 // pred_fallthru
        _
    $region24: #{conv_transpose3d_up221.1} parent=5 // pred_fallthru
      _
    %p136 = scmp.le.s32.totalorder 1, %s9
    %p137 = scmp.lt.s32.totalorder %s9, 3
    %p138 = pnand %p136, %p137
    %p139 = pneg %p138
    // Predicated region
    $region29: #{conv_transpose3d_up221.1} parent=5 // pred_check
      _
    $region30: #{conv_transpose3d_up221.1} parent=5 // pred_check_branch
      %141 = sbr.rel (%p138) target = $region32
    $region31: #{conv_transpose3d_up221.1} parent=5 // pred_region
      %s142 = ssub.s32 %s9, 1
      %p143 = scmp.lt.s32.totalorder %s14, 1
      %s144 = scalar_select %p143, %s14, 1
      %s145 = smul.addr %s144, 108
      %s146 = smul.addr %s145, 8
      %s147 = scalar_lea.vmem %s0, %s146
      %p148 = pneg %p35
      %p149 = pneg %p32
      %p150 = pneg %p56
      %p151 = pneg %p53
      %p152 = pneg %p77
      %p153 = pneg %p74
      %p154 = pneg %p103
      %p155 = pneg %p100
      %p156 = scmp.lt.s32.totalorder %s14, 1
      %s157 = scalar_select %p156, %s14, 1
      %s158 = smul.addr %s157, 32
      %s159 = smul.addr %s158, 8
      %s160 = scalar_lea.vmem %s3, %s159
      %p161 = scmp.lt.s32.totalorder %s14, 1
      %s162 = scalar_select %p161, %s14, 1
      %s163 = smul.addr %s162, 108
      %s164 = smul.addr %s163, 8
      %s165 = scalar_lea.vmem %s0, %s164
      %p166 = scmp.lt.s32.totalorder %s14, 1
      %s167 = scalar_select %p166, %s14, 1
      %s168 = smul.addr %s167, 32
      %s169 = smul.addr %s168, 8
      %s170 = scalar_lea.vmem %s3, %s169
      %v172 = vld [vmem:[%s2] sm:$0x1]
      %v173 = vld [vmem:[%s165] sm:$0xff]
      %v174 = vld [vmem:[%s165 + $0x10] sm:$0xff]
      %v175 = vld [vmem:[%s165 + $0x20] sm:$0xff]
      %v176 = vld [vmem:[%s165 + $0x30] sm:$0xff]
      %v177 = vld [vmem:[%s165 + $0x40] sm:$0xff]
      %v178 = vld [vmem:[%s165 + $0x50] sm:$0xff]
      %v179 = vld [vmem:[%s165 + $0x60] sm:$0xff]
      %v180 = vld [vmem:[%s165 + $0x70] sm:$0xff]
      %v181 = vpack.c.bf16 %v174, %v173
      %v182 = vpack.c.bf16 %v176, %v175
      %v183 = vpack.c.bf16 %v178, %v177
      %v184 = vpack.c.bf16 %v180, %v179
      %v185 = vld [vmem:[%s1] sm:$0x3]
      %v186 = vld [vmem:[%s165 + $0x1] sm:$0xff]
      %v187 = vld [vmem:[%s165 + $0x11] sm:$0xff]
      %v188 = vld [vmem:[%s165 + $0x21] sm:$0xff]
      %v189 = vld [vmem:[%s165 + $0x31] sm:$0xff]
      %v190 = vld [vmem:[%s165 + $0x41] sm:$0xff]
      %v191 = vld [vmem:[%s165 + $0x51] sm:$0xff]
      %v192 = vld [vmem:[%s165 + $0x61] sm:$0xff]
      %v193 = vld [vmem:[%s165 + $0x71] sm:$0xff]
      %v194 = vpack.c.bf16 %v187, %v186
      %v195 = vpack.c.bf16 %v189, %v188
      %v196 = vpack.c.bf16 %v191, %v190
      %v197 = vpack.c.bf16 %v193, %v192
      %s198 = scalar_lea.vmem %s1, 2
      %v199 = vld [vmem:[%s198] sm:$0x3]
      %vm200 = vcmask 31744
      %v202 = vsel %vm200, %v194, 0
      %v205 = vsel %vm200, %v195, 0
      %v208 = vsel %vm200, %v196, 0
      %v211 = vsel %vm200, %v197, 0
      %vm213 = vcmask 1041408
      %v215 = vsel %vm213, %v199, 0
      %217 = vmatprep.subr.bf16.mxu0 0
      %218 = vmatpush1.bf16.msra.mxu0 0
      %219 = vmatprep.subr.bf16.mxu0 0
      %220 = vmatpush1.bf16.msra.mxu0 0
      %221 = vmatprep.subr.bf16.mxu0 0
      %222 = vmatpush1.bf16.msra.mxu0 0
      %223 = vmatprep.subr.bf16.mxu0 0
      %224 = vmatpush1.bf16.msra.mxu0 0
      %225 = vmatprep.subr.bf16.mxu0 0
      %226 = vmatpush1.bf16.msra.mxu0 0
      %227 = vmatprep.subr.bf16.mxu0 0
      %228 = vmatpush1.bf16.msra.mxu0 0
      %229 = vmatprep.subr.bf16.mxu0 0
      %230 = vmatpush1.bf16.msra.mxu0 0
      %231 = vmatprep.subr.bf16.mxu0 0
      %232 = vmatpush1.bf16.msra.mxu0 %v215
      %233 = vmatprep.subr.bf16.mxu0 0
      %234 = vmatpush2.bf16.msra.mxu0 0
      %235 = vmatprep.subr.bf16.mxu0 0
      %236 = vmatpush2.bf16.msra.mxu0 0
      %237 = vmatprep.subr.bf16.mxu0 0
      %238 = vmatpush2.bf16.msra.mxu0 0
      %239 = vmatprep.subr.bf16.mxu0 0
      %240 = vmatpush2.bf16.msra.mxu0 0
      %241 = vmatprep.subr.bf16.mxu0 0
      %242 = vmatpush2.bf16.msra.mxu0 0
      %243 = vmatprep.subr.bf16.mxu0 0
      %244 = vmatpush2.bf16.msra.mxu0 0
      %245 = vmatprep.subr.bf16.mxu0 0
      %246 = vmatpush2.bf16.msra.mxu0 0
      %247 = vmatprep.subr.bf16.mxu0 0
      %248 = vmatpush2.bf16.msra.mxu0 0
      %249 = vmatprep.mubr.bf16.mxu0 0
      %250 = vmatmul.mubr.bf16.gmra.mxu0 %v202
      %v251 = vpop.f32.mrf.mxu0
      %v252 = vadd.f32 0.0, %v251
      %v253 = vpop.f32.mrf.mxu0
      %v254 = vpop.f32.mrf.mxu0
      %v255 = vadd.f32 0.0, %v254
      %v256 = vpop.f32.mrf.mxu0
      %257 = vmatprep.mubr.bf16.mxu0 0
      %258 = vmatmul.mubr.bf16.gmra.mxu0 %v205
      %v259 = vpop.f32.mrf.mxu0
      %v260 = vadd.f32 0.0, %v259
      %v261 = vpop.f32.mrf.mxu0
      %v262 = vpop.f32.mrf.mxu0
      %v263 = vadd.f32 0.0, %v262
      %v264 = vpop.f32.mrf.mxu0
      %265 = vmatprep.mubr.bf16.mxu0 0
      %266 = vmatmul.mubr.bf16.gmra.mxu0 %v208
      %v267 = vpop.f32.mrf.mxu0
      %v268 = vadd.f32 0.0, %v267
      %v269 = vpop.f32.mrf.mxu0
      %v270 = vpop.f32.mrf.mxu0
      %v271 = vadd.f32 0.0, %v270
      %v272 = vpop.f32.mrf.mxu0
      %273 = vmatprep.mubr.bf16.mxu0 0
      %274 = vmatmul.mubr.bf16.gmra.mxu0 %v211
      %v275 = vpop.f32.mrf.mxu0
      %v276 = vadd.f32 0.0, %v275
      %v277 = vpop.f32.mrf.mxu0
      %v278 = vpop.f32.mrf.mxu0
      %v279 = vadd.f32 0.0, %v278
      %v280 = vpop.f32.mrf.mxu0
      %281 = vdwg.mxu0
      %v283 = vsel %vm200, %v181, 0
      %v286 = vsel %vm200, %v182, 0
      %v289 = vsel %vm200, %v183, 0
      %v292 = vsel %vm200, %v184, 0
      %v295 = vsel %vm213, %v185, 0
      %297 = vmatprep.subr.bf16.mxu0 0
      %298 = vmatpush1.bf16.msra.mxu0 0
      %299 = vmatprep.subr.bf16.mxu0 0
      %300 = vmatpush1.bf16.msra.mxu0 0
      %301 = vmatprep.subr.bf16.mxu0 0
      %302 = vmatpush1.bf16.msra.mxu0 0
      %303 = vmatprep.subr.bf16.mxu0 0
      %304 = vmatpush1.bf16.msra.mxu0 0
      %305 = vmatprep.subr.bf16.mxu0 0
      %306 = vmatpush1.bf16.msra.mxu0 0
      %307 = vmatprep.subr.bf16.mxu0 0
      %308 = vmatpush1.bf16.msra.mxu0 0
      %309 = vmatprep.subr.bf16.mxu0 0
      %310 = vmatpush1.bf16.msra.mxu0 0
      %311 = vmatprep.subr.bf16.mxu0 0
      %312 = vmatpush1.bf16.msra.mxu0 %v295
      %313 = vmatprep.subr.bf16.mxu0 0
      %314 = vmatpush2.bf16.msra.mxu0 0
      %315 = vmatprep.subr.bf16.mxu0 0
      %316 = vmatpush2.bf16.msra.mxu0 0
      %317 = vmatprep.subr.bf16.mxu0 0
      %318 = vmatpush2.bf16.msra.mxu0 0
      %319 = vmatprep.subr.bf16.mxu0 0
      %320 = vmatpush2.bf16.msra.mxu0 0
      %321 = vmatprep.subr.bf16.mxu0 0
      %322 = vmatpush2.bf16.msra.mxu0 0
      %323 = vmatprep.subr.bf16.mxu0 0
      %324 = vmatpush2.bf16.msra.mxu0 0
      %325 = vmatprep.subr.bf16.mxu0 0
      %326 = vmatpush2.bf16.msra.mxu0 0
      %327 = vmatprep.subr.bf16.mxu0 0
      %328 = vmatpush2.bf16.msra.mxu0 0
      %329 = vmatprep.mubr.bf16.mxu0 0
      %330 = vmatmul.mubr.bf16.gmra.mxu0 %v283
      %v331 = vpop.f32.mrf.mxu0
      %v332 = vadd.f32 %v252, %v331
      %v333 = vpop.f32.mrf.mxu0
      %v334 = vpop.f32.mrf.mxu0
      %v335 = vadd.f32 %v255, %v334
      %v336 = vpop.f32.mrf.mxu0
      %337 = vmatprep.mubr.bf16.mxu0 0
      %338 = vmatmul.mubr.bf16.gmra.mxu0 %v286
      %v339 = vpop.f32.mrf.mxu0
      %v340 = vadd.f32 %v260, %v339
      %v341 = vpop.f32.mrf.mxu0
      %v342 = vpop.f32.mrf.mxu0
      %v343 = vadd.f32 %v263, %v342
      %v344 = vpop.f32.mrf.mxu0
      %345 = vmatprep.mubr.bf16.mxu0 0
      %346 = vmatmul.mubr.bf16.gmra.mxu0 %v289
      %v347 = vpop.f32.mrf.mxu0
      %v348 = vadd.f32 %v268, %v347
      %v349 = vpop.f32.mrf.mxu0
      %v350 = vpop.f32.mrf.mxu0
      %v351 = vadd.f32 %v271, %v350
      %v352 = vpop.f32.mrf.mxu0
      %353 = vmatprep.mubr.bf16.mxu0 0
      %354 = vmatmul.mubr.bf16.gmra.mxu0 %v292
      %v355 = vpop.f32.mrf.mxu0
      %v356 = vadd.f32 %v276, %v355
      %v357 = vpop.f32.mrf.mxu0
      %v358 = vpop.f32.mrf.mxu0
      %v359 = vadd.f32 %v279, %v358
      %v360 = vpop.f32.mrf.mxu0
      %361 = vdwg.mxu0
      %s362 = scalar_lea.vmem %s165, 16
      %v363 = vld [vmem:[%s362] sm:$0xff]
      %v364 = vld [vmem:[%s362 + $0x10] sm:$0xff]
      %v365 = vld [vmem:[%s362 + $0x20] sm:$0xff]
      %v366 = vld [vmem:[%s362 + $0x30] sm:$0xff]
      %v367 = vld [vmem:[%s362 + $0x40] sm:$0xff]
      %v368 = vld [vmem:[%s362 + $0x50] sm:$0xff]
      %v369 = vld [vmem:[%s362 + $0x60] sm:$0xff]
      %v370 = vld [vmem:[%s362 + $0x70] sm:$0xff]
      %v371 = vpack.c.bf16 %v364, %v363
      %v372 = vpack.c.bf16 %v366, %v365
      %v373 = vpack.c.bf16 %v368, %v367
      %v374 = vpack.c.bf16 %v370, %v369
      %s375 = scalar_lea.vmem %s1, 4
      %v376 = vld [vmem:[%s375] sm:$0x3]
      %v378 = vsel %vm200, %v371, 0
      %v381 = vsel %vm200, %v372, 0
      %v384 = vsel %vm200, %v373, 0
      %v387 = vsel %vm200, %v374, 0
      %v390 = vsel %vm213, %v376, 0
      %392 = vmatprep.subr.bf16.mxu0 0
      %393 = vmatpush1.bf16.msra.mxu0 0
      %394 = vmatprep.subr.bf16.mxu0 0
      %395 = vmatpush1.bf16.msra.mxu0 0
      %396 = vmatprep.subr.bf16.mxu0 0
      %397 = vmatpush1.bf16.msra.mxu0 0
      %398 = vmatprep.subr.bf16.mxu0 0
      %399 = vmatpush1.bf16.msra.mxu0 0
      %400 = vmatprep.subr.bf16.mxu0 0
      %401 = vmatpush1.bf16.msra.mxu0 0
      %402 = vmatprep.subr.bf16.mxu0 0
      %403 = vmatpush1.bf16.msra.mxu0 0
      %404 = vmatprep.subr.bf16.mxu0 0
      %405 = vmatpush1.bf16.msra.mxu0 0
      %406 = vmatprep.subr.bf16.mxu0 0
      %407 = vmatpush1.bf16.msra.mxu0 %v390
      %408 = vmatprep.subr.bf16.mxu0 0
      %409 = vmatpush2.bf16.msra.mxu0 0
      %410 = vmatprep.subr.bf16.mxu0 0
      %411 = vmatpush2.bf16.msra.mxu0 0
      %412 = vmatprep.subr.bf16.mxu0 0
      %413 = vmatpush2.bf16.msra.mxu0 0
      %414 = vmatprep.subr.bf16.mxu0 0
      %415 = vmatpush2.bf16.msra.mxu0 0
      %416 = vmatprep.subr.bf16.mxu0 0
      %417 = vmatpush2.bf16.msra.mxu0 0
      %418 = vmatprep.subr.bf16.mxu0 0
      %419 = vmatpush2.bf16.msra.mxu0 0
      %420 = vmatprep.subr.bf16.mxu0 0
      %421 = vmatpush2.bf16.msra.mxu0 0
      %422 = vmatprep.subr.bf16.mxu0 0
      %423 = vmatpush2.bf16.msra.mxu0 0
      %424 = vmatprep.mubr.bf16.mxu0 0
      %425 = vmatmul.mubr.bf16.gmra.mxu0 %v378
      %v426 = vpop.f32.mrf.mxu0
      %v427 = vadd.f32 0.0, %v426
      %v428 = vpop.f32.mrf.mxu0
      %v429 = vpop.f32.mrf.mxu0
      %v430 = vadd.f32 0.0, %v429
      %v431 = vpop.f32.mrf.mxu0
      %432 = vmatprep.mubr.bf16.mxu0 0
      %433 = vmatmul.mubr.bf16.gmra.mxu0 %v381
      %v434 = vpop.f32.mrf.mxu0
      %v435 = vadd.f32 0.0, %v434
      %v436 = vpop.f32.mrf.mxu0
      %v437 = vpop.f32.mrf.mxu0
      %v438 = vadd.f32 0.0, %v437
      %v439 = vpop.f32.mrf.mxu0
      %440 = vmatprep.mubr.bf16.mxu0 0
      %441 = vmatmul.mubr.bf16.gmra.mxu0 %v384
      %v442 = vpop.f32.mrf.mxu0
      %v443 = vadd.f32 0.0, %v442
      %v444 = vpop.f32.mrf.mxu0
      %v445 = vpop.f32.mrf.mxu0
      %v446 = vadd.f32 0.0, %v445
      %v447 = vpop.f32.mrf.mxu0
      %448 = vmatprep.mubr.bf16.mxu0 0
      %449 = vmatmul.mubr.bf16.gmra.mxu0 %v387
      %v450 = vpop.f32.mrf.mxu0
      %v451 = vadd.f32 0.0, %v450
      %v452 = vpop.f32.mrf.mxu0
      %v453 = vpop.f32.mrf.mxu0
      %v454 = vadd.f32 0.0, %v453
      %v455 = vpop.f32.mrf.mxu0
      %456 = vdwg.mxu0
      %v457 = vadd.f32 %v332, %v427
      %v458 = vadd.f32 %v335, %v430
      %v459 = vadd.f32 %v340, %v435
      %v460 = vadd.f32 %v343, %v438
      %v461 = vadd.f32 %v348, %v443
      %v462 = vadd.f32 %v351, %v446
      %v463 = vadd.f32 %v356, %v451
      %v464 = vadd.f32 %v359, %v454
      %v465 = vld [vmem:[%s362 + $0x1] sm:$0xff]
      %v466 = vld [vmem:[%s362 + $0x11] sm:$0xff]
      %v467 = vld [vmem:[%s362 + $0x21] sm:$0xff]
      %v468 = vld [vmem:[%s362 + $0x31] sm:$0xff]
      %v469 = vld [vmem:[%s362 + $0x41] sm:$0xff]
      %v470 = vld [vmem:[%s362 + $0x51] sm:$0xff]
      %v471 = vld [vmem:[%s362 + $0x61] sm:$0xff]
      %v472 = vld [vmem:[%s362 + $0x71] sm:$0xff]
      %v473 = vpack.c.bf16 %v466, %v465
      %v474 = vpack.c.bf16 %v468, %v467
      %v475 = vpack.c.bf16 %v470, %v469
      %v476 = vpack.c.bf16 %v472, %v471
      %s477 = scalar_lea.vmem %s1, 6
      %v478 = vld [vmem:[%s477] sm:$0x3]
      %v480 = vsel %vm200, %v473, 0
      %v483 = vsel %vm200, %v474, 0
      %v486 = vsel %vm200, %v475, 0
      %v489 = vsel %vm200, %v476, 0
      %v492 = vsel %vm213, %v478, 0
      %494 = vmatprep.subr.bf16.mxu0 0
      %495 = vmatpush1.bf16.msra.mxu0 0
      %496 = vmatprep.subr.bf16.mxu0 0
      %497 = vmatpush1.bf16.msra.mxu0 0
      %498 = vmatprep.subr.bf16.mxu0 0
      %499 = vmatpush1.bf16.msra.mxu0 0
      %500 = vmatprep.subr.bf16.mxu0 0
      %501 = vmatpush1.bf16.msra.mxu0 0
      %502 = vmatprep.subr.bf16.mxu0 0
      %503 = vmatpush1.bf16.msra.mxu0 0
      %504 = vmatprep.subr.bf16.mxu0 0
      %505 = vmatpush1.bf16.msra.mxu0 0
      %506 = vmatprep.subr.bf16.mxu0 0
      %507 = vmatpush1.bf16.msra.mxu0 0
      %508 = vmatprep.subr.bf16.mxu0 0
      %509 = vmatpush1.bf16.msra.mxu0 %v492
      %510 = vmatprep.subr.bf16.mxu0 0
      %511 = vmatpush2.bf16.msra.mxu0 0
      %512 = vmatprep.subr.bf16.mxu0 0
      %513 = vmatpush2.bf16.msra.mxu0 0
      %514 = vmatprep.subr.bf16.mxu0 0
      %515 = vmatpush2.bf16.msra.mxu0 0
      %516 = vmatprep.subr.bf16.mxu0 0
      %517 = vmatpush2.bf16.msra.mxu0 0
      %518 = vmatprep.subr.bf16.mxu0 0
      %519 = vmatpush2.bf16.msra.mxu0 0
      %520 = vmatprep.subr.bf16.mxu0 0
      %521 = vmatpush2.bf16.msra.mxu0 0
      %522 = vmatprep.subr.bf16.mxu0 0
      %523 = vmatpush2.bf16.msra.mxu0 0
      %524 = vmatprep.subr.bf16.mxu0 0
      %525 = vmatpush2.bf16.msra.mxu0 0
      %526 = vmatprep.mubr.bf16.mxu0 0
      %527 = vmatmul.mubr.bf16.gmra.mxu0 %v480
      %v528 = vpop.f32.mrf.mxu0
      %v529 = vadd.f32 0.0, %v528
      %v530 = vpop.f32.mrf.mxu0
      %v531 = vpop.f32.mrf.mxu0
      %v532 = vadd.f32 0.0, %v531
      %v533 = vpop.f32.mrf.mxu0
      %534 = vmatprep.mubr.bf16.mxu0 0
      %535 = vmatmul.mubr.bf16.gmra.mxu0 %v483
      %v536 = vpop.f32.mrf.mxu0
      %v537 = vadd.f32 0.0, %v536
      %v538 = vpop.f32.mrf.mxu0
      %v539 = vpop.f32.mrf.mxu0
      %v540 = vadd.f32 0.0, %v539
      %v541 = vpop.f32.mrf.mxu0
      %542 = vmatprep.mubr.bf16.mxu0 0
      %543 = vmatmul.mubr.bf16.gmra.mxu0 %v486
      %v544 = vpop.f32.mrf.mxu0
      %v545 = vadd.f32 0.0, %v544
      %v546 = vpop.f32.mrf.mxu0
      %v547 = vpop.f32.mrf.mxu0
      %v548 = vadd.f32 0.0, %v547
      %v549 = vpop.f32.mrf.mxu0
      %550 = vmatprep.mubr.bf16.mxu0 0
      %551 = vmatmul.mubr.bf16.gmra.mxu0 %v489
      %v552 = vpop.f32.mrf.mxu0
      %v553 = vadd.f32 0.0, %v552
      %v554 = vpop.f32.mrf.mxu0
      %v555 = vpop.f32.mrf.mxu0
      %v556 = vadd.f32 0.0, %v555
      %v557 = vpop.f32.mrf.mxu0
      %558 = vdwg.mxu0
      %v559 = vadd.f32 %v457, %v529
      %v560 = vadd.f32 %v458, %v532
      %v561 = vadd.f32 %v459, %v537
      %v562 = vadd.f32 %v460, %v540
      %v563 = vadd.f32 %v461, %v545
      %v564 = vadd.f32 %v462, %v548
      %v565 = vadd.f32 %v463, %v553
      %v566 = vadd.f32 %v464, %v556
      %s567 = scalar_lea.vmem %s165, 144
      %v568 = vld [vmem:[%s567] sm:$0xff]
      %v569 = vld [vmem:[%s567 + $0x10] sm:$0xff]
      %v570 = vld [vmem:[%s567 + $0x20] sm:$0xff]
      %v571 = vld [vmem:[%s567 + $0x30] sm:$0xff]
      %v572 = vld [vmem:[%s567 + $0x40] sm:$0xff]
      %v573 = vld [vmem:[%s567 + $0x50] sm:$0xff]
      %v574 = vld [vmem:[%s567 + $0x60] sm:$0xff]
      %v575 = vld [vmem:[%s567 + $0x70] sm:$0xff]
      %v576 = vpack.c.bf16 %v569, %v568
      %v577 = vpack.c.bf16 %v571, %v570
      %v578 = vpack.c.bf16 %v573, %v572
      %v579 = vpack.c.bf16 %v575, %v574
      %s580 = scalar_lea.vmem %s1, 8
      %v581 = vld [vmem:[%s580] sm:$0x3]
      %v583 = vsel %vm200, %v576, 0
      %v586 = vsel %vm200, %v577, 0
      %v589 = vsel %vm200, %v578, 0
      %v592 = vsel %vm200, %v579, 0
      %v595 = vsel %vm213, %v581, 0
      %597 = vmatprep.subr.bf16.mxu0 0
      %598 = vmatpush1.bf16.msra.mxu0 0
      %599 = vmatprep.subr.bf16.mxu0 0
      %600 = vmatpush1.bf16.msra.mxu0 0
      %601 = vmatprep.subr.bf16.mxu0 0
      %602 = vmatpush1.bf16.msra.mxu0 0
      %603 = vmatprep.subr.bf16.mxu0 0
      %604 = vmatpush1.bf16.msra.mxu0 0
      %605 = vmatprep.subr.bf16.mxu0 0
      %606 = vmatpush1.bf16.msra.mxu0 0
      %607 = vmatprep.subr.bf16.mxu0 0
      %608 = vmatpush1.bf16.msra.mxu0 0
      %609 = vmatprep.subr.bf16.mxu0 0
      %610 = vmatpush1.bf16.msra.mxu0 0
      %611 = vmatprep.subr.bf16.mxu0 0
      %612 = vmatpush1.bf16.msra.mxu0 %v595
      %613 = vmatprep.subr.bf16.mxu0 0
      %614 = vmatpush2.bf16.msra.mxu0 0
      %615 = vmatprep.subr.bf16.mxu0 0
      %616 = vmatpush2.bf16.msra.mxu0 0
      %617 = vmatprep.subr.bf16.mxu0 0
      %618 = vmatpush2.bf16.msra.mxu0 0
      %619 = vmatprep.subr.bf16.mxu0 0
      %620 = vmatpush2.bf16.msra.mxu0 0
      %621 = vmatprep.subr.bf16.mxu0 0
      %622 = vmatpush2.bf16.msra.mxu0 0
      %623 = vmatprep.subr.bf16.mxu0 0
      %624 = vmatpush2.bf16.msra.mxu0 0
      %625 = vmatprep.subr.bf16.mxu0 0
      %626 = vmatpush2.bf16.msra.mxu0 0
      %627 = vmatprep.subr.bf16.mxu0 0
      %628 = vmatpush2.bf16.msra.mxu0 0
      %629 = vmatprep.mubr.bf16.mxu0 0
      %630 = vmatmul.mubr.bf16.gmra.mxu0 %v583
      %v631 = vpop.f32.mrf.mxu0
      %v632 = vadd.f32 0.0, %v631
      %v633 = vpop.f32.mrf.mxu0
      %v634 = vpop.f32.mrf.mxu0
      %v635 = vadd.f32 0.0, %v634
      %v636 = vpop.f32.mrf.mxu0
      %637 = vmatprep.mubr.bf16.mxu0 0
      %638 = vmatmul.mubr.bf16.gmra.mxu0 %v586
      %v639 = vpop.f32.mrf.mxu0
      %v640 = vadd.f32 0.0, %v639
      %v641 = vpop.f32.mrf.mxu0
      %v642 = vpop.f32.mrf.mxu0
      %v643 = vadd.f32 0.0, %v642
      %v644 = vpop.f32.mrf.mxu0
      %645 = vmatprep.mubr.bf16.mxu0 0
      %646 = vmatmul.mubr.bf16.gmra.mxu0 %v589
      %v647 = vpop.f32.mrf.mxu0
      %v648 = vadd.f32 0.0, %v647
      %v649 = vpop.f32.mrf.mxu0
      %v650 = vpop.f32.mrf.mxu0
      %v651 = vadd.f32 0.0, %v650
      %v652 = vpop.f32.mrf.mxu0
      %653 = vmatprep.mubr.bf16.mxu0 0
      %654 = vmatmul.mubr.bf16.gmra.mxu0 %v592
      %v655 = vpop.f32.mrf.mxu0
      %v656 = vadd.f32 0.0, %v655
      %v657 = vpop.f32.mrf.mxu0
      %v658 = vpop.f32.mrf.mxu0
      %v659 = vadd.f32 0.0, %v658
      %v660 = vpop.f32.mrf.mxu0
      %661 = vdwg.mxu0
      %v662 = vadd.f32 %v559, %v632
      %v663 = vadd.f32 %v560, %v635
      %v664 = vadd.f32 %v561, %v640
      %v665 = vadd.f32 %v562, %v643
      %v666 = vadd.f32 %v563, %v648
      %v667 = vadd.f32 %v564, %v651
      %v668 = vadd.f32 %v565, %v656
      %v669 = vadd.f32 %v566, %v659
      %v670 = vld [vmem:[%s567 + $0x1] sm:$0xff]
      %v671 = vld [vmem:[%s567 + $0x11] sm:$0xff]
      %v672 = vld [vmem:[%s567 + $0x21] sm:$0xff]
      %v673 = vld [vmem:[%s567 + $0x31] sm:$0xff]
      %v674 = vld [vmem:[%s567 + $0x41] sm:$0xff]
      %v675 = vld [vmem:[%s567 + $0x51] sm:$0xff]
      %v676 = vld [vmem:[%s567 + $0x61] sm:$0xff]
      %v677 = vld [vmem:[%s567 + $0x71] sm:$0xff]
      %v678 = vpack.c.bf16 %v671, %v670
      %v679 = vpack.c.bf16 %v673, %v672
      %v680 = vpack.c.bf16 %v675, %v674
      %v681 = vpack.c.bf16 %v677, %v676
      %s682 = scalar_lea.vmem %s1, 10
      %v683 = vld [vmem:[%s682] sm:$0x3]
      %v685 = vsel %vm200, %v678, 0
      %v688 = vsel %vm200, %v679, 0
      %v691 = vsel %vm200, %v680, 0
      %v694 = vsel %vm200, %v681, 0
      %v697 = vsel %vm213, %v683, 0
      %699 = vmatprep.subr.bf16.mxu0 0
      %700 = vmatpush1.bf16.msra.mxu0 0
      %701 = vmatprep.subr.bf16.mxu0 0
      %702 = vmatpush1.bf16.msra.mxu0 0
      %703 = vmatprep.subr.bf16.mxu0 0
      %704 = vmatpush1.bf16.msra.mxu0 0
      %705 = vmatprep.subr.bf16.mxu0 0
      %706 = vmatpush1.bf16.msra.mxu0 0
      %707 = vmatprep.subr.bf16.mxu0 0
      %708 = vmatpush1.bf16.msra.mxu0 0
      %709 = vmatprep.subr.bf16.mxu0 0
      %710 = vmatpush1.bf16.msra.mxu0 0
      %711 = vmatprep.subr.bf16.mxu0 0
      %712 = vmatpush1.bf16.msra.mxu0 0
      %713 = vmatprep.subr.bf16.mxu0 0
      %714 = vmatpush1.bf16.msra.mxu0 %v697
      %715 = vmatprep.subr.bf16.mxu0 0
      %716 = vmatpush2.bf16.msra.mxu0 0
      %717 = vmatprep.subr.bf16.mxu0 0
      %718 = vmatpush2.bf16.msra.mxu0 0
      %719 = vmatprep.subr.bf16.mxu0 0
      %720 = vmatpush2.bf16.msra.mxu0 0
      %721 = vmatprep.subr.bf16.mxu0 0
      %722 = vmatpush2.bf16.msra.mxu0 0
      %723 = vmatprep.subr.bf16.mxu0 0
      %724 = vmatpush2.bf16.msra.mxu0 0
      %725 = vmatprep.subr.bf16.mxu0 0
      %726 = vmatpush2.bf16.msra.mxu0 0
      %727 = vmatprep.subr.bf16.mxu0 0
      %728 = vmatpush2.bf16.msra.mxu0 0
      %729 = vmatprep.subr.bf16.mxu0 0
      %730 = vmatpush2.bf16.msra.mxu0 0
      %731 = vmatprep.mubr.bf16.mxu0 0
      %732 = vmatmul.mubr.bf16.gmra.mxu0 %v685
      %v733 = vpop.f32.mrf.mxu0
      %v734 = vadd.f32 0.0, %v733
      %v735 = vpop.f32.mrf.mxu0
      %v736 = vpop.f32.mrf.mxu0
      %v737 = vadd.f32 0.0, %v736
      %v738 = vpop.f32.mrf.mxu0
      %739 = vmatprep.mubr.bf16.mxu0 0
      %740 = vmatmul.mubr.bf16.gmra.mxu0 %v688
      %v741 = vpop.f32.mrf.mxu0
      %v742 = vadd.f32 0.0, %v741
      %v743 = vpop.f32.mrf.mxu0
      %v744 = vpop.f32.mrf.mxu0
      %v745 = vadd.f32 0.0, %v744
      %v746 = vpop.f32.mrf.mxu0
      %747 = vmatprep.mubr.bf16.mxu0 0
      %748 = vmatmul.mubr.bf16.gmra.mxu0 %v691
      %v749 = vpop.f32.mrf.mxu0
      %v750 = vadd.f32 0.0, %v749
      %v751 = vpop.f32.mrf.mxu0
      %v752 = vpop.f32.mrf.mxu0
      %v753 = vadd.f32 0.0, %v752
      %v754 = vpop.f32.mrf.mxu0
      %755 = vmatprep.mubr.bf16.mxu0 0
      %756 = vmatmul.mubr.bf16.gmra.mxu0 %v694
      %v757 = vpop.f32.mrf.mxu0
      %v758 = vadd.f32 0.0, %v757
      %v759 = vpop.f32.mrf.mxu0
      %v760 = vpop.f32.mrf.mxu0
      %v761 = vadd.f32 0.0, %v760
      %v762 = vpop.f32.mrf.mxu0
      %763 = vdwg.mxu0
      %v764 = vadd.f32 %v662, %v734
      %v765 = vadd.f32 %v663, %v737
      %v766 = vadd.f32 %v664, %v742
      %v767 = vadd.f32 %v665, %v745
      %v768 = vadd.f32 %v666, %v750
      %v769 = vadd.f32 %v667, %v753
      %v770 = vadd.f32 %v668, %v758
      %v771 = vadd.f32 %v669, %v761
      %s772 = scalar_lea.vmem %s165, 160
      %v773 = vld [vmem:[%s772] sm:$0xff]
      %v774 = vld [vmem:[%s772 + $0x10] sm:$0xff]
      %v775 = vld [vmem:[%s772 + $0x20] sm:$0xff]
      %v776 = vld [vmem:[%s772 + $0x30] sm:$0xff]
      %v777 = vld [vmem:[%s772 + $0x40] sm:$0xff]
      %v778 = vld [vmem:[%s772 + $0x50] sm:$0xff]
      %v779 = vld [vmem:[%s772 + $0x60] sm:$0xff]
      %v780 = vld [vmem:[%s772 + $0x70] sm:$0xff]
      %v781 = vpack.c.bf16 %v774, %v773
      %v782 = vpack.c.bf16 %v776, %v775
      %v783 = vpack.c.bf16 %v778, %v777
      %v784 = vpack.c.bf16 %v780, %v779
      %s785 = scalar_lea.vmem %s1, 12
      %v786 = vld [vmem:[%s785] sm:$0x3]
      %v788 = vsel %vm200, %v781, 0
      %v791 = vsel %vm200, %v782, 0
      %v794 = vsel %vm200, %v783, 0
      %v797 = vsel %vm200, %v784, 0
      %v800 = vsel %vm213, %v786, 0
      %802 = vmatprep.subr.bf16.mxu0 0
      %803 = vmatpush1.bf16.msra.mxu0 0
      %804 = vmatprep.subr.bf16.mxu0 0
      %805 = vmatpush1.bf16.msra.mxu0 0
      %806 = vmatprep.subr.bf16.mxu0 0
      %807 = vmatpush1.bf16.msra.mxu0 0
      %808 = vmatprep.subr.bf16.mxu0 0
      %809 = vmatpush1.bf16.msra.mxu0 0
      %810 = vmatprep.subr.bf16.mxu0 0
      %811 = vmatpush1.bf16.msra.mxu0 0
      %812 = vmatprep.subr.bf16.mxu0 0
      %813 = vmatpush1.bf16.msra.mxu0 0
      %814 = vmatprep.subr.bf16.mxu0 0
      %815 = vmatpush1.bf16.msra.mxu0 0
      %816 = vmatprep.subr.bf16.mxu0 0
      %817 = vmatpush1.bf16.msra.mxu0 %v800
      %818 = vmatprep.subr.bf16.mxu0 0
      %819 = vmatpush2.bf16.msra.mxu0 0
      %820 = vmatprep.subr.bf16.mxu0 0
      %821 = vmatpush2.bf16.msra.mxu0 0
      %822 = vmatprep.subr.bf16.mxu0 0
      %823 = vmatpush2.bf16.msra.mxu0 0
      %824 = vmatprep.subr.bf16.mxu0 0
      %825 = vmatpush2.bf16.msra.mxu0 0
      %826 = vmatprep.subr.bf16.mxu0 0
      %827 = vmatpush2.bf16.msra.mxu0 0
      %828 = vmatprep.subr.bf16.mxu0 0
      %829 = vmatpush2.bf16.msra.mxu0 0
      %830 = vmatprep.subr.bf16.mxu0 0
      %831 = vmatpush2.bf16.msra.mxu0 0
      %832 = vmatprep.subr.bf16.mxu0 0
      %833 = vmatpush2.bf16.msra.mxu0 0
      %834 = vmatprep.mubr.bf16.mxu0 0
      %835 = vmatmul.mubr.bf16.gmra.mxu0 %v788
      %v836 = vpop.f32.mrf.mxu0
      %v837 = vadd.f32 0.0, %v836
      %v838 = vpop.f32.mrf.mxu0
      %v839 = vpop.f32.mrf.mxu0
      %v840 = vadd.f32 0.0, %v839
      %v841 = vpop.f32.mrf.mxu0
      %842 = vmatprep.mubr.bf16.mxu0 0
      %843 = vmatmul.mubr.bf16.gmra.mxu0 %v791
      %v844 = vpop.f32.mrf.mxu0
      %v845 = vadd.f32 0.0, %v844
      %v846 = vpop.f32.mrf.mxu0
      %v847 = vpop.f32.mrf.mxu0
      %v848 = vadd.f32 0.0, %v847
      %v849 = vpop.f32.mrf.mxu0
      %850 = vmatprep.mubr.bf16.mxu0 0
      %851 = vmatmul.mubr.bf16.gmra.mxu0 %v794
      %v852 = vpop.f32.mrf.mxu0
      %v853 = vadd.f32 0.0, %v852
      %v854 = vpop.f32.mrf.mxu0
      %v855 = vpop.f32.mrf.mxu0
      %v856 = vadd.f32 0.0, %v855
      %v857 = vpop.f32.mrf.mxu0
      %858 = vmatprep.mubr.bf16.mxu0 0
      %859 = vmatmul.mubr.bf16.gmra.mxu0 %v797
      %v860 = vpop.f32.mrf.mxu0
      %v861 = vadd.f32 0.0, %v860
      %v862 = vpop.f32.mrf.mxu0
      %v863 = vpop.f32.mrf.mxu0
      %v864 = vadd.f32 0.0, %v863
      %v865 = vpop.f32.mrf.mxu0
      %866 = vdwg.mxu0
      %v867 = vadd.f32 %v764, %v837
      %v868 = vadd.f32 %v765, %v840
      %v869 = vadd.f32 %v766, %v845
      %v870 = vadd.f32 %v767, %v848
      %v871 = vadd.f32 %v768, %v853
      %v872 = vadd.f32 %v769, %v856
      %v873 = vadd.f32 %v770, %v861
      %v874 = vadd.f32 %v771, %v864
      %v875 = vld [vmem:[%s772 + $0x1] sm:$0xff]
      %v876 = vld [vmem:[%s772 + $0x11] sm:$0xff]
      %v877 = vld [vmem:[%s772 + $0x21] sm:$0xff]
      %v878 = vld [vmem:[%s772 + $0x31] sm:$0xff]
      %v879 = vld [vmem:[%s772 + $0x41] sm:$0xff]
      %v880 = vld [vmem:[%s772 + $0x51] sm:$0xff]
      %v881 = vld [vmem:[%s772 + $0x61] sm:$0xff]
      %v882 = vld [vmem:[%s772 + $0x71] sm:$0xff]
      %v883 = vpack.c.bf16 %v876, %v875
      %v884 = vpack.c.bf16 %v878, %v877
      %v885 = vpack.c.bf16 %v880, %v879
      %v886 = vpack.c.bf16 %v882, %v881
      %s887 = scalar_lea.vmem %s1, 14
      %v888 = vld [vmem:[%s887] sm:$0x3]
      %v890 = vsel %vm200, %v883, 0
      %v893 = vsel %vm200, %v884, 0
      %v896 = vsel %vm200, %v885, 0
      %v899 = vsel %vm200, %v886, 0
      %v902 = vsel %vm213, %v888, 0
      %904 = vmatprep.subr.bf16.mxu0 0
      %905 = vmatpush1.bf16.msra.mxu0 0
      %906 = vmatprep.subr.bf16.mxu0 0
      %907 = vmatpush1.bf16.msra.mxu0 0
      %908 = vmatprep.subr.bf16.mxu0 0
      %909 = vmatpush1.bf16.msra.mxu0 0
      %910 = vmatprep.subr.bf16.mxu0 0
      %911 = vmatpush1.bf16.msra.mxu0 0
      %912 = vmatprep.subr.bf16.mxu0 0
      %913 = vmatpush1.bf16.msra.mxu0 0
      %914 = vmatprep.subr.bf16.mxu0 0
      %915 = vmatpush1.bf16.msra.mxu0 0
      %916 = vmatprep.subr.bf16.mxu0 0
      %917 = vmatpush1.bf16.msra.mxu0 0
      %918 = vmatprep.subr.bf16.mxu0 0
      %919 = vmatpush1.bf16.msra.mxu0 %v902
      %920 = vmatprep.subr.bf16.mxu0 0
      %921 = vmatpush2.bf16.msra.mxu0 0
      %922 = vmatprep.subr.bf16.mxu0 0
      %923 = vmatpush2.bf16.msra.mxu0 0
      %924 = vmatprep.subr.bf16.mxu0 0
      %925 = vmatpush2.bf16.msra.mxu0 0
      %926 = vmatprep.subr.bf16.mxu0 0
      %927 = vmatpush2.bf16.msra.mxu0 0
      %928 = vmatprep.subr.bf16.mxu0 0
      %929 = vmatpush2.bf16.msra.mxu0 0
      %930 = vmatprep.subr.bf16.mxu0 0
      %931 = vmatpush2.bf16.msra.mxu0 0
      %932 = vmatprep.subr.bf16.mxu0 0
      %933 = vmatpush2.bf16.msra.mxu0 0
      %934 = vmatprep.subr.bf16.mxu0 0
      %935 = vmatpush2.bf16.msra.mxu0 0
      %936 = vmatprep.mubr.bf16.mxu0 0
      %937 = vmatmul.mubr.bf16.gmra.mxu0 %v890
      %v938 = vpop.f32.mrf.mxu0
      %v939 = vadd.f32 0.0, %v938
      %v940 = vpop.f32.mrf.mxu0
      %v941 = vpop.f32.mrf.mxu0
      %v942 = vadd.f32 0.0, %v941
      %v943 = vpop.f32.mrf.mxu0
      %944 = vmatprep.mubr.bf16.mxu0 0
      %945 = vmatmul.mubr.bf16.gmra.mxu0 %v893
      %v946 = vpop.f32.mrf.mxu0
      %v947 = vadd.f32 0.0, %v946
      %v948 = vpop.f32.mrf.mxu0
      %v949 = vpop.f32.mrf.mxu0
      %v950 = vadd.f32 0.0, %v949
      %v951 = vpop.f32.mrf.mxu0
      %952 = vmatprep.mubr.bf16.mxu0 0
      %953 = vmatmul.mubr.bf16.gmra.mxu0 %v896
      %v954 = vpop.f32.mrf.mxu0
      %v955 = vadd.f32 0.0, %v954
      %v956 = vpop.f32.mrf.mxu0
      %v957 = vpop.f32.mrf.mxu0
      %v958 = vadd.f32 0.0, %v957
      %v959 = vpop.f32.mrf.mxu0
      %960 = vmatprep.mubr.bf16.mxu0 0
      %961 = vmatmul.mubr.bf16.gmra.mxu0 %v899
      %v962 = vpop.f32.mrf.mxu0
      %v963 = vadd.f32 0.0, %v962
      %v964 = vpop.f32.mrf.mxu0
      %v965 = vpop.f32.mrf.mxu0
      %v966 = vadd.f32 0.0, %v965
      %v967 = vpop.f32.mrf.mxu0
      %968 = vdwg.mxu0
      %v969 = vadd.f32 %v867, %v939
      %v970 = vadd.f32 %v868, %v942
      %v971 = vadd.f32 %v869, %v947
      %v972 = vadd.f32 %v870, %v950
      %v973 = vadd.f32 %v871, %v955
      %v974 = vadd.f32 %v872, %v958
      %v975 = vadd.f32 %v873, %v963
      %v976 = vadd.f32 %v874, %v966
      %s977 = scalar_lea.vmem %s165, 288
      %v978 = vld [vmem:[%s977] sm:$0xff]
      %v979 = vld [vmem:[%s977 + $0x10] sm:$0xff]
      %v980 = vld [vmem:[%s977 + $0x20] sm:$0xff]
      %v981 = vld [vmem:[%s977 + $0x30] sm:$0xff]
      %v982 = vld [vmem:[%s977 + $0x40] sm:$0xff]
      %v983 = vld [vmem:[%s977 + $0x50] sm:$0xff]
      %v984 = vld [vmem:[%s977 + $0x60] sm:$0xff]
      %v985 = vld [vmem:[%s977 + $0x70] sm:$0xff]
      %v986 = vpack.c.bf16 %v979, %v978
      %v987 = vpack.c.bf16 %v981, %v980
      %v988 = vpack.c.bf16 %v983, %v982
      %v989 = vpack.c.bf16 %v985, %v984
      %s990 = scalar_lea.vmem %s1, 16
      %v991 = vld [vmem:[%s990] sm:$0x3]
      %v993 = vsel %vm200, %v986, 0
      %v996 = vsel %vm200, %v987, 0
      %v999 = vsel %vm200, %v988, 0
      %v1002 = vsel %vm200, %v989, 0
      %v1005 = vsel %vm213, %v991, 0
      %1007 = vmatprep.subr.bf16.mxu0 0
      %1008 = vmatpush1.bf16.msra.mxu0 0
      %1009 = vmatprep.subr.bf16.mxu0 0
      %1010 = vmatpush1.bf16.msra.mxu0 0
      %1011 = vmatprep.subr.bf16.mxu0 0
      %1012 = vmatpush1.bf16.msra.mxu0 0
      %1013 = vmatprep.subr.bf16.mxu0 0
      %1014 = vmatpush1.bf16.msra.mxu0 0
      %1015 = vmatprep.subr.bf16.mxu0 0
      %1016 = vmatpush1.bf16.msra.mxu0 0
      %1017 = vmatprep.subr.bf16.mxu0 0
      %1018 = vmatpush1.bf16.msra.mxu0 0
      %1019 = vmatprep.subr.bf16.mxu0 0
      %1020 = vmatpush1.bf16.msra.mxu0 0
      %1021 = vmatprep.subr.bf16.mxu0 0
      %1022 = vmatpush1.bf16.msra.mxu0 %v1005
      %1023 = vmatprep.subr.bf16.mxu0 0
      %1024 = vmatpush2.bf16.msra.mxu0 0
      %1025 = vmatprep.subr.bf16.mxu0 0
      %1026 = vmatpush2.bf16.msra.mxu0 0
      %1027 = vmatprep.subr.bf16.mxu0 0
      %1028 = vmatpush2.bf16.msra.mxu0 0
      %1029 = vmatprep.subr.bf16.mxu0 0
      %1030 = vmatpush2.bf16.msra.mxu0 0
      %1031 = vmatprep.subr.bf16.mxu0 0
      %1032 = vmatpush2.bf16.msra.mxu0 0
      %1033 = vmatprep.subr.bf16.mxu0 0
      %1034 = vmatpush2.bf16.msra.mxu0 0
      %1035 = vmatprep.subr.bf16.mxu0 0
      %1036 = vmatpush2.bf16.msra.mxu0 0
      %1037 = vmatprep.subr.bf16.mxu0 0
      %1038 = vmatpush2.bf16.msra.mxu0 0
      %1039 = vmatprep.mubr.bf16.mxu0 0
      %1040 = vmatmul.mubr.bf16.gmra.mxu0 %v993
      %v1041 = vpop.f32.mrf.mxu0
      %v1042 = vadd.f32 0.0, %v1041
      %v1043 = vpop.f32.mrf.mxu0
      %v1044 = vpop.f32.mrf.mxu0
      %v1045 = vadd.f32 0.0, %v1044
      %v1046 = vpop.f32.mrf.mxu0
      %1047 = vmatprep.mubr.bf16.mxu0 0
      %1048 = vmatmul.mubr.bf16.gmra.mxu0 %v996
      %v1049 = vpop.f32.mrf.mxu0
      %v1050 = vadd.f32 0.0, %v1049
      %v1051 = vpop.f32.mrf.mxu0
      %v1052 = vpop.f32.mrf.mxu0
      %v1053 = vadd.f32 0.0, %v1052
      %v1054 = vpop.f32.mrf.mxu0
      %1055 = vmatprep.mubr.bf16.mxu0 0
      %1056 = vmatmul.mubr.bf16.gmra.mxu0 %v999
      %v1057 = vpop.f32.mrf.mxu0
      %v1058 = vadd.f32 0.0, %v1057
      %v1059 = vpop.f32.mrf.mxu0
      %v1060 = vpop.f32.mrf.mxu0
      %v1061 = vadd.f32 0.0, %v1060
      %v1062 = vpop.f32.mrf.mxu0
      %1063 = vmatprep.mubr.bf16.mxu0 0
      %1064 = vmatmul.mubr.bf16.gmra.mxu0 %v1002
      %v1065 = vpop.f32.mrf.mxu0
      %v1066 = vadd.f32 0.0, %v1065
      %v1067 = vpop.f32.mrf.mxu0
      %v1068 = vpop.f32.mrf.mxu0
      %v1069 = vadd.f32 0.0, %v1068
      %v1070 = vpop.f32.mrf.mxu0
      %1071 = vdwg.mxu0
      %v1072 = vadd.f32 %v969, %v1042
      %v1073 = vadd.f32 %v970, %v1045
      %v1074 = vadd.f32 %v971, %v1050
      %v1075 = vadd.f32 %v972, %v1053
      %v1076 = vadd.f32 %v973, %v1058
      %v1077 = vadd.f32 %v974, %v1061
      %v1078 = vadd.f32 %v975, %v1066
      %v1079 = vadd.f32 %v976, %v1069
      %v1080 = vld [vmem:[%s977 + $0x1] sm:$0xff]
      %v1081 = vld [vmem:[%s977 + $0x11] sm:$0xff]
      %v1082 = vld [vmem:[%s977 + $0x21] sm:$0xff]
      %v1083 = vld [vmem:[%s977 + $0x31] sm:$0xff]
      %v1084 = vld [vmem:[%s977 + $0x41] sm:$0xff]
      %v1085 = vld [vmem:[%s977 + $0x51] sm:$0xff]
      %v1086 = vld [vmem:[%s977 + $0x61] sm:$0xff]
      %v1087 = vld [vmem:[%s977 + $0x71] sm:$0xff]
      %v1088 = vpack.c.bf16 %v1081, %v1080
      %v1089 = vpack.c.bf16 %v1083, %v1082
      %v1090 = vpack.c.bf16 %v1085, %v1084
      %v1091 = vpack.c.bf16 %v1087, %v1086
      %s1092 = scalar_lea.vmem %s1, 18
      %v1093 = vld [vmem:[%s1092] sm:$0x3]
      %v1095 = vsel %vm200, %v1088, 0
      %v1098 = vsel %vm200, %v1089, 0
      %v1101 = vsel %vm200, %v1090, 0
      %v1104 = vsel %vm200, %v1091, 0
      %v1107 = vsel %vm213, %v1093, 0
      %1109 = vmatprep.subr.bf16.mxu0 0
      %1110 = vmatpush1.bf16.msra.mxu0 0
      %1111 = vmatprep.subr.bf16.mxu0 0
      %1112 = vmatpush1.bf16.msra.mxu0 0
      %1113 = vmatprep.subr.bf16.mxu0 0
      %1114 = vmatpush1.bf16.msra.mxu0 0
      %1115 = vmatprep.subr.bf16.mxu0 0
      %1116 = vmatpush1.bf16.msra.mxu0 0
      %1117 = vmatprep.subr.bf16.mxu0 0
      %1118 = vmatpush1.bf16.msra.mxu0 0
      %1119 = vmatprep.subr.bf16.mxu0 0
      %1120 = vmatpush1.bf16.msra.mxu0 0
      %1121 = vmatprep.subr.bf16.mxu0 0
      %1122 = vmatpush1.bf16.msra.mxu0 0
      %1123 = vmatprep.subr.bf16.mxu0 0
      %1124 = vmatpush1.bf16.msra.mxu0 %v1107
      %1125 = vmatprep.subr.bf16.mxu0 0
      %1126 = vmatpush2.bf16.msra.mxu0 0
      %1127 = vmatprep.subr.bf16.mxu0 0
      %1128 = vmatpush2.bf16.msra.mxu0 0
      %1129 = vmatprep.subr.bf16.mxu0 0
      %1130 = vmatpush2.bf16.msra.mxu0 0
      %1131 = vmatprep.subr.bf16.mxu0 0
      %1132 = vmatpush2.bf16.msra.mxu0 0
      %1133 = vmatprep.subr.bf16.mxu0 0
      %1134 = vmatpush2.bf16.msra.mxu0 0
      %1135 = vmatprep.subr.bf16.mxu0 0
      %1136 = vmatpush2.bf16.msra.mxu0 0
      %1137 = vmatprep.subr.bf16.mxu0 0
      %1138 = vmatpush2.bf16.msra.mxu0 0
      %1139 = vmatprep.subr.bf16.mxu0 0
      %1140 = vmatpush2.bf16.msra.mxu0 0
      %1141 = vmatprep.mubr.bf16.mxu0 0
      %1142 = vmatmul.mubr.bf16.gmra.mxu0 %v1095
      %v1143 = vpop.f32.mrf.mxu0
      %v1144 = vadd.f32 0.0, %v1143
      %v1145 = vpop.f32.mrf.mxu0
      %v1146 = vpop.f32.mrf.mxu0
      %v1147 = vadd.f32 0.0, %v1146
      %v1148 = vpop.f32.mrf.mxu0
      %1149 = vmatprep.mubr.bf16.mxu0 0
      %1150 = vmatmul.mubr.bf16.gmra.mxu0 %v1098
      %v1151 = vpop.f32.mrf.mxu0
      %v1152 = vadd.f32 0.0, %v1151
      %v1153 = vpop.f32.mrf.mxu0
      %v1154 = vpop.f32.mrf.mxu0
      %v1155 = vadd.f32 0.0, %v1154
      %v1156 = vpop.f32.mrf.mxu0
      %1157 = vmatprep.mubr.bf16.mxu0 0
      %1158 = vmatmul.mubr.bf16.gmra.mxu0 %v1101
      %v1159 = vpop.f32.mrf.mxu0
      %v1160 = vadd.f32 0.0, %v1159
      %v1161 = vpop.f32.mrf.mxu0
      %v1162 = vpop.f32.mrf.mxu0
      %v1163 = vadd.f32 0.0, %v1162
      %v1164 = vpop.f32.mrf.mxu0
      %1165 = vmatprep.mubr.bf16.mxu0 0
      %1166 = vmatmul.mubr.bf16.gmra.mxu0 %v1104
      %v1167 = vpop.f32.mrf.mxu0
      %v1168 = vadd.f32 0.0, %v1167
      %v1169 = vpop.f32.mrf.mxu0
      %v1170 = vpop.f32.mrf.mxu0
      %v1171 = vadd.f32 0.0, %v1170
      %v1172 = vpop.f32.mrf.mxu0
      %1173 = vdwg.mxu0
      %v1174 = vadd.f32 %v1072, %v1144
      %v1175 = vadd.f32 %v1073, %v1147
      %v1176 = vadd.f32 %v1074, %v1152
      %v1177 = vadd.f32 %v1075, %v1155
      %v1178 = vadd.f32 %v1076, %v1160
      %v1179 = vadd.f32 %v1077, %v1163
      %v1180 = vadd.f32 %v1078, %v1168
      %v1181 = vadd.f32 %v1079, %v1171
      %s1182 = scalar_lea.vmem %s165, 304
      %v1183 = vld [vmem:[%s1182] sm:$0xff]
      %v1184 = vld [vmem:[%s1182 + $0x10] sm:$0xff]
      %v1185 = vld [vmem:[%s1182 + $0x20] sm:$0xff]
      %v1186 = vld [vmem:[%s1182 + $0x30] sm:$0xff]
      %v1187 = vld [vmem:[%s1182 + $0x40] sm:$0xff]
      %v1188 = vld [vmem:[%s1182 + $0x50] sm:$0xff]
      %v1189 = vld [vmem:[%s1182 + $0x60] sm:$0xff]
      %v1190 = vld [vmem:[%s1182 + $0x70] sm:$0xff]
      %v1191 = vpack.c.bf16 %v1184, %v1183
      %v1192 = vpack.c.bf16 %v1186, %v1185
      %v1193 = vpack.c.bf16 %v1188, %v1187
      %v1194 = vpack.c.bf16 %v1190, %v1189
      %s1195 = scalar_lea.vmem %s1, 20
      %v1196 = vld [vmem:[%s1195] sm:$0x3]
      %v1198 = vsel %vm200, %v1191, 0
      %v1201 = vsel %vm200, %v1192, 0
      %v1204 = vsel %vm200, %v1193, 0
      %v1207 = vsel %vm200, %v1194, 0
      %v1210 = vsel %vm213, %v1196, 0
      %1212 = vmatprep.subr.bf16.mxu0 0
      %1213 = vmatpush1.bf16.msra.mxu0 0
      %1214 = vmatprep.subr.bf16.mxu0 0
      %1215 = vmatpush1.bf16.msra.mxu0 0
      %1216 = vmatprep.subr.bf16.mxu0 0
      %1217 = vmatpush1.bf16.msra.mxu0 0
      %1218 = vmatprep.subr.bf16.mxu0 0
      %1219 = vmatpush1.bf16.msra.mxu0 0
      %1220 = vmatprep.subr.bf16.mxu0 0
      %1221 = vmatpush1.bf16.msra.mxu0 0
      %1222 = vmatprep.subr.bf16.mxu0 0
      %1223 = vmatpush1.bf16.msra.mxu0 0
      %1224 = vmatprep.subr.bf16.mxu0 0
      %1225 = vmatpush1.bf16.msra.mxu0 0
      %1226 = vmatprep.subr.bf16.mxu0 0
      %1227 = vmatpush1.bf16.msra.mxu0 %v1210
      %1228 = vmatprep.subr.bf16.mxu0 0
      %1229 = vmatpush2.bf16.msra.mxu0 0
      %1230 = vmatprep.subr.bf16.mxu0 0
      %1231 = vmatpush2.bf16.msra.mxu0 0
      %1232 = vmatprep.subr.bf16.mxu0 0
      %1233 = vmatpush2.bf16.msra.mxu0 0
      %1234 = vmatprep.subr.bf16.mxu0 0
      %1235 = vmatpush2.bf16.msra.mxu0 0
      %1236 = vmatprep.subr.bf16.mxu0 0
      %1237 = vmatpush2.bf16.msra.mxu0 0
      %1238 = vmatprep.subr.bf16.mxu0 0
      %1239 = vmatpush2.bf16.msra.mxu0 0
      %1240 = vmatprep.subr.bf16.mxu0 0
      %1241 = vmatpush2.bf16.msra.mxu0 0
      %1242 = vmatprep.subr.bf16.mxu0 0
      %1243 = vmatpush2.bf16.msra.mxu0 0
      %1244 = vmatprep.mubr.bf16.mxu0 0
      %1245 = vmatmul.mubr.bf16.gmra.mxu0 %v1198
      %v1246 = vpop.f32.mrf.mxu0
      %v1247 = vadd.f32 0.0, %v1246
      %v1248 = vpop.f32.mrf.mxu0
      %v1249 = vpop.f32.mrf.mxu0
      %v1250 = vadd.f32 0.0, %v1249
      %v1251 = vpop.f32.mrf.mxu0
      %1252 = vmatprep.mubr.bf16.mxu0 0
      %1253 = vmatmul.mubr.bf16.gmra.mxu0 %v1201
      %v1254 = vpop.f32.mrf.mxu0
      %v1255 = vadd.f32 0.0, %v1254
      %v1256 = vpop.f32.mrf.mxu0
      %v1257 = vpop.f32.mrf.mxu0
      %v1258 = vadd.f32 0.0, %v1257
      %v1259 = vpop.f32.mrf.mxu0
      %1260 = vmatprep.mubr.bf16.mxu0 0
      %1261 = vmatmul.mubr.bf16.gmra.mxu0 %v1204
      %v1262 = vpop.f32.mrf.mxu0
      %v1263 = vadd.f32 0.0, %v1262
      %v1264 = vpop.f32.mrf.mxu0
      %v1265 = vpop.f32.mrf.mxu0
      %v1266 = vadd.f32 0.0, %v1265
      %v1267 = vpop.f32.mrf.mxu0
      %1268 = vmatprep.mubr.bf16.mxu0 0
      %1269 = vmatmul.mubr.bf16.gmra.mxu0 %v1207
      %v1270 = vpop.f32.mrf.mxu0
      %v1271 = vadd.f32 0.0, %v1270
      %v1272 = vpop.f32.mrf.mxu0
      %v1273 = vpop.f32.mrf.mxu0
      %v1274 = vadd.f32 0.0, %v1273
      %v1275 = vpop.f32.mrf.mxu0
      %1276 = vdwg.mxu0
      %v1277 = vadd.f32 %v1174, %v1247
      %v1278 = vadd.f32 %v1175, %v1250
      %v1279 = vadd.f32 %v1176, %v1255
      %v1280 = vadd.f32 %v1177, %v1258
      %v1281 = vadd.f32 %v1178, %v1263
      %v1282 = vadd.f32 %v1179, %v1266
      %v1283 = vadd.f32 %v1180, %v1271
      %v1284 = vadd.f32 %v1181, %v1274
      %v1285 = vld [vmem:[%s1182 + $0x1] sm:$0xff]
      %v1286 = vld [vmem:[%s1182 + $0x11] sm:$0xff]
      %v1287 = vld [vmem:[%s1182 + $0x21] sm:$0xff]
      %v1288 = vld [vmem:[%s1182 + $0x31] sm:$0xff]
      %v1289 = vld [vmem:[%s1182 + $0x41] sm:$0xff]
      %v1290 = vld [vmem:[%s1182 + $0x51] sm:$0xff]
      %v1291 = vld [vmem:[%s1182 + $0x61] sm:$0xff]
      %v1292 = vld [vmem:[%s1182 + $0x71] sm:$0xff]
      %v1293 = vpack.c.bf16 %v1286, %v1285
      %v1294 = vpack.c.bf16 %v1288, %v1287
      %v1295 = vpack.c.bf16 %v1290, %v1289
      %v1296 = vpack.c.bf16 %v1292, %v1291
      %s1297 = scalar_lea.vmem %s1, 22
      %v1298 = vld [vmem:[%s1297] sm:$0x3]
      %v1300 = vsel %vm200, %v1293, 0
      %v1303 = vsel %vm200, %v1294, 0
      %v1306 = vsel %vm200, %v1295, 0
      %v1309 = vsel %vm200, %v1296, 0
      %v1312 = vsel %vm213, %v1298, 0
      %1314 = vmatprep.subr.bf16.mxu0 0
      %1315 = vmatpush1.bf16.msra.mxu0 0
      %1316 = vmatprep.subr.bf16.mxu0 0
      %1317 = vmatpush1.bf16.msra.mxu0 0
      %1318 = vmatprep.subr.bf16.mxu0 0
      %1319 = vmatpush1.bf16.msra.mxu0 0
      %1320 = vmatprep.subr.bf16.mxu0 0
      %1321 = vmatpush1.bf16.msra.mxu0 0
      %1322 = vmatprep.subr.bf16.mxu0 0
      %1323 = vmatpush1.bf16.msra.mxu0 0
      %1324 = vmatprep.subr.bf16.mxu0 0
      %1325 = vmatpush1.bf16.msra.mxu0 0
      %1326 = vmatprep.subr.bf16.mxu0 0
      %1327 = vmatpush1.bf16.msra.mxu0 0
      %1328 = vmatprep.subr.bf16.mxu0 0
      %1329 = vmatpush1.bf16.msra.mxu0 %v1312
      %1330 = vmatprep.subr.bf16.mxu0 0
      %1331 = vmatpush2.bf16.msra.mxu0 0
      %1332 = vmatprep.subr.bf16.mxu0 0
      %1333 = vmatpush2.bf16.msra.mxu0 0
      %1334 = vmatprep.subr.bf16.mxu0 0
      %1335 = vmatpush2.bf16.msra.mxu0 0
      %1336 = vmatprep.subr.bf16.mxu0 0
      %1337 = vmatpush2.bf16.msra.mxu0 0
      %1338 = vmatprep.subr.bf16.mxu0 0
      %1339 = vmatpush2.bf16.msra.mxu0 0
      %1340 = vmatprep.subr.bf16.mxu0 0
      %1341 = vmatpush2.bf16.msra.mxu0 0
      %1342 = vmatprep.subr.bf16.mxu0 0
      %1343 = vmatpush2.bf16.msra.mxu0 0
      %1344 = vmatprep.subr.bf16.mxu0 0
      %1345 = vmatpush2.bf16.msra.mxu0 0
      %1346 = vmatprep.mubr.bf16.mxu0 0
      %1347 = vmatmul.mubr.bf16.gmra.mxu0 %v1300
      %v1348 = vpop.f32.mrf.mxu0
      %v1349 = vadd.f32 0.0, %v1348
      %v1350 = vpop.f32.mrf.mxu0
      %v1351 = vpop.f32.mrf.mxu0
      %v1352 = vadd.f32 0.0, %v1351
      %v1353 = vpop.f32.mrf.mxu0
      %1354 = vmatprep.mubr.bf16.mxu0 0
      %1355 = vmatmul.mubr.bf16.gmra.mxu0 %v1303
      %v1356 = vpop.f32.mrf.mxu0
      %v1357 = vadd.f32 0.0, %v1356
      %v1358 = vpop.f32.mrf.mxu0
      %v1359 = vpop.f32.mrf.mxu0
      %v1360 = vadd.f32 0.0, %v1359
      %v1361 = vpop.f32.mrf.mxu0
      %1362 = vmatprep.mubr.bf16.mxu0 0
      %1363 = vmatmul.mubr.bf16.gmra.mxu0 %v1306
      %v1364 = vpop.f32.mrf.mxu0
      %v1365 = vadd.f32 0.0, %v1364
      %v1366 = vpop.f32.mrf.mxu0
      %v1367 = vpop.f32.mrf.mxu0
      %v1368 = vadd.f32 0.0, %v1367
      %v1369 = vpop.f32.mrf.mxu0
      %1370 = vmatprep.mubr.bf16.mxu0 0
      %1371 = vmatmul.mubr.bf16.gmra.mxu0 %v1309
      %v1372 = vpop.f32.mrf.mxu0
      %v1373 = vadd.f32 0.0, %v1372
      %v1374 = vpop.f32.mrf.mxu0
      %v1375 = vpop.f32.mrf.mxu0
      %v1376 = vadd.f32 0.0, %v1375
      %v1377 = vpop.f32.mrf.mxu0
      %1378 = vdwg.mxu0
      %v1379 = vadd.f32 %v1277, %v1349
      %v1380 = vadd.f32 %v1278, %v1352
      %v1381 = vadd.f32 %v1279, %v1357
      %v1382 = vadd.f32 %v1280, %v1360
      %v1383 = vadd.f32 %v1281, %v1365
      %v1384 = vadd.f32 %v1282, %v1368
      %v1385 = vadd.f32 %v1283, %v1373
      %v1386 = vadd.f32 %v1284, %v1376
      %v1388 = vlaneseq
      %v1389 = vshrl.u32 %v1388, 7
      %v1390 = vsub.s32 0, %v1389
      %v1391 = vrot.slane %v172, %v1390
      %v1393 = vadd.f32 %v1379, %v1391
      %v1394 = vadd.f32 %v1380, %v1391
      %v1395 = vadd.f32 %v1381, %v1391
      %v1396 = vadd.f32 %v1382, %v1391
      %v1397 = vadd.f32 %v1383, %v1391
      %v1398 = vadd.f32 %v1384, %v1391
      %v1399 = vadd.f32 %v1385, %v1391
      %v1400 = vadd.f32 %v1386, %v1391
      %vm1401 = vcmask 261120
      %1402 = vst.msk [vmem:[%s170] sm:$0xff] %vm1401, %v1393
      %1403 = vst.msk [vmem:[%s170 + $0x8] sm:$0xff] %vm1401, %v1394
      %1404 = vst.msk [vmem:[%s170 + $0x10] sm:$0xff] %vm1401, %v1395
      %1405 = vst.msk [vmem:[%s170 + $0x18] sm:$0xff] %vm1401, %v1396
      %1406 = vst.msk [vmem:[%s170 + $0x20] sm:$0xff] %vm1401, %v1397
      %1407 = vst.msk [vmem:[%s170 + $0x28] sm:$0xff] %vm1401, %v1398
      %1408 = vst.msk [vmem:[%s170 + $0x30] sm:$0xff] %vm1401, %v1399
      %1409 = vst.msk [vmem:[%s170 + $0x38] sm:$0xff] %vm1401, %v1400
      %v1410 = vld [vmem:[%s567] sm:$0xff]
      %v1411 = vld [vmem:[%s567 + $0x10] sm:$0xff]
      %v1412 = vld [vmem:[%s567 + $0x20] sm:$0xff]
      %v1413 = vld [vmem:[%s567 + $0x30] sm:$0xff]
      %v1414 = vld [vmem:[%s567 + $0x40] sm:$0xff]
      %v1415 = vld [vmem:[%s567 + $0x50] sm:$0xff]
      %v1416 = vld [vmem:[%s567 + $0x60] sm:$0xff]
      %v1417 = vld [vmem:[%s567 + $0x70] sm:$0xff]
      %v1418 = vpack.c.bf16 %v1411, %v1410
      %v1419 = vpack.c.bf16 %v1413, %v1412
      %v1420 = vpack.c.bf16 %v1415, %v1414
      %v1421 = vpack.c.bf16 %v1417, %v1416
      %v1422 = vld [vmem:[%s1] sm:$0x3]
      %v1423 = vld [vmem:[%s567 + $0x1] sm:$0xff]
      %v1424 = vld [vmem:[%s567 + $0x11] sm:$0xff]
      %v1425 = vld [vmem:[%s567 + $0x21] sm:$0xff]
      %v1426 = vld [vmem:[%s567 + $0x31] sm:$0xff]
      %v1427 = vld [vmem:[%s567 + $0x41] sm:$0xff]
      %v1428 = vld [vmem:[%s567 + $0x51] sm:$0xff]
      %v1429 = vld [vmem:[%s567 + $0x61] sm:$0xff]
      %v1430 = vld [vmem:[%s567 + $0x71] sm:$0xff]
      %v1431 = vpack.c.bf16 %v1424, %v1423
      %v1432 = vpack.c.bf16 %v1426, %v1425
      %v1433 = vpack.c.bf16 %v1428, %v1427
      %v1434 = vpack.c.bf16 %v1430, %v1429
      %v1435 = vld [vmem:[%s198] sm:$0x3]
      %v1437 = vsel %vm200, %v1431, 0
      %v1440 = vsel %vm200, %v1432, 0
      %v1443 = vsel %vm200, %v1433, 0
      %v1446 = vsel %vm200, %v1434, 0
      %v1449 = vsel %vm213, %v1435, 0
      %1451 = vmatprep.subr.bf16.mxu0 0
      %1452 = vmatpush1.bf16.msra.mxu0 0
      %1453 = vmatprep.subr.bf16.mxu0 0
      %1454 = vmatpush1.bf16.msra.mxu0 0
      %1455 = vmatprep.subr.bf16.mxu0 0
      %1456 = vmatpush1.bf16.msra.mxu0 0
      %1457 = vmatprep.subr.bf16.mxu0 0
      %1458 = vmatpush1.bf16.msra.mxu0 0
      %1459 = vmatprep.subr.bf16.mxu0 0
      %1460 = vmatpush1.bf16.msra.mxu0 0
      %1461 = vmatprep.subr.bf16.mxu0 0
      %1462 = vmatpush1.bf16.msra.mxu0 0
      %1463 = vmatprep.subr.bf16.mxu0 0
      %1464 = vmatpush1.bf16.msra.mxu0 0
      %1465 = vmatprep.subr.bf16.mxu0 0
      %1466 = vmatpush1.bf16.msra.mxu0 %v1449
      %1467 = vmatprep.subr.bf16.mxu0 0
      %1468 = vmatpush2.bf16.msra.mxu0 0
      %1469 = vmatprep.subr.bf16.mxu0 0
      %1470 = vmatpush2.bf16.msra.mxu0 0
      %1471 = vmatprep.subr.bf16.mxu0 0
      %1472 = vmatpush2.bf16.msra.mxu0 0
      %1473 = vmatprep.subr.bf16.mxu0 0
      %1474 = vmatpush2.bf16.msra.mxu0 0
      %1475 = vmatprep.subr.bf16.mxu0 0
      %1476 = vmatpush2.bf16.msra.mxu0 0
      %1477 = vmatprep.subr.bf16.mxu0 0
      %1478 = vmatpush2.bf16.msra.mxu0 0
      %1479 = vmatprep.subr.bf16.mxu0 0
      %1480 = vmatpush2.bf16.msra.mxu0 0
      %1481 = vmatprep.subr.bf16.mxu0 0
      %1482 = vmatpush2.bf16.msra.mxu0 0
      %1483 = vmatprep.mubr.bf16.mxu0 0
      %1484 = vmatmul.mubr.bf16.gmra.mxu0 %v1437
      %v1485 = vpop.f32.mrf.mxu0
      %v1486 = vadd.f32 0.0, %v1485
      %v1487 = vpop.f32.mrf.mxu0
      %v1488 = vpop.f32.mrf.mxu0
      %v1489 = vadd.f32 0.0, %v1488
      %v1490 = vpop.f32.mrf.mxu0
      %1491 = vmatprep.mubr.bf16.mxu0 0
      %1492 = vmatmul.mubr.bf16.gmra.mxu0 %v1440
      %v1493 = vpop.f32.mrf.mxu0
      %v1494 = vadd.f32 0.0, %v1493
      %v1495 = vpop.f32.mrf.mxu0
      %v1496 = vpop.f32.mrf.mxu0
      %v1497 = vadd.f32 0.0, %v1496
      %v1498 = vpop.f32.mrf.mxu0
      %1499 = vmatprep.mubr.bf16.mxu0 0
      %1500 = vmatmul.mubr.bf16.gmra.mxu0 %v1443
      %v1501 = vpop.f32.mrf.mxu0
      %v1502 = vadd.f32 0.0, %v1501
      %v1503 = vpop.f32.mrf.mxu0
      %v1504 = vpop.f32.mrf.mxu0
      %v1505 = vadd.f32 0.0, %v1504
      %v1506 = vpop.f32.mrf.mxu0
      %1507 = vmatprep.mubr.bf16.mxu0 0
      %1508 = vmatmul.mubr.bf16.gmra.mxu0 %v1446
      %v1509 = vpop.f32.mrf.mxu0
      %v1510 = vadd.f32 0.0, %v1509
      %v1511 = vpop.f32.mrf.mxu0
      %v1512 = vpop.f32.mrf.mxu0
      %v1513 = vadd.f32 0.0, %v1512
      %v1514 = vpop.f32.mrf.mxu0
      %1515 = vdwg.mxu0
      %v1517 = vsel %vm200, %v1418, 0
      %v1520 = vsel %vm200, %v1419, 0
      %v1523 = vsel %vm200, %v1420, 0
      %v1526 = vsel %vm200, %v1421, 0
      %v1529 = vsel %vm213, %v1422, 0
      %1531 = vmatprep.subr.bf16.mxu0 0
      %1532 = vmatpush1.bf16.msra.mxu0 0
      %1533 = vmatprep.subr.bf16.mxu0 0
      %1534 = vmatpush1.bf16.msra.mxu0 0
      %1535 = vmatprep.subr.bf16.mxu0 0
      %1536 = vmatpush1.bf16.msra.mxu0 0
      %1537 = vmatprep.subr.bf16.mxu0 0
      %1538 = vmatpush1.bf16.msra.mxu0 0
      %1539 = vmatprep.subr.bf16.mxu0 0
      %1540 = vmatpush1.bf16.msra.mxu0 0
      %1541 = vmatprep.subr.bf16.mxu0 0
      %1542 = vmatpush1.bf16.msra.mxu0 0
      %1543 = vmatprep.subr.bf16.mxu0 0
      %1544 = vmatpush1.bf16.msra.mxu0 0
      %1545 = vmatprep.subr.bf16.mxu0 0
      %1546 = vmatpush1.bf16.msra.mxu0 %v1529
      %1547 = vmatprep.subr.bf16.mxu0 0
      %1548 = vmatpush2.bf16.msra.mxu0 0
      %1549 = vmatprep.subr.bf16.mxu0 0
      %1550 = vmatpush2.bf16.msra.mxu0 0
      %1551 = vmatprep.subr.bf16.mxu0 0
      %1552 = vmatpush2.bf16.msra.mxu0 0
      %1553 = vmatprep.subr.bf16.mxu0 0
      %1554 = vmatpush2.bf16.msra.mxu0 0
      %1555 = vmatprep.subr.bf16.mxu0 0
      %1556 = vmatpush2.bf16.msra.mxu0 0
      %1557 = vmatprep.subr.bf16.mxu0 0
      %1558 = vmatpush2.bf16.msra.mxu0 0
      %1559 = vmatprep.subr.bf16.mxu0 0
      %1560 = vmatpush2.bf16.msra.mxu0 0
      %1561 = vmatprep.subr.bf16.mxu0 0
      %1562 = vmatpush2.bf16.msra.mxu0 0
      %1563 = vmatprep.mubr.bf16.mxu0 0
      %1564 = vmatmul.mubr.bf16.gmra.mxu0 %v1517
      %v1565 = vpop.f32.mrf.mxu0
      %v1566 = vadd.f32 %v1486, %v1565
      %v1567 = vpop.f32.mrf.mxu0
      %v1568 = vpop.f32.mrf.mxu0
      %v1569 = vadd.f32 %v1489, %v1568
      %v1570 = vpop.f32.mrf.mxu0
      %1571 = vmatprep.mubr.bf16.mxu0 0
      %1572 = vmatmul.mubr.bf16.gmra.mxu0 %v1520
      %v1573 = vpop.f32.mrf.mxu0
      %v1574 = vadd.f32 %v1494, %v1573
      %v1575 = vpop.f32.mrf.mxu0
      %v1576 = vpop.f32.mrf.mxu0
      %v1577 = vadd.f32 %v1497, %v1576
      %v1578 = vpop.f32.mrf.mxu0
      %1579 = vmatprep.mubr.bf16.mxu0 0
      %1580 = vmatmul.mubr.bf16.gmra.mxu0 %v1523
      %v1581 = vpop.f32.mrf.mxu0
      %v1582 = vadd.f32 %v1502, %v1581
      %v1583 = vpop.f32.mrf.mxu0
      %v1584 = vpop.f32.mrf.mxu0
      %v1585 = vadd.f32 %v1505, %v1584
      %v1586 = vpop.f32.mrf.mxu0
      %1587 = vmatprep.mubr.bf16.mxu0 0
      %1588 = vmatmul.mubr.bf16.gmra.mxu0 %v1526
      %v1589 = vpop.f32.mrf.mxu0
      %v1590 = vadd.f32 %v1510, %v1589
      %v1591 = vpop.f32.mrf.mxu0
      %v1592 = vpop.f32.mrf.mxu0
      %v1593 = vadd.f32 %v1513, %v1592
      %v1594 = vpop.f32.mrf.mxu0
      %1595 = vdwg.mxu0
      %v1596 = vld [vmem:[%s772] sm:$0xff]
      %v1597 = vld [vmem:[%s772 + $0x10] sm:$0xff]
      %v1598 = vld [vmem:[%s772 + $0x20] sm:$0xff]
      %v1599 = vld [vmem:[%s772 + $0x30] sm:$0xff]
      %v1600 = vld [vmem:[%s772 + $0x40] sm:$0xff]
      %v1601 = vld [vmem:[%s772 + $0x50] sm:$0xff]
      %v1602 = vld [vmem:[%s772 + $0x60] sm:$0xff]
      %v1603 = vld [vmem:[%s772 + $0x70] sm:$0xff]
      %v1604 = vpack.c.bf16 %v1597, %v1596
      %v1605 = vpack.c.bf16 %v1599, %v1598
      %v1606 = vpack.c.bf16 %v1601, %v1600
      %v1607 = vpack.c.bf16 %v1603, %v1602
      %v1608 = vld [vmem:[%s375] sm:$0x3]
      %v1610 = vsel %vm200, %v1604, 0
      %v1613 = vsel %vm200, %v1605, 0
      %v1616 = vsel %vm200, %v1606, 0
      %v1619 = vsel %vm200, %v1607, 0
      %v1622 = vsel %vm213, %v1608, 0
      %1624 = vmatprep.subr.bf16.mxu0 0
      %1625 = vmatpush1.bf16.msra.mxu0 0
      %1626 = vmatprep.subr.bf16.mxu0 0
      %1627 = vmatpush1.bf16.msra.mxu0 0
      %1628 = vmatprep.subr.bf16.mxu0 0
      %1629 = vmatpush1.bf16.msra.mxu0 0
      %1630 = vmatprep.subr.bf16.mxu0 0
      %1631 = vmatpush1.bf16.msra.mxu0 0
      %1632 = vmatprep.subr.bf16.mxu0 0
      %1633 = vmatpush1.bf16.msra.mxu0 0
      %1634 = vmatprep.subr.bf16.mxu0 0
      %1635 = vmatpush1.bf16.msra.mxu0 0
      %1636 = vmatprep.subr.bf16.mxu0 0
      %1637 = vmatpush1.bf16.msra.mxu0 0
      %1638 = vmatprep.subr.bf16.mxu0 0
      %1639 = vmatpush1.bf16.msra.mxu0 %v1622
      %1640 = vmatprep.subr.bf16.mxu0 0
      %1641 = vmatpush2.bf16.msra.mxu0 0
      %1642 = vmatprep.subr.bf16.mxu0 0
      %1643 = vmatpush2.bf16.msra.mxu0 0
      %1644 = vmatprep.subr.bf16.mxu0 0
      %1645 = vmatpush2.bf16.msra.mxu0 0
      %1646 = vmatprep.subr.bf16.mxu0 0
      %1647 = vmatpush2.bf16.msra.mxu0 0
      %1648 = vmatprep.subr.bf16.mxu0 0
      %1649 = vmatpush2.bf16.msra.mxu0 0
      %1650 = vmatprep.subr.bf16.mxu0 0
      %1651 = vmatpush2.bf16.msra.mxu0 0
      %1652 = vmatprep.subr.bf16.mxu0 0
      %1653 = vmatpush2.bf16.msra.mxu0 0
      %1654 = vmatprep.subr.bf16.mxu0 0
      %1655 = vmatpush2.bf16.msra.mxu0 0
      %1656 = vmatprep.mubr.bf16.mxu0 0
      %1657 = vmatmul.mubr.bf16.gmra.mxu0 %v1610
      %v1658 = vpop.f32.mrf.mxu0
      %v1659 = vadd.f32 0.0, %v1658
      %v1660 = vpop.f32.mrf.mxu0
      %v1661 = vpop.f32.mrf.mxu0
      %v1662 = vadd.f32 0.0, %v1661
      %v1663 = vpop.f32.mrf.mxu0
      %1664 = vmatprep.mubr.bf16.mxu0 0
      %1665 = vmatmul.mubr.bf16.gmra.mxu0 %v1613
      %v1666 = vpop.f32.mrf.mxu0
      %v1667 = vadd.f32 0.0, %v1666
      %v1668 = vpop.f32.mrf.mxu0
      %v1669 = vpop.f32.mrf.mxu0
      %v1670 = vadd.f32 0.0, %v1669
      %v1671 = vpop.f32.mrf.mxu0
      %1672 = vmatprep.mubr.bf16.mxu0 0
      %1673 = vmatmul.mubr.bf16.gmra.mxu0 %v1616
      %v1674 = vpop.f32.mrf.mxu0
      %v1675 = vadd.f32 0.0, %v1674
      %v1676 = vpop.f32.mrf.mxu0
      %v1677 = vpop.f32.mrf.mxu0
      %v1678 = vadd.f32 0.0, %v1677
      %v1679 = vpop.f32.mrf.mxu0
      %1680 = vmatprep.mubr.bf16.mxu0 0
      %1681 = vmatmul.mubr.bf16.gmra.mxu0 %v1619
      %v1682 = vpop.f32.mrf.mxu0
      %v1683 = vadd.f32 0.0, %v1682
      %v1684 = vpop.f32.mrf.mxu0
      %v1685 = vpop.f32.mrf.mxu0
      %v1686 = vadd.f32 0.0, %v1685
      %v1687 = vpop.f32.mrf.mxu0
      %1688 = vdwg.mxu0
      %v1689 = vadd.f32 %v1566, %v1659
      %v1690 = vadd.f32 %v1569, %v1662
      %v1691 = vadd.f32 %v1574, %v1667
      %v1692 = vadd.f32 %v1577, %v1670
      %v1693 = vadd.f32 %v1582, %v1675
      %v1694 = vadd.f32 %v1585, %v1678
      %v1695 = vadd.f32 %v1590, %v1683
      %v1696 = vadd.f32 %v1593, %v1686
      %v1697 = vld [vmem:[%s772 + $0x1] sm:$0xff]
      %v1698 = vld [vmem:[%s772 + $0x11] sm:$0xff]
      %v1699 = vld [vmem:[%s772 + $0x21] sm:$0xff]
      %v1700 = vld [vmem:[%s772 + $0x31] sm:$0xff]
      %v1701 = vld [vmem:[%s772 + $0x41] sm:$0xff]
      %v1702 = vld [vmem:[%s772 + $0x51] sm:$0xff]
      %v1703 = vld [vmem:[%s772 + $0x61] sm:$0xff]
      %v1704 = vld [vmem:[%s772 + $0x71] sm:$0xff]
      %v1705 = vpack.c.bf16 %v1698, %v1697
      %v1706 = vpack.c.bf16 %v1700, %v1699
      %v1707 = vpack.c.bf16 %v1702, %v1701
      %v1708 = vpack.c.bf16 %v1704, %v1703
      %v1709 = vld [vmem:[%s477] sm:$0x3]
      %v1711 = vsel %vm200, %v1705, 0
      %v1714 = vsel %vm200, %v1706, 0
      %v1717 = vsel %vm200, %v1707, 0
      %v1720 = vsel %vm200, %v1708, 0
      %v1723 = vsel %vm213, %v1709, 0
      %1725 = vmatprep.subr.bf16.mxu0 0
      %1726 = vmatpush1.bf16.msra.mxu0 0
      %1727 = vmatprep.subr.bf16.mxu0 0
      %1728 = vmatpush1.bf16.msra.mxu0 0
      %1729 = vmatprep.subr.bf16.mxu0 0
      %1730 = vmatpush1.bf16.msra.mxu0 0
      %1731 = vmatprep.subr.bf16.mxu0 0
      %1732 = vmatpush1.bf16.msra.mxu0 0
      %1733 = vmatprep.subr.bf16.mxu0 0
      %1734 = vmatpush1.bf16.msra.mxu0 0
      %1735 = vmatprep.subr.bf16.mxu0 0
      %1736 = vmatpush1.bf16.msra.mxu0 0
      %1737 = vmatprep.subr.bf16.mxu0 0
      %1738 = vmatpush1.bf16.msra.mxu0 0
      %1739 = vmatprep.subr.bf16.mxu0 0
      %1740 = vmatpush1.bf16.msra.mxu0 %v1723
      %1741 = vmatprep.subr.bf16.mxu0 0
      %1742 = vmatpush2.bf16.msra.mxu0 0
      %1743 = vmatprep.subr.bf16.mxu0 0
      %1744 = vmatpush2.bf16.msra.mxu0 0
      %1745 = vmatprep.subr.bf16.mxu0 0
      %1746 = vmatpush2.bf16.msra.mxu0 0
      %1747 = vmatprep.subr.bf16.mxu0 0
      %1748 = vmatpush2.bf16.msra.mxu0 0
      %1749 = vmatprep.subr.bf16.mxu0 0
      %1750 = vmatpush2.bf16.msra.mxu0 0
      %1751 = vmatprep.subr.bf16.mxu0 0
      %1752 = vmatpush2.bf16.msra.mxu0 0
      %1753 = vmatprep.subr.bf16.mxu0 0
      %1754 = vmatpush2.bf16.msra.mxu0 0
      %1755 = vmatprep.subr.bf16.mxu0 0
      %1756 = vmatpush2.bf16.msra.mxu0 0
      %1757 = vmatprep.mubr.bf16.mxu0 0
      %1758 = vmatmul.mubr.bf16.gmra.mxu0 %v1711
      %v1759 = vpop.f32.mrf.mxu0
      %v1760 = vadd.f32 0.0, %v1759
      %v1761 = vpop.f32.mrf.mxu0
      %v1762 = vpop.f32.mrf.mxu0
      %v1763 = vadd.f32 0.0, %v1762
      %v1764 = vpop.f32.mrf.mxu0
      %1765 = vmatprep.mubr.bf16.mxu0 0
      %1766 = vmatmul.mubr.bf16.gmra.mxu0 %v1714
      %v1767 = vpop.f32.mrf.mxu0
      %v1768 = vadd.f32 0.0, %v1767
      %v1769 = vpop.f32.mrf.mxu0
      %v1770 = vpop.f32.mrf.mxu0
      %v1771 = vadd.f32 0.0, %v1770
      %v1772 = vpop.f32.mrf.mxu0
      %1773 = vmatprep.mubr.bf16.mxu0 0
      %1774 = vmatmul.mubr.bf16.gmra.mxu0 %v1717
      %v1775 = vpop.f32.mrf.mxu0
      %v1776 = vadd.f32 0.0, %v1775
      %v1777 = vpop.f32.mrf.mxu0
      %v1778 = vpop.f32.mrf.mxu0
      %v1779 = vadd.f32 0.0, %v1778
      %v1780 = vpop.f32.mrf.mxu0
      %1781 = vmatprep.mubr.bf16.mxu0 0
      %1782 = vmatmul.mubr.bf16.gmra.mxu0 %v1720
      %v1783 = vpop.f32.mrf.mxu0
      %v1784 = vadd.f32 0.0, %v1783
      %v1785 = vpop.f32.mrf.mxu0
      %v1786 = vpop.f32.mrf.mxu0
      %v1787 = vadd.f32 0.0, %v1786
      %v1788 = vpop.f32.mrf.mxu0
      %1789 = vdwg.mxu0
      %v1790 = vadd.f32 %v1689, %v1760
      %v1791 = vadd.f32 %v1690, %v1763
      %v1792 = vadd.f32 %v1691, %v1768
      %v1793 = vadd.f32 %v1692, %v1771
      %v1794 = vadd.f32 %v1693, %v1776
      %v1795 = vadd.f32 %v1694, %v1779
      %v1796 = vadd.f32 %v1695, %v1784
      %v1797 = vadd.f32 %v1696, %v1787
      %v1798 = vld [vmem:[%s977] sm:$0xff]
      %v1799 = vld [vmem:[%s977 + $0x10] sm:$0xff]
      %v1800 = vld [vmem:[%s977 + $0x20] sm:$0xff]
      %v1801 = vld [vmem:[%s977 + $0x30] sm:$0xff]
      %v1802 = vld [vmem:[%s977 + $0x40] sm:$0xff]
      %v1803 = vld [vmem:[%s977 + $0x50] sm:$0xff]
      %v1804 = vld [vmem:[%s977 + $0x60] sm:$0xff]
      %v1805 = vld [vmem:[%s977 + $0x70] sm:$0xff]
      %v1806 = vpack.c.bf16 %v1799, %v1798
      %v1807 = vpack.c.bf16 %v1801, %v1800
      %v1808 = vpack.c.bf16 %v1803, %v1802
      %v1809 = vpack.c.bf16 %v1805, %v1804
      %v1810 = vld [vmem:[%s580] sm:$0x3]
      %v1812 = vsel %vm200, %v1806, 0
      %v1815 = vsel %vm200, %v1807, 0
      %v1818 = vsel %vm200, %v1808, 0
      %v1821 = vsel %vm200, %v1809, 0
      %v1824 = vsel %vm213, %v1810, 0
      %1826 = vmatprep.subr.bf16.mxu0 0
      %1827 = vmatpush1.bf16.msra.mxu0 0
      %1828 = vmatprep.subr.bf16.mxu0 0
      %1829 = vmatpush1.bf16.msra.mxu0 0
      %1830 = vmatprep.subr.bf16.mxu0 0
      %1831 = vmatpush1.bf16.msra.mxu0 0
      %1832 = vmatprep.subr.bf16.mxu0 0
      %1833 = vmatpush1.bf16.msra.mxu0 0
      %1834 = vmatprep.subr.bf16.mxu0 0
      %1835 = vmatpush1.bf16.msra.mxu0 0
      %1836 = vmatprep.subr.bf16.mxu0 0
      %1837 = vmatpush1.bf16.msra.mxu0 0
      %1838 = vmatprep.subr.bf16.mxu0 0
      %1839 = vmatpush1.bf16.msra.mxu0 0
      %1840 = vmatprep.subr.bf16.mxu0 0
      %1841 = vmatpush1.bf16.msra.mxu0 %v1824
      %1842 = vmatprep.subr.bf16.mxu0 0
      %1843 = vmatpush2.bf16.msra.mxu0 0
      %1844 = vmatprep.subr.bf16.mxu0 0
      %1845 = vmatpush2.bf16.msra.mxu0 0
      %1846 = vmatprep.subr.bf16.mxu0 0
      %1847 = vmatpush2.bf16.msra.mxu0 0
      %1848 = vmatprep.subr.bf16.mxu0 0
      %1849 = vmatpush2.bf16.msra.mxu0 0
      %1850 = vmatprep.subr.bf16.mxu0 0
      %1851 = vmatpush2.bf16.msra.mxu0 0
      %1852 = vmatprep.subr.bf16.mxu0 0
      %1853 = vmatpush2.bf16.msra.mxu0 0
      %1854 = vmatprep.subr.bf16.mxu0 0
      %1855 = vmatpush2.bf16.msra.mxu0 0
      %1856 = vmatprep.subr.bf16.mxu0 0
      %1857 = vmatpush2.bf16.msra.mxu0 0
      %1858 = vmatprep.mubr.bf16.mxu0 0
      %1859 = vmatmul.mubr.bf16.gmra.mxu0 %v1812
      %v1860 = vpop.f32.mrf.mxu0
      %v1861 = vadd.f32 0.0, %v1860
      %v1862 = vpop.f32.mrf.mxu0
      %v1863 = vpop.f32.mrf.mxu0
      %v1864 = vadd.f32 0.0, %v1863
      %v1865 = vpop.f32.mrf.mxu0
      %1866 = vmatprep.mubr.bf16.mxu0 0
      %1867 = vmatmul.mubr.bf16.gmra.mxu0 %v1815
      %v1868 = vpop.f32.mrf.mxu0
      %v1869 = vadd.f32 0.0, %v1868
      %v1870 = vpop.f32.mrf.mxu0
      %v1871 = vpop.f32.mrf.mxu0
      %v1872 = vadd.f32 0.0, %v1871
      %v1873 = vpop.f32.mrf.mxu0
      %1874 = vmatprep.mubr.bf16.mxu0 0
      %1875 = vmatmul.mubr.bf16.gmra.mxu0 %v1818
      %v1876 = vpop.f32.mrf.mxu0
      %v1877 = vadd.f32 0.0, %v1876
      %v1878 = vpop.f32.mrf.mxu0
      %v1879 = vpop.f32.mrf.mxu0
      %v1880 = vadd.f32 0.0, %v1879
      %v1881 = vpop.f32.mrf.mxu0
      %1882 = vmatprep.mubr.bf16.mxu0 0
      %1883 = vmatmul.mubr.bf16.gmra.mxu0 %v1821
      %v1884 = vpop.f32.mrf.mxu0
      %v1885 = vadd.f32 0.0, %v1884
      %v1886 = vpop.f32.mrf.mxu0
      %v1887 = vpop.f32.mrf.mxu0
      %v1888 = vadd.f32 0.0, %v1887
      %v1889 = vpop.f32.mrf.mxu0
      %1890 = vdwg.mxu0
      %v1891 = vadd.f32 %v1790, %v1861
      %v1892 = vadd.f32 %v1791, %v1864
      %v1893 = vadd.f32 %v1792, %v1869
      %v1894 = vadd.f32 %v1793, %v1872
      %v1895 = vadd.f32 %v1794, %v1877
      %v1896 = vadd.f32 %v1795, %v1880
      %v1897 = vadd.f32 %v1796, %v1885
      %v1898 = vadd.f32 %v1797, %v1888
      %v1899 = vld [vmem:[%s977 + $0x1] sm:$0xff]
      %v1900 = vld [vmem:[%s977 + $0x11] sm:$0xff]
      %v1901 = vld [vmem:[%s977 + $0x21] sm:$0xff]
      %v1902 = vld [vmem:[%s977 + $0x31] sm:$0xff]
      %v1903 = vld [vmem:[%s977 + $0x41] sm:$0xff]
      %v1904 = vld [vmem:[%s977 + $0x51] sm:$0xff]
      %v1905 = vld [vmem:[%s977 + $0x61] sm:$0xff]
      %v1906 = vld [vmem:[%s977 + $0x71] sm:$0xff]
      %v1907 = vpack.c.bf16 %v1900, %v1899
      %v1908 = vpack.c.bf16 %v1902, %v1901
      %v1909 = vpack.c.bf16 %v1904, %v1903
      %v1910 = vpack.c.bf16 %v1906, %v1905
      %v1911 = vld [vmem:[%s682] sm:$0x3]
      %v1913 = vsel %vm200, %v1907, 0
      %v1916 = vsel %vm200, %v1908, 0
      %v1919 = vsel %vm200, %v1909, 0
      %v1922 = vsel %vm200, %v1910, 0
      %v1925 = vsel %vm213, %v1911, 0
      %1927 = vmatprep.subr.bf16.mxu0 0
      %1928 = vmatpush1.bf16.msra.mxu0 0
      %1929 = vmatprep.subr.bf16.mxu0 0
      %1930 = vmatpush1.bf16.msra.mxu0 0
      %1931 = vmatprep.subr.bf16.mxu0 0
      %1932 = vmatpush1.bf16.msra.mxu0 0
      %1933 = vmatprep.subr.bf16.mxu0 0
      %1934 = vmatpush1.bf16.msra.mxu0 0
      %1935 = vmatprep.subr.bf16.mxu0 0
      %1936 = vmatpush1.bf16.msra.mxu0 0
      %1937 = vmatprep.subr.bf16.mxu0 0
      %1938 = vmatpush1.bf16.msra.mxu0 0
      %1939 = vmatprep.subr.bf16.mxu0 0
      %1940 = vmatpush1.bf16.msra.mxu0 0
      %1941 = vmatprep.subr.bf16.mxu0 0
      %1942 = vmatpush1.bf16.msra.mxu0 %v1925
      %1943 = vmatprep.subr.bf16.mxu0 0
      %1944 = vmatpush2.bf16.msra.mxu0 0
      %1945 = vmatprep.subr.bf16.mxu0 0
      %1946 = vmatpush2.bf16.msra.mxu0 0
      %1947 = vmatprep.subr.bf16.mxu0 0
      %1948 = vmatpush2.bf16.msra.mxu0 0
      %1949 = vmatprep.subr.bf16.mxu0 0
      %1950 = vmatpush2.bf16.msra.mxu0 0
      %1951 = vmatprep.subr.bf16.mxu0 0
      %1952 = vmatpush2.bf16.msra.mxu0 0
      %1953 = vmatprep.subr.bf16.mxu0 0
      %1954 = vmatpush2.bf16.msra.mxu0 0
      %1955 = vmatprep.subr.bf16.mxu0 0
      %1956 = vmatpush2.bf16.msra.mxu0 0
      %1957 = vmatprep.subr.bf16.mxu0 0
      %1958 = vmatpush2.bf16.msra.mxu0 0
      %1959 = vmatprep.mubr.bf16.mxu0 0
      %1960 = vmatmul.mubr.bf16.gmra.mxu0 %v1913
      %v1961 = vpop.f32.mrf.mxu0
      %v1962 = vadd.f32 0.0, %v1961
      %v1963 = vpop.f32.mrf.mxu0
      %v1964 = vpop.f32.mrf.mxu0
      %v1965 = vadd.f32 0.0, %v1964
      %v1966 = vpop.f32.mrf.mxu0
      %1967 = vmatprep.mubr.bf16.mxu0 0
      %1968 = vmatmul.mubr.bf16.gmra.mxu0 %v1916
      %v1969 = vpop.f32.mrf.mxu0
      %v1970 = vadd.f32 0.0, %v1969
      %v1971 = vpop.f32.mrf.mxu0
      %v1972 = vpop.f32.mrf.mxu0
      %v1973 = vadd.f32 0.0, %v1972
      %v1974 = vpop.f32.mrf.mxu0
      %1975 = vmatprep.mubr.bf16.mxu0 0
      %1976 = vmatmul.mubr.bf16.gmra.mxu0 %v1919
      %v1977 = vpop.f32.mrf.mxu0
      %v1978 = vadd.f32 0.0, %v1977
      %v1979 = vpop.f32.mrf.mxu0
      %v1980 = vpop.f32.mrf.mxu0
      %v1981 = vadd.f32 0.0, %v1980
      %v1982 = vpop.f32.mrf.mxu0
      %1983 = vmatprep.mubr.bf16.mxu0 0
      %1984 = vmatmul.mubr.bf16.gmra.mxu0 %v1922
      %v1985 = vpop.f32.mrf.mxu0
      %v1986 = vadd.f32 0.0, %v1985
      %v1987 = vpop.f32.mrf.mxu0
      %v1988 = vpop.f32.mrf.mxu0
      %v1989 = vadd.f32 0.0, %v1988
      %v1990 = vpop.f32.mrf.mxu0
      %1991 = vdwg.mxu0
      %v1992 = vadd.f32 %v1891, %v1962
      %v1993 = vadd.f32 %v1892, %v1965
      %v1994 = vadd.f32 %v1893, %v1970
      %v1995 = vadd.f32 %v1894, %v1973
      %v1996 = vadd.f32 %v1895, %v1978
      %v1997 = vadd.f32 %v1896, %v1981
      %v1998 = vadd.f32 %v1897, %v1986
      %v1999 = vadd.f32 %v1898, %v1989
      %v2000 = vld [vmem:[%s1182] sm:$0xff]
      %v2001 = vld [vmem:[%s1182 + $0x10] sm:$0xff]
      %v2002 = vld [vmem:[%s1182 + $0x20] sm:$0xff]
      %v2003 = vld [vmem:[%s1182 + $0x30] sm:$0xff]
      %v2004 = vld [vmem:[%s1182 + $0x40] sm:$0xff]
      %v2005 = vld [vmem:[%s1182 + $0x50] sm:$0xff]
      %v2006 = vld [vmem:[%s1182 + $0x60] sm:$0xff]
      %v2007 = vld [vmem:[%s1182 + $0x70] sm:$0xff]
      %v2008 = vpack.c.bf16 %v2001, %v2000
      %v2009 = vpack.c.bf16 %v2003, %v2002
      %v2010 = vpack.c.bf16 %v2005, %v2004
      %v2011 = vpack.c.bf16 %v2007, %v2006
      %v2012 = vld [vmem:[%s785] sm:$0x3]
      %v2014 = vsel %vm200, %v2008, 0
      %v2017 = vsel %vm200, %v2009, 0
      %v2020 = vsel %vm200, %v2010, 0
      %v2023 = vsel %vm200, %v2011, 0
      %v2026 = vsel %vm213, %v2012, 0
      %2028 = vmatprep.subr.bf16.mxu0 0
      %2029 = vmatpush1.bf16.msra.mxu0 0
      %2030 = vmatprep.subr.bf16.mxu0 0
      %2031 = vmatpush1.bf16.msra.mxu0 0
      %2032 = vmatprep.subr.bf16.mxu0 0
      %2033 = vmatpush1.bf16.msra.mxu0 0
      %2034 = vmatprep.subr.bf16.mxu0 0
      %2035 = vmatpush1.bf16.msra.mxu0 0
      %2036 = vmatprep.subr.bf16.mxu0 0
      %2037 = vmatpush1.bf16.msra.mxu0 0
      %2038 = vmatprep.subr.bf16.mxu0 0
      %2039 = vmatpush1.bf16.msra.mxu0 0
      %2040 = vmatprep.subr.bf16.mxu0 0
      %2041 = vmatpush1.bf16.msra.mxu0 0
      %2042 = vmatprep.subr.bf16.mxu0 0
      %2043 = vmatpush1.bf16.msra.mxu0 %v2026
      %2044 = vmatprep.subr.bf16.mxu0 0
      %2045 = vmatpush2.bf16.msra.mxu0 0
      %2046 = vmatprep.subr.bf16.mxu0 0
      %2047 = vmatpush2.bf16.msra.mxu0 0
      %2048 = vmatprep.subr.bf16.mxu0 0
      %2049 = vmatpush2.bf16.msra.mxu0 0
      %2050 = vmatprep.subr.bf16.mxu0 0
      %2051 = vmatpush2.bf16.msra.mxu0 0
      %2052 = vmatprep.subr.bf16.mxu0 0
      %2053 = vmatpush2.bf16.msra.mxu0 0
      %2054 = vmatprep.subr.bf16.mxu0 0
      %2055 = vmatpush2.bf16.msra.mxu0 0
      %2056 = vmatprep.subr.bf16.mxu0 0
      %2057 = vmatpush2.bf16.msra.mxu0 0
      %2058 = vmatprep.subr.bf16.mxu0 0
      %2059 = vmatpush2.bf16.msra.mxu0 0
      %2060 = vmatprep.mubr.bf16.mxu0 0
      %2061 = vmatmul.mubr.bf16.gmra.mxu0 %v2014
      %v2062 = vpop.f32.mrf.mxu0
      %v2063 = vadd.f32 0.0, %v2062
      %v2064 = vpop.f32.mrf.mxu0
      %v2065 = vpop.f32.mrf.mxu0
      %v2066 = vadd.f32 0.0, %v2065
      %v2067 = vpop.f32.mrf.mxu0
      %2068 = vmatprep.mubr.bf16.mxu0 0
      %2069 = vmatmul.mubr.bf16.gmra.mxu0 %v2017
      %v2070 = vpop.f32.mrf.mxu0
      %v2071 = vadd.f32 0.0, %v2070
      %v2072 = vpop.f32.mrf.mxu0
      %v2073 = vpop.f32.mrf.mxu0
      %v2074 = vadd.f32 0.0, %v2073
      %v2075 = vpop.f32.mrf.mxu0
      %2076 = vmatprep.mubr.bf16.mxu0 0
      %2077 = vmatmul.mubr.bf16.gmra.mxu0 %v2020
      %v2078 = vpop.f32.mrf.mxu0
      %v2079 = vadd.f32 0.0, %v2078
      %v2080 = vpop.f32.mrf.mxu0
      %v2081 = vpop.f32.mrf.mxu0
      %v2082 = vadd.f32 0.0, %v2081
      %v2083 = vpop.f32.mrf.mxu0
      %2084 = vmatprep.mubr.bf16.mxu0 0
      %2085 = vmatmul.mubr.bf16.gmra.mxu0 %v2023
      %v2086 = vpop.f32.mrf.mxu0
      %v2087 = vadd.f32 0.0, %v2086
      %v2088 = vpop.f32.mrf.mxu0
      %v2089 = vpop.f32.mrf.mxu0
      %v2090 = vadd.f32 0.0, %v2089
      %v2091 = vpop.f32.mrf.mxu0
      %2092 = vdwg.mxu0
      %v2093 = vadd.f32 %v1992, %v2063
      %v2094 = vadd.f32 %v1993, %v2066
      %v2095 = vadd.f32 %v1994, %v2071
      %v2096 = vadd.f32 %v1995, %v2074
      %v2097 = vadd.f32 %v1996, %v2079
      %v2098 = vadd.f32 %v1997, %v2082
      %v2099 = vadd.f32 %v1998, %v2087
      %v2100 = vadd.f32 %v1999, %v2090
      %v2101 = vld [vmem:[%s1182 + $0x1] sm:$0xff]
      %v2102 = vld [vmem:[%s1182 + $0x11] sm:$0xff]
      %v2103 = vld [vmem:[%s1182 + $0x21] sm:$0xff]
      %v2104 = vld [vmem:[%s1182 + $0x31] sm:$0xff]
      %v2105 = vld [vmem:[%s1182 + $0x41] sm:$0xff]
      %v2106 = vld [vmem:[%s1182 + $0x51] sm:$0xff]
      %v2107 = vld [vmem:[%s1182 + $0x61] sm:$0xff]
      %v2108 = vld [vmem:[%s1182 + $0x71] sm:$0xff]
      %v2109 = vpack.c.bf16 %v2102, %v2101
      %v2110 = vpack.c.bf16 %v2104, %v2103
      %v2111 = vpack.c.bf16 %v2106, %v2105
      %v2112 = vpack.c.bf16 %v2108, %v2107
      %v2113 = vld [vmem:[%s887] sm:$0x3]
      %v2115 = vsel %vm200, %v2109, 0
      %v2118 = vsel %vm200, %v2110, 0
      %v2121 = vsel %vm200, %v2111, 0
      %v2124 = vsel %vm200, %v2112, 0
      %v2127 = vsel %vm213, %v2113, 0
      %2129 = vmatprep.subr.bf16.mxu0 0
      %2130 = vmatpush1.bf16.msra.mxu0 0
      %2131 = vmatprep.subr.bf16.mxu0 0
      %2132 = vmatpush1.bf16.msra.mxu0 0
      %2133 = vmatprep.subr.bf16.mxu0 0
      %2134 = vmatpush1.bf16.msra.mxu0 0
      %2135 = vmatprep.subr.bf16.mxu0 0
      %2136 = vmatpush1.bf16.msra.mxu0 0
      %2137 = vmatprep.subr.bf16.mxu0 0
      %2138 = vmatpush1.bf16.msra.mxu0 0
      %2139 = vmatprep.subr.bf16.mxu0 0
      %2140 = vmatpush1.bf16.msra.mxu0 0
      %2141 = vmatprep.subr.bf16.mxu0 0
      %2142 = vmatpush1.bf16.msra.mxu0 0
      %2143 = vmatprep.subr.bf16.mxu0 0
      %2144 = vmatpush1.bf16.msra.mxu0 %v2127
      %2145 = vmatprep.subr.bf16.mxu0 0
      %2146 = vmatpush2.bf16.msra.mxu0 0
      %2147 = vmatprep.subr.bf16.mxu0 0
      %2148 = vmatpush2.bf16.msra.mxu0 0
      %2149 = vmatprep.subr.bf16.mxu0 0
      %2150 = vmatpush2.bf16.msra.mxu0 0
      %2151 = vmatprep.subr.bf16.mxu0 0
      %2152 = vmatpush2.bf16.msra.mxu0 0
      %2153 = vmatprep.subr.bf16.mxu0 0
      %2154 = vmatpush2.bf16.msra.mxu0 0
      %2155 = vmatprep.subr.bf16.mxu0 0
      %2156 = vmatpush2.bf16.msra.mxu0 0
      %2157 = vmatprep.subr.bf16.mxu0 0
      %2158 = vmatpush2.bf16.msra.mxu0 0
      %2159 = vmatprep.subr.bf16.mxu0 0
      %2160 = vmatpush2.bf16.msra.mxu0 0
      %2161 = vmatprep.mubr.bf16.mxu0 0
      %2162 = vmatmul.mubr.bf16.gmra.mxu0 %v2115
      %v2163 = vpop.f32.mrf.mxu0
      %v2164 = vadd.f32 0.0, %v2163
      %v2165 = vpop.f32.mrf.mxu0
      %v2166 = vpop.f32.mrf.mxu0
      %v2167 = vadd.f32 0.0, %v2166
      %v2168 = vpop.f32.mrf.mxu0
      %2169 = vmatprep.mubr.bf16.mxu0 0
      %2170 = vmatmul.mubr.bf16.gmra.mxu0 %v2118
      %v2171 = vpop.f32.mrf.mxu0
      %v2172 = vadd.f32 0.0, %v2171
      %v2173 = vpop.f32.mrf.mxu0
      %v2174 = vpop.f32.mrf.mxu0
      %v2175 = vadd.f32 0.0, %v2174
      %v2176 = vpop.f32.mrf.mxu0
      %2177 = vmatprep.mubr.bf16.mxu0 0
      %2178 = vmatmul.mubr.bf16.gmra.mxu0 %v2121
      %v2179 = vpop.f32.mrf.mxu0
      %v2180 = vadd.f32 0.0, %v2179
      %v2181 = vpop.f32.mrf.mxu0
      %v2182 = vpop.f32.mrf.mxu0
      %v2183 = vadd.f32 0.0, %v2182
      %v2184 = vpop.f32.mrf.mxu0
      %2185 = vmatprep.mubr.bf16.mxu0 0
      %2186 = vmatmul.mubr.bf16.gmra.mxu0 %v2124
      %v2187 = vpop.f32.mrf.mxu0
      %v2188 = vadd.f32 0.0, %v2187
      %v2189 = vpop.f32.mrf.mxu0
      %v2190 = vpop.f32.mrf.mxu0
      %v2191 = vadd.f32 0.0, %v2190
      %v2192 = vpop.f32.mrf.mxu0
      %2193 = vdwg.mxu0
      %v2194 = vadd.f32 %v2093, %v2164
      %v2195 = vadd.f32 %v2094, %v2167
      %v2196 = vadd.f32 %v2095, %v2172
      %v2197 = vadd.f32 %v2096, %v2175
      %v2198 = vadd.f32 %v2097, %v2180
      %v2199 = vadd.f32 %v2098, %v2183
      %v2200 = vadd.f32 %v2099, %v2188
      %v2201 = vadd.f32 %v2100, %v2191
      %s2202 = scalar_lea.vmem %s165, 432
      %v2203 = vld [vmem:[%s2202] sm:$0xff]
      %v2204 = vld [vmem:[%s2202 + $0x10] sm:$0xff]
      %v2205 = vld [vmem:[%s2202 + $0x20] sm:$0xff]
      %v2206 = vld [vmem:[%s2202 + $0x30] sm:$0xff]
      %v2207 = vld [vmem:[%s2202 + $0x40] sm:$0xff]
      %v2208 = vld [vmem:[%s2202 + $0x50] sm:$0xff]
      %v2209 = vld [vmem:[%s2202 + $0x60] sm:$0xff]
      %v2210 = vld [vmem:[%s2202 + $0x70] sm:$0xff]
      %v2211 = vpack.c.bf16 %v2204, %v2203
      %v2212 = vpack.c.bf16 %v2206, %v2205
      %v2213 = vpack.c.bf16 %v2208, %v2207
      %v2214 = vpack.c.bf16 %v2210, %v2209
      %v2215 = vld [vmem:[%s990] sm:$0x3]
      %v2217 = vsel %vm200, %v2211, 0
      %v2220 = vsel %vm200, %v2212, 0
      %v2223 = vsel %vm200, %v2213, 0
      %v2226 = vsel %vm200, %v2214, 0
      %v2229 = vsel %vm213, %v2215, 0
      %2231 = vmatprep.subr.bf16.mxu0 0
      %2232 = vmatpush1.bf16.msra.mxu0 0
      %2233 = vmatprep.subr.bf16.mxu0 0
      %2234 = vmatpush1.bf16.msra.mxu0 0
      %2235 = vmatprep.subr.bf16.mxu0 0
      %2236 = vmatpush1.bf16.msra.mxu0 0
      %2237 = vmatprep.subr.bf16.mxu0 0
      %2238 = vmatpush1.bf16.msra.mxu0 0
      %2239 = vmatprep.subr.bf16.mxu0 0
      %2240 = vmatpush1.bf16.msra.mxu0 0
      %2241 = vmatprep.subr.bf16.mxu0 0
      %2242 = vmatpush1.bf16.msra.mxu0 0
      %2243 = vmatprep.subr.bf16.mxu0 0
      %2244 = vmatpush1.bf16.msra.mxu0 0
      %2245 = vmatprep.subr.bf16.mxu0 0
      %2246 = vmatpush1.bf16.msra.mxu0 %v2229
      %2247 = vmatprep.subr.bf16.mxu0 0
      %2248 = vmatpush2.bf16.msra.mxu0 0
      %2249 = vmatprep.subr.bf16.mxu0 0
      %2250 = vmatpush2.bf16.msra.mxu0 0
      %2251 = vmatprep.subr.bf16.mxu0 0
      %2252 = vmatpush2.bf16.msra.mxu0 0
      %2253 = vmatprep.subr.bf16.mxu0 0
      %2254 = vmatpush2.bf16.msra.mxu0 0
      %2255 = vmatprep.subr.bf16.mxu0 0
      %2256 = vmatpush2.bf16.msra.mxu0 0
      %2257 = vmatprep.subr.bf16.mxu0 0
      %2258 = vmatpush2.bf16.msra.mxu0 0
      %2259 = vmatprep.subr.bf16.mxu0 0
      %2260 = vmatpush2.bf16.msra.mxu0 0
      %2261 = vmatprep.subr.bf16.mxu0 0
      %2262 = vmatpush2.bf16.msra.mxu0 0
      %2263 = vmatprep.mubr.bf16.mxu0 0
      %2264 = vmatmul.mubr.bf16.gmra.mxu0 %v2217
      %v2265 = vpop.f32.mrf.mxu0
      %v2266 = vadd.f32 0.0, %v2265
      %v2267 = vpop.f32.mrf.mxu0
      %v2268 = vpop.f32.mrf.mxu0
      %v2269 = vadd.f32 0.0, %v2268
      %v2270 = vpop.f32.mrf.mxu0
      %2271 = vmatprep.mubr.bf16.mxu0 0
      %2272 = vmatmul.mubr.bf16.gmra.mxu0 %v2220
      %v2273 = vpop.f32.mrf.mxu0
      %v2274 = vadd.f32 0.0, %v2273
      %v2275 = vpop.f32.mrf.mxu0
      %v2276 = vpop.f32.mrf.mxu0
      %v2277 = vadd.f32 0.0, %v2276
      %v2278 = vpop.f32.mrf.mxu0
      %2279 = vmatprep.mubr.bf16.mxu0 0
      %2280 = vmatmul.mubr.bf16.gmra.mxu0 %v2223
      %v2281 = vpop.f32.mrf.mxu0
      %v2282 = vadd.f32 0.0, %v2281
      %v2283 = vpop.f32.mrf.mxu0
      %v2284 = vpop.f32.mrf.mxu0
      %v2285 = vadd.f32 0.0, %v2284
      %v2286 = vpop.f32.mrf.mxu0
      %2287 = vmatprep.mubr.bf16.mxu0 0
      %2288 = vmatmul.mubr.bf16.gmra.mxu0 %v2226
      %v2289 = vpop.f32.mrf.mxu0
      %v2290 = vadd.f32 0.0, %v2289
      %v2291 = vpop.f32.mrf.mxu0
      %v2292 = vpop.f32.mrf.mxu0
      %v2293 = vadd.f32 0.0, %v2292
      %v2294 = vpop.f32.mrf.mxu0
      %2295 = vdwg.mxu0
      %v2296 = vadd.f32 %v2194, %v2266
      %v2297 = vadd.f32 %v2195, %v2269
      %v2298 = vadd.f32 %v2196, %v2274
      %v2299 = vadd.f32 %v2197, %v2277
      %v2300 = vadd.f32 %v2198, %v2282
      %v2301 = vadd.f32 %v2199, %v2285
      %v2302 = vadd.f32 %v2200, %v2290
      %v2303 = vadd.f32 %v2201, %v2293
      %v2304 = vld [vmem:[%s2202 + $0x1] sm:$0xff]
      %v2305 = vld [vmem:[%s2202 + $0x11] sm:$0xff]
      %v2306 = vld [vmem:[%s2202 + $0x21] sm:$0xff]
      %v2307 = vld [vmem:[%s2202 + $0x31] sm:$0xff]
      %v2308 = vld [vmem:[%s2202 + $0x41] sm:$0xff]
      %v2309 = vld [vmem:[%s2202 + $0x51] sm:$0xff]
      %v2310 = vld [vmem:[%s2202 + $0x61] sm:$0xff]
      %v2311 = vld [vmem:[%s2202 + $0x71] sm:$0xff]
      %v2312 = vpack.c.bf16 %v2305, %v2304
      %v2313 = vpack.c.bf16 %v2307, %v2306
      %v2314 = vpack.c.bf16 %v2309, %v2308
      %v2315 = vpack.c.bf16 %v2311, %v2310
      %v2316 = vld [vmem:[%s1092] sm:$0x3]
      %v2318 = vsel %vm200, %v2312, 0
      %v2321 = vsel %vm200, %v2313, 0
      %v2324 = vsel %vm200, %v2314, 0
      %v2327 = vsel %vm200, %v2315, 0
      %v2330 = vsel %vm213, %v2316, 0
      %2332 = vmatprep.subr.bf16.mxu0 0
      %2333 = vmatpush1.bf16.msra.mxu0 0
      %2334 = vmatprep.subr.bf16.mxu0 0
      %2335 = vmatpush1.bf16.msra.mxu0 0
      %2336 = vmatprep.subr.bf16.mxu0 0
      %2337 = vmatpush1.bf16.msra.mxu0 0
      %2338 = vmatprep.subr.bf16.mxu0 0
      %2339 = vmatpush1.bf16.msra.mxu0 0
      %2340 = vmatprep.subr.bf16.mxu0 0
      %2341 = vmatpush1.bf16.msra.mxu0 0
      %2342 = vmatprep.subr.bf16.mxu0 0
      %2343 = vmatpush1.bf16.msra.mxu0 0
      %2344 = vmatprep.subr.bf16.mxu0 0
      %2345 = vmatpush1.bf16.msra.mxu0 0
      %2346 = vmatprep.subr.bf16.mxu0 0
      %2347 = vmatpush1.bf16.msra.mxu0 %v2330
      %2348 = vmatprep.subr.bf16.mxu0 0
      %2349 = vmatpush2.bf16.msra.mxu0 0
      %2350 = vmatprep.subr.bf16.mxu0 0
      %2351 = vmatpush2.bf16.msra.mxu0 0
      %2352 = vmatprep.subr.bf16.mxu0 0
      %2353 = vmatpush2.bf16.msra.mxu0 0
      %2354 = vmatprep.subr.bf16.mxu0 0
      %2355 = vmatpush2.bf16.msra.mxu0 0
      %2356 = vmatprep.subr.bf16.mxu0 0
      %2357 = vmatpush2.bf16.msra.mxu0 0
      %2358 = vmatprep.subr.bf16.mxu0 0
      %2359 = vmatpush2.bf16.msra.mxu0 0
      %2360 = vmatprep.subr.bf16.mxu0 0
      %2361 = vmatpush2.bf16.msra.mxu0 0
      %2362 = vmatprep.subr.bf16.mxu0 0
      %2363 = vmatpush2.bf16.msra.mxu0 0
      %2364 = vmatprep.mubr.bf16.mxu0 0
      %2365 = vmatmul.mubr.bf16.gmra.mxu0 %v2318
      %v2366 = vpop.f32.mrf.mxu0
      %v2367 = vadd.f32 0.0, %v2366
      %v2368 = vpop.f32.mrf.mxu0
      %v2369 = vpop.f32.mrf.mxu0
      %v2370 = vadd.f32 0.0, %v2369
      %v2371 = vpop.f32.mrf.mxu0
      %2372 = vmatprep.mubr.bf16.mxu0 0
      %2373 = vmatmul.mubr.bf16.gmra.mxu0 %v2321
      %v2374 = vpop.f32.mrf.mxu0
      %v2375 = vadd.f32 0.0, %v2374
      %v2376 = vpop.f32.mrf.mxu0
      %v2377 = vpop.f32.mrf.mxu0
      %v2378 = vadd.f32 0.0, %v2377
      %v2379 = vpop.f32.mrf.mxu0
      %2380 = vmatprep.mubr.bf16.mxu0 0
      %2381 = vmatmul.mubr.bf16.gmra.mxu0 %v2324
      %v2382 = vpop.f32.mrf.mxu0
      %v2383 = vadd.f32 0.0, %v2382
      %v2384 = vpop.f32.mrf.mxu0
      %v2385 = vpop.f32.mrf.mxu0
      %v2386 = vadd.f32 0.0, %v2385
      %v2387 = vpop.f32.mrf.mxu0
      %2388 = vmatprep.mubr.bf16.mxu0 0
      %2389 = vmatmul.mubr.bf16.gmra.mxu0 %v2327
      %v2390 = vpop.f32.mrf.mxu0
      %v2391 = vadd.f32 0.0, %v2390
      %v2392 = vpop.f32.mrf.mxu0
      %v2393 = vpop.f32.mrf.mxu0
      %v2394 = vadd.f32 0.0, %v2393
      %v2395 = vpop.f32.mrf.mxu0
      %2396 = vdwg.mxu0
      %v2397 = vadd.f32 %v2296, %v2367
      %v2398 = vadd.f32 %v2297, %v2370
      %v2399 = vadd.f32 %v2298, %v2375
      %v2400 = vadd.f32 %v2299, %v2378
      %v2401 = vadd.f32 %v2300, %v2383
      %v2402 = vadd.f32 %v2301, %v2386
      %v2403 = vadd.f32 %v2302, %v2391
      %v2404 = vadd.f32 %v2303, %v2394
      %s2405 = scalar_lea.vmem %s165, 448
      %v2406 = vld [vmem:[%s2405] sm:$0xff]
      %v2407 = vld [vmem:[%s2405 + $0x10] sm:$0xff]
      %v2408 = vld [vmem:[%s2405 + $0x20] sm:$0xff]
      %v2409 = vld [vmem:[%s2405 + $0x30] sm:$0xff]
      %v2410 = vld [vmem:[%s2405 + $0x40] sm:$0xff]
      %v2411 = vld [vmem:[%s2405 + $0x50] sm:$0xff]
      %v2412 = vld [vmem:[%s2405 + $0x60] sm:$0xff]
      %v2413 = vld [vmem:[%s2405 + $0x70] sm:$0xff]
      %v2414 = vpack.c.bf16 %v2407, %v2406
      %v2415 = vpack.c.bf16 %v2409, %v2408
      %v2416 = vpack.c.bf16 %v2411, %v2410
      %v2417 = vpack.c.bf16 %v2413, %v2412
      %v2418 = vld [vmem:[%s1195] sm:$0x3]
      %v2420 = vsel %vm200, %v2414, 0
      %v2423 = vsel %vm200, %v2415, 0
      %v2426 = vsel %vm200, %v2416, 0
      %v2429 = vsel %vm200, %v2417, 0
      %v2432 = vsel %vm213, %v2418, 0
      %2434 = vmatprep.subr.bf16.mxu0 0
      %2435 = vmatpush1.bf16.msra.mxu0 0
      %2436 = vmatprep.subr.bf16.mxu0 0
      %2437 = vmatpush1.bf16.msra.mxu0 0
      %2438 = vmatprep.subr.bf16.mxu0 0
      %2439 = vmatpush1.bf16.msra.mxu0 0
      %2440 = vmatprep.subr.bf16.mxu0 0
      %2441 = vmatpush1.bf16.msra.mxu0 0
      %2442 = vmatprep.subr.bf16.mxu0 0
      %2443 = vmatpush1.bf16.msra.mxu0 0
      %2444 = vmatprep.subr.bf16.mxu0 0
      %2445 = vmatpush1.bf16.msra.mxu0 0
      %2446 = vmatprep.subr.bf16.mxu0 0
      %2447 = vmatpush1.bf16.msra.mxu0 0
      %2448 = vmatprep.subr.bf16.mxu0 0
      %2449 = vmatpush1.bf16.msra.mxu0 %v2432
      %2450 = vmatprep.subr.bf16.mxu0 0
      %2451 = vmatpush2.bf16.msra.mxu0 0
      %2452 = vmatprep.subr.bf16.mxu0 0
      %2453 = vmatpush2.bf16.msra.mxu0 0
      %2454 = vmatprep.subr.bf16.mxu0 0
      %2455 = vmatpush2.bf16.msra.mxu0 0
      %2456 = vmatprep.subr.bf16.mxu0 0
      %2457 = vmatpush2.bf16.msra.mxu0 0
      %2458 = vmatprep.subr.bf16.mxu0 0
      %2459 = vmatpush2.bf16.msra.mxu0 0
      %2460 = vmatprep.subr.bf16.mxu0 0
      %2461 = vmatpush2.bf16.msra.mxu0 0
      %2462 = vmatprep.subr.bf16.mxu0 0
      %2463 = vmatpush2.bf16.msra.mxu0 0
      %2464 = vmatprep.subr.bf16.mxu0 0
      %2465 = vmatpush2.bf16.msra.mxu0 0
      %2466 = vmatprep.mubr.bf16.mxu0 0
      %2467 = vmatmul.mubr.bf16.gmra.mxu0 %v2420
      %v2468 = vpop.f32.mrf.mxu0
      %v2469 = vadd.f32 0.0, %v2468
      %v2470 = vpop.f32.mrf.mxu0
      %v2471 = vpop.f32.mrf.mxu0
      %v2472 = vadd.f32 0.0, %v2471
      %v2473 = vpop.f32.mrf.mxu0
      %2474 = vmatprep.mubr.bf16.mxu0 0
      %2475 = vmatmul.mubr.bf16.gmra.mxu0 %v2423
      %v2476 = vpop.f32.mrf.mxu0
      %v2477 = vadd.f32 0.0, %v2476
      %v2478 = vpop.f32.mrf.mxu0
      %v2479 = vpop.f32.mrf.mxu0
      %v2480 = vadd.f32 0.0, %v2479
      %v2481 = vpop.f32.mrf.mxu0
      %2482 = vmatprep.mubr.bf16.mxu0 0
      %2483 = vmatmul.mubr.bf16.gmra.mxu0 %v2426
      %v2484 = vpop.f32.mrf.mxu0
      %v2485 = vadd.f32 0.0, %v2484
      %v2486 = vpop.f32.mrf.mxu0
      %v2487 = vpop.f32.mrf.mxu0
      %v2488 = vadd.f32 0.0, %v2487
      %v2489 = vpop.f32.mrf.mxu0
      %2490 = vmatprep.mubr.bf16.mxu0 0
      %2491 = vmatmul.mubr.bf16.gmra.mxu0 %v2429
      %v2492 = vpop.f32.mrf.mxu0
      %v2493 = vadd.f32 0.0, %v2492
      %v2494 = vpop.f32.mrf.mxu0
      %v2495 = vpop.f32.mrf.mxu0
      %v2496 = vadd.f32 0.0, %v2495
      %v2497 = vpop.f32.mrf.mxu0
      %2498 = vdwg.mxu0
      %v2499 = vadd.f32 %v2397, %v2469
      %v2500 = vadd.f32 %v2398, %v2472
      %v2501 = vadd.f32 %v2399, %v2477
      %v2502 = vadd.f32 %v2400, %v2480
      %v2503 = vadd.f32 %v2401, %v2485
      %v2504 = vadd.f32 %v2402, %v2488
      %v2505 = vadd.f32 %v2403, %v2493
      %v2506 = vadd.f32 %v2404, %v2496
      %v2507 = vld [vmem:[%s2405 + $0x1] sm:$0xff]
      %v2508 = vld [vmem:[%s2405 + $0x11] sm:$0xff]
      %v2509 = vld [vmem:[%s2405 + $0x21] sm:$0xff]
      %v2510 = vld [vmem:[%s2405 + $0x31] sm:$0xff]
      %v2511 = vld [vmem:[%s2405 + $0x41] sm:$0xff]
      %v2512 = vld [vmem:[%s2405 + $0x51] sm:$0xff]
      %v2513 = vld [vmem:[%s2405 + $0x61] sm:$0xff]
      %v2514 = vld [vmem:[%s2405 + $0x71] sm:$0xff]
      %v2515 = vpack.c.bf16 %v2508, %v2507
      %v2516 = vpack.c.bf16 %v2510, %v2509
      %v2517 = vpack.c.bf16 %v2512, %v2511
      %v2518 = vpack.c.bf16 %v2514, %v2513
      %v2519 = vld [vmem:[%s1297] sm:$0x3]
      %v2521 = vsel %vm200, %v2515, 0
      %v2524 = vsel %vm200, %v2516, 0
      %v2527 = vsel %vm200, %v2517, 0
      %v2530 = vsel %vm200, %v2518, 0
      %v2533 = vsel %vm213, %v2519, 0
      %2535 = vmatprep.subr.bf16.mxu0 0
      %2536 = vmatpush1.bf16.msra.mxu0 0
      %2537 = vmatprep.subr.bf16.mxu0 0
      %2538 = vmatpush1.bf16.msra.mxu0 0
      %2539 = vmatprep.subr.bf16.mxu0 0
      %2540 = vmatpush1.bf16.msra.mxu0 0
      %2541 = vmatprep.subr.bf16.mxu0 0
      %2542 = vmatpush1.bf16.msra.mxu0 0
      %2543 = vmatprep.subr.bf16.mxu0 0
      %2544 = vmatpush1.bf16.msra.mxu0 0
      %2545 = vmatprep.subr.bf16.mxu0 0
      %2546 = vmatpush1.bf16.msra.mxu0 0
      %2547 = vmatprep.subr.bf16.mxu0 0
      %2548 = vmatpush1.bf16.msra.mxu0 0
      %2549 = vmatprep.subr.bf16.mxu0 0
      %2550 = vmatpush1.bf16.msra.mxu0 %v2533
      %2551 = vmatprep.subr.bf16.mxu0 0
      %2552 = vmatpush2.bf16.msra.mxu0 0
      %2553 = vmatprep.subr.bf16.mxu0 0
      %2554 = vmatpush2.bf16.msra.mxu0 0
      %2555 = vmatprep.subr.bf16.mxu0 0
      %2556 = vmatpush2.bf16.msra.mxu0 0
      %2557 = vmatprep.subr.bf16.mxu0 0
      %2558 = vmatpush2.bf16.msra.mxu0 0
      %2559 = vmatprep.subr.bf16.mxu0 0
      %2560 = vmatpush2.bf16.msra.mxu0 0
      %2561 = vmatprep.subr.bf16.mxu0 0
      %2562 = vmatpush2.bf16.msra.mxu0 0
      %2563 = vmatprep.subr.bf16.mxu0 0
      %2564 = vmatpush2.bf16.msra.mxu0 0
      %2565 = vmatprep.subr.bf16.mxu0 0
      %2566 = vmatpush2.bf16.msra.mxu0 0
      %2567 = vmatprep.mubr.bf16.mxu0 0
      %2568 = vmatmul.mubr.bf16.gmra.mxu0 %v2521
      %v2569 = vpop.f32.mrf.mxu0
      %v2570 = vadd.f32 0.0, %v2569
      %v2571 = vpop.f32.mrf.mxu0
      %v2572 = vpop.f32.mrf.mxu0
      %v2573 = vadd.f32 0.0, %v2572
      %v2574 = vpop.f32.mrf.mxu0
      %2575 = vmatprep.mubr.bf16.mxu0 0
      %2576 = vmatmul.mubr.bf16.gmra.mxu0 %v2524
      %v2577 = vpop.f32.mrf.mxu0
      %v2578 = vadd.f32 0.0, %v2577
      %v2579 = vpop.f32.mrf.mxu0
      %v2580 = vpop.f32.mrf.mxu0
      %v2581 = vadd.f32 0.0, %v2580
      %v2582 = vpop.f32.mrf.mxu0
      %2583 = vmatprep.mubr.bf16.mxu0 0
      %2584 = vmatmul.mubr.bf16.gmra.mxu0 %v2527
      %v2585 = vpop.f32.mrf.mxu0
      %v2586 = vadd.f32 0.0, %v2585
      %v2587 = vpop.f32.mrf.mxu0
      %v2588 = vpop.f32.mrf.mxu0
      %v2589 = vadd.f32 0.0, %v2588
      %v2590 = vpop.f32.mrf.mxu0
      %2591 = vmatprep.mubr.bf16.mxu0 0
      %2592 = vmatmul.mubr.bf16.gmra.mxu0 %v2530
      %v2593 = vpop.f32.mrf.mxu0
      %v2594 = vadd.f32 0.0, %v2593
      %v2595 = vpop.f32.mrf.mxu0
      %v2596 = vpop.f32.mrf.mxu0
      %v2597 = vadd.f32 0.0, %v2596
      %v2598 = vpop.f32.mrf.mxu0
      %2599 = vdwg.mxu0
      %v2600 = vadd.f32 %v2499, %v2570
      %v2601 = vadd.f32 %v2500, %v2573
      %v2602 = vadd.f32 %v2501, %v2578
      %v2603 = vadd.f32 %v2502, %v2581
      %v2604 = vadd.f32 %v2503, %v2586
      %v2605 = vadd.f32 %v2504, %v2589
      %v2606 = vadd.f32 %v2505, %v2594
      %v2607 = vadd.f32 %v2506, %v2597
      %v2608 = vadd.f32 %v2600, %v1391
      %v2609 = vadd.f32 %v2601, %v1391
      %v2610 = vadd.f32 %v2602, %v1391
      %v2611 = vadd.f32 %v2603, %v1391
      %v2612 = vadd.f32 %v2604, %v1391
      %v2613 = vadd.f32 %v2605, %v1391
      %v2614 = vadd.f32 %v2606, %v1391
      %v2615 = vadd.f32 %v2607, %v1391
      %s2616 = scalar_lea.vmem %s170, 64
      %2617 = vst.msk [vmem:[%s2616] sm:$0xff] %vm1401, %v2608
      %2618 = vst.msk [vmem:[%s2616 + $0x8] sm:$0xff] %vm1401, %v2609
      %2619 = vst.msk [vmem:[%s2616 + $0x10] sm:$0xff] %vm1401, %v2610
      %2620 = vst.msk [vmem:[%s2616 + $0x18] sm:$0xff] %vm1401, %v2611
      %2621 = vst.msk [vmem:[%s2616 + $0x20] sm:$0xff] %vm1401, %v2612
      %2622 = vst.msk [vmem:[%s2616 + $0x28] sm:$0xff] %vm1401, %v2613
      %2623 = vst.msk [vmem:[%s2616 + $0x30] sm:$0xff] %vm1401, %v2614
      %2624 = vst.msk [vmem:[%s2616 + $0x38] sm:$0xff] %vm1401, %v2615
      %v2625 = vld [vmem:[%s977] sm:$0xff]
      %v2626 = vld [vmem:[%s977 + $0x10] sm:$0xff]
      %v2627 = vld [vmem:[%s977 + $0x20] sm:$0xff]
      %v2628 = vld [vmem:[%s977 + $0x30] sm:$0xff]
      %v2629 = vld [vmem:[%s977 + $0x40] sm:$0xff]
      %v2630 = vld [vmem:[%s977 + $0x50] sm:$0xff]
      %v2631 = vld [vmem:[%s977 + $0x60] sm:$0xff]
      %v2632 = vld [vmem:[%s977 + $0x70] sm:$0xff]
      %v2633 = vpack.c.bf16 %v2626, %v2625
      %v2634 = vpack.c.bf16 %v2628, %v2627
      %v2635 = vpack.c.bf16 %v2630, %v2629
      %v2636 = vpack.c.bf16 %v2632, %v2631
      %v2637 = vld [vmem:[%s1] sm:$0x3]
      %v2638 = vld [vmem:[%s977 + $0x1] sm:$0xff]
      %v2639 = vld [vmem:[%s977 + $0x11] sm:$0xff]
      %v2640 = vld [vmem:[%s977 + $0x21] sm:$0xff]
      %v2641 = vld [vmem:[%s977 + $0x31] sm:$0xff]
      %v2642 = vld [vmem:[%s977 + $0x41] sm:$0xff]
      %v2643 = vld [vmem:[%s977 + $0x51] sm:$0xff]
      %v2644 = vld [vmem:[%s977 + $0x61] sm:$0xff]
      %v2645 = vld [vmem:[%s977 + $0x71] sm:$0xff]
      %v2646 = vpack.c.bf16 %v2639, %v2638
      %v2647 = vpack.c.bf16 %v2641, %v2640
      %v2648 = vpack.c.bf16 %v2643, %v2642
      %v2649 = vpack.c.bf16 %v2645, %v2644
      %v2650 = vld [vmem:[%s198] sm:$0x3]
      %v2652 = vsel %vm200, %v2646, 0
      %v2655 = vsel %vm200, %v2647, 0
      %v2658 = vsel %vm200, %v2648, 0
      %v2661 = vsel %vm200, %v2649, 0
      %v2664 = vsel %vm213, %v2650, 0
      %2666 = vmatprep.subr.bf16.mxu0 0
      %2667 = vmatpush1.bf16.msra.mxu0 0
      %2668 = vmatprep.subr.bf16.mxu0 0
      %2669 = vmatpush1.bf16.msra.mxu0 0
      %2670 = vmatprep.subr.bf16.mxu0 0
      %2671 = vmatpush1.bf16.msra.mxu0 0
      %2672 = vmatprep.subr.bf16.mxu0 0
      %2673 = vmatpush1.bf16.msra.mxu0 0
      %2674 = vmatprep.subr.bf16.mxu0 0
      %2675 = vmatpush1.bf16.msra.mxu0 0
      %2676 = vmatprep.subr.bf16.mxu0 0
      %2677 = vmatpush1.bf16.msra.mxu0 0
      %2678 = vmatprep.subr.bf16.mxu0 0
      %2679 = vmatpush1.bf16.msra.mxu0 0
      %2680 = vmatprep.subr.bf16.mxu0 0
      %2681 = vmatpush1.bf16.msra.mxu0 %v2664
      %2682 = vmatprep.subr.bf16.mxu0 0
      %2683 = vmatpush2.bf16.msra.mxu0 0
      %2684 = vmatprep.subr.bf16.mxu0 0
      %2685 = vmatpush2.bf16.msra.mxu0 0
      %2686 = vmatprep.subr.bf16.mxu0 0
      %2687 = vmatpush2.bf16.msra.mxu0 0
      %2688 = vmatprep.subr.bf16.mxu0 0
      %2689 = vmatpush2.bf16.msra.mxu0 0
      %2690 = vmatprep.subr.bf16.mxu0 0
      %2691 = vmatpush2.bf16.msra.mxu0 0
      %2692 = vmatprep.subr.bf16.mxu0 0
      %2693 = vmatpush2.bf16.msra.mxu0 0
      %2694 = vmatprep.subr.bf16.mxu0 0
      %2695 = vmatpush2.bf16.msra.mxu0 0
      %2696 = vmatprep.subr.bf16.mxu0 0
      %2697 = vmatpush2.bf16.msra.mxu0 0
      %2698 = vmatprep.mubr.bf16.mxu0 0
      %2699 = vmatmul.mubr.bf16.gmra.mxu0 %v2652
      %v2700 = vpop.f32.mrf.mxu0
      %v2701 = vadd.f32 0.0, %v2700
      %v2702 = vpop.f32.mrf.mxu0
      %v2703 = vpop.f32.mrf.mxu0
      %v2704 = vadd.f32 0.0, %v2703
      %v2705 = vpop.f32.mrf.mxu0
      %2706 = vmatprep.mubr.bf16.mxu0 0
      %2707 = vmatmul.mubr.bf16.gmra.mxu0 %v2655
      %v2708 = vpop.f32.mrf.mxu0
      %v2709 = vadd.f32 0.0, %v2708
      %v2710 = vpop.f32.mrf.mxu0
      %v2711 = vpop.f32.mrf.mxu0
      %v2712 = vadd.f32 0.0, %v2711
      %v2713 = vpop.f32.mrf.mxu0
      %2714 = vmatprep.mubr.bf16.mxu0 0
      %2715 = vmatmul.mubr.bf16.gmra.mxu0 %v2658
      %v2716 = vpop.f32.mrf.mxu0
      %v2717 = vadd.f32 0.0, %v2716
      %v2718 = vpop.f32.mrf.mxu0
      %v2719 = vpop.f32.mrf.mxu0
      %v2720 = vadd.f32 0.0, %v2719
      %v2721 = vpop.f32.mrf.mxu0
      %2722 = vmatprep.mubr.bf16.mxu0 0
      %2723 = vmatmul.mubr.bf16.gmra.mxu0 %v2661
      %v2724 = vpop.f32.mrf.mxu0
      %v2725 = vadd.f32 0.0, %v2724
      %v2726 = vpop.f32.mrf.mxu0
      %v2727 = vpop.f32.mrf.mxu0
      %v2728 = vadd.f32 0.0, %v2727
      %v2729 = vpop.f32.mrf.mxu0
      %2730 = vdwg.mxu0
      %v2732 = vsel %vm200, %v2633, 0
      %v2735 = vsel %vm200, %v2634, 0
      %v2738 = vsel %vm200, %v2635, 0
      %v2741 = vsel %vm200, %v2636, 0
      %v2744 = vsel %vm213, %v2637, 0
      %2746 = vmatprep.subr.bf16.mxu0 0
      %2747 = vmatpush1.bf16.msra.mxu0 0
      %2748 = vmatprep.subr.bf16.mxu0 0
      %2749 = vmatpush1.bf16.msra.mxu0 0
      %2750 = vmatprep.subr.bf16.mxu0 0
      %2751 = vmatpush1.bf16.msra.mxu0 0
      %2752 = vmatprep.subr.bf16.mxu0 0
      %2753 = vmatpush1.bf16.msra.mxu0 0
      %2754 = vmatprep.subr.bf16.mxu0 0
      %2755 = vmatpush1.bf16.msra.mxu0 0
      %2756 = vmatprep.subr.bf16.mxu0 0
      %2757 = vmatpush1.bf16.msra.mxu0 0
      %2758 = vmatprep.subr.bf16.mxu0 0
      %2759 = vmatpush1.bf16.msra.mxu0 0
      %2760 = vmatprep.subr.bf16.mxu0 0
      %2761 = vmatpush1.bf16.msra.mxu0 %v2744
      %2762 = vmatprep.subr.bf16.mxu0 0
      %2763 = vmatpush2.bf16.msra.mxu0 0
      %2764 = vmatprep.subr.bf16.mxu0 0
      %2765 = vmatpush2.bf16.msra.mxu0 0
      %2766 = vmatprep.subr.bf16.mxu0 0
      %2767 = vmatpush2.bf16.msra.mxu0 0
      %2768 = vmatprep.subr.bf16.mxu0 0
      %2769 = vmatpush2.bf16.msra.mxu0 0
      %2770 = vmatprep.subr.bf16.mxu0 0
      %2771 = vmatpush2.bf16.msra.mxu0 0
      %2772 = vmatprep.subr.bf16.mxu0 0
      %2773 = vmatpush2.bf16.msra.mxu0 0
      %2774 = vmatprep.subr.bf16.mxu0 0
      %2775 = vmatpush2.bf16.msra.mxu0 0
      %2776 = vmatprep.subr.bf16.mxu0 0
      %2777 = vmatpush2.bf16.msra.mxu0 0
      %2778 = vmatprep.mubr.bf16.mxu0 0
      %2779 = vmatmul.mubr.bf16.gmra.mxu0 %v2732
      %v2780 = vpop.f32.mrf.mxu0
      %v2781 = vadd.f32 %v2701, %v2780
      %v2782 = vpop.f32.mrf.mxu0
      %v2783 = vpop.f32.mrf.mxu0
      %v2784 = vadd.f32 %v2704, %v2783
      %v2785 = vpop.f32.mrf.mxu0
      %2786 = vmatprep.mubr.bf16.mxu0 0
      %2787 = vmatmul.mubr.bf16.gmra.mxu0 %v2735
      %v2788 = vpop.f32.mrf.mxu0
      %v2789 = vadd.f32 %v2709, %v2788
      %v2790 = vpop.f32.mrf.mxu0
      %v2791 = vpop.f32.mrf.mxu0
      %v2792 = vadd.f32 %v2712, %v2791
      %v2793 = vpop.f32.mrf.mxu0
      %2794 = vmatprep.mubr.bf16.mxu0 0
      %2795 = vmatmul.mubr.bf16.gmra.mxu0 %v2738
      %v2796 = vpop.f32.mrf.mxu0
      %v2797 = vadd.f32 %v2717, %v2796
      %v2798 = vpop.f32.mrf.mxu0
      %v2799 = vpop.f32.mrf.mxu0
      %v2800 = vadd.f32 %v2720, %v2799
      %v2801 = vpop.f32.mrf.mxu0
      %2802 = vmatprep.mubr.bf16.mxu0 0
      %2803 = vmatmul.mubr.bf16.gmra.mxu0 %v2741
      %v2804 = vpop.f32.mrf.mxu0
      %v2805 = vadd.f32 %v2725, %v2804
      %v2806 = vpop.f32.mrf.mxu0
      %v2807 = vpop.f32.mrf.mxu0
      %v2808 = vadd.f32 %v2728, %v2807
      %v2809 = vpop.f32.mrf.mxu0
      %2810 = vdwg.mxu0
      %v2811 = vld [vmem:[%s1182] sm:$0xff]
      %v2812 = vld [vmem:[%s1182 + $0x10] sm:$0xff]
      %v2813 = vld [vmem:[%s1182 + $0x20] sm:$0xff]
      %v2814 = vld [vmem:[%s1182 + $0x30] sm:$0xff]
      %v2815 = vld [vmem:[%s1182 + $0x40] sm:$0xff]
      %v2816 = vld [vmem:[%s1182 + $0x50] sm:$0xff]
      %v2817 = vld [vmem:[%s1182 + $0x60] sm:$0xff]
      %v2818 = vld [vmem:[%s1182 + $0x70] sm:$0xff]
      %v2819 = vpack.c.bf16 %v2812, %v2811
      %v2820 = vpack.c.bf16 %v2814, %v2813
      %v2821 = vpack.c.bf16 %v2816, %v2815
      %v2822 = vpack.c.bf16 %v2818, %v2817
      %v2823 = vld [vmem:[%s375] sm:$0x3]
      %v2825 = vsel %vm200, %v2819, 0
      %v2828 = vsel %vm200, %v2820, 0
      %v2831 = vsel %vm200, %v2821, 0
      %v2834 = vsel %vm200, %v2822, 0
      %v2837 = vsel %vm213, %v2823, 0
      %2839 = vmatprep.subr.bf16.mxu0 0
      %2840 = vmatpush1.bf16.msra.mxu0 0
      %2841 = vmatprep.subr.bf16.mxu0 0
      %2842 = vmatpush1.bf16.msra.mxu0 0
      %2843 = vmatprep.subr.bf16.mxu0 0
      %2844 = vmatpush1.bf16.msra.mxu0 0
      %2845 = vmatprep.subr.bf16.mxu0 0
      %2846 = vmatpush1.bf16.msra.mxu0 0
      %2847 = vmatprep.subr.bf16.mxu0 0
      %2848 = vmatpush1.bf16.msra.mxu0 0
      %2849 = vmatprep.subr.bf16.mxu0 0
      %2850 = vmatpush1.bf16.msra.mxu0 0
      %2851 = vmatprep.subr.bf16.mxu0 0
      %2852 = vmatpush1.bf16.msra.mxu0 0
      %2853 = vmatprep.subr.bf16.mxu0 0
      %2854 = vmatpush1.bf16.msra.mxu0 %v2837
      %2855 = vmatprep.subr.bf16.mxu0 0
      %2856 = vmatpush2.bf16.msra.mxu0 0
      %2857 = vmatprep.subr.bf16.mxu0 0
      %2858 = vmatpush2.bf16.msra.mxu0 0
      %2859 = vmatprep.subr.bf16.mxu0 0
      %2860 = vmatpush2.bf16.msra.mxu0 0
      %2861 = vmatprep.subr.bf16.mxu0 0
      %2862 = vmatpush2.bf16.msra.mxu0 0
      %2863 = vmatprep.subr.bf16.mxu0 0
      %2864 = vmatpush2.bf16.msra.mxu0 0
      %2865 = vmatprep.subr.bf16.mxu0 0
      %2866 = vmatpush2.bf16.msra.mxu0 0
      %2867 = vmatprep.subr.bf16.mxu0 0
      %2868 = vmatpush2.bf16.msra.mxu0 0
      %2869 = vmatprep.subr.bf16.mxu0 0
      %2870 = vmatpush2.bf16.msra.mxu0 0
      %2871 = vmatprep.mubr.bf16.mxu0 0
      %2872 = vmatmul.mubr.bf16.gmra.mxu0 %v2825
      %v2873 = vpop.f32.mrf.mxu0
      %v2874 = vadd.f32 0.0, %v2873
      %v2875 = vpop.f32.mrf.mxu0
      %v2876 = vpop.f32.mrf.mxu0
      %v2877 = vadd.f32 0.0, %v2876
      %v2878 = vpop.f32.mrf.mxu0
      %2879 = vmatprep.mubr.bf16.mxu0 0
      %2880 = vmatmul.mubr.bf16.gmra.mxu0 %v2828
      %v2881 = vpop.f32.mrf.mxu0
      %v2882 = vadd.f32 0.0, %v2881
      %v2883 = vpop.f32.mrf.mxu0
      %v2884 = vpop.f32.mrf.mxu0
      %v2885 = vadd.f32 0.0, %v2884
      %v2886 = vpop.f32.mrf.mxu0
      %2887 = vmatprep.mubr.bf16.mxu0 0
      %2888 = vmatmul.mubr.bf16.gmra.mxu0 %v2831
      %v2889 = vpop.f32.mrf.mxu0
      %v2890 = vadd.f32 0.0, %v2889
      %v2891 = vpop.f32.mrf.mxu0
      %v2892 = vpop.f32.mrf.mxu0
      %v2893 = vadd.f32 0.0, %v2892
      %v2894 = vpop.f32.mrf.mxu0
      %2895 = vmatprep.mubr.bf16.mxu0 0
      %2896 = vmatmul.mubr.bf16.gmra.mxu0 %v2834
      %v2897 = vpop.f32.mrf.mxu0
      %v2898 = vadd.f32 0.0, %v2897
      %v2899 = vpop.f32.mrf.mxu0
      %v2900 = vpop.f32.mrf.mxu0
      %v2901 = vadd.f32 0.0, %v2900
      %v2902 = vpop.f32.mrf.mxu0
      %2903 = vdwg.mxu0
      %v2904 = vadd.f32 %v2781, %v2874
      %v2905 = vadd.f32 %v2784, %v2877
      %v2906 = vadd.f32 %v2789, %v2882
      %v2907 = vadd.f32 %v2792, %v2885
      %v2908 = vadd.f32 %v2797, %v2890
      %v2909 = vadd.f32 %v2800, %v2893
      %v2910 = vadd.f32 %v2805, %v2898
      %v2911 = vadd.f32 %v2808, %v2901
      %v2912 = vld [vmem:[%s1182 + $0x1] sm:$0xff]
      %v2913 = vld [vmem:[%s1182 + $0x11] sm:$0xff]
      %v2914 = vld [vmem:[%s1182 + $0x21] sm:$0xff]
      %v2915 = vld [vmem:[%s1182 + $0x31] sm:$0xff]
      %v2916 = vld [vmem:[%s1182 + $0x41] sm:$0xff]
      %v2917 = vld [vmem:[%s1182 + $0x51] sm:$0xff]
      %v2918 = vld [vmem:[%s1182 + $0x61] sm:$0xff]
      %v2919 = vld [vmem:[%s1182 + $0x71] sm:$0xff]
      %v2920 = vpack.c.bf16 %v2913, %v2912
      %v2921 = vpack.c.bf16 %v2915, %v2914
      %v2922 = vpack.c.bf16 %v2917, %v2916
      %v2923 = vpack.c.bf16 %v2919, %v2918
      %v2924 = vld [vmem:[%s477] sm:$0x3]
      %v2926 = vsel %vm200, %v2920, 0
      %v2929 = vsel %vm200, %v2921, 0
      %v2932 = vsel %vm200, %v2922, 0
      %v2935 = vsel %vm200, %v2923, 0
      %v2938 = vsel %vm213, %v2924, 0
      %2940 = vmatprep.subr.bf16.mxu0 0
      %2941 = vmatpush1.bf16.msra.mxu0 0
      %2942 = vmatprep.subr.bf16.mxu0 0
      %2943 = vmatpush1.bf16.msra.mxu0 0
      %2944 = vmatprep.subr.bf16.mxu0 0
      %2945 = vmatpush1.bf16.msra.mxu0 0
      %2946 = vmatprep.subr.bf16.mxu0 0
      %2947 = vmatpush1.bf16.msra.mxu0 0
      %2948 = vmatprep.subr.bf16.mxu0 0
      %2949 = vmatpush1.bf16.msra.mxu0 0
      %2950 = vmatprep.subr.bf16.mxu0 0
      %2951 = vmatpush1.bf16.msra.mxu0 0
      %2952 = vmatprep.subr.bf16.mxu0 0
      %2953 = vmatpush1.bf16.msra.mxu0 0
      %2954 = vmatprep.subr.bf16.mxu0 0
      %2955 = vmatpush1.bf16.msra.mxu0 %v2938
      %2956 = vmatprep.subr.bf16.mxu0 0
      %2957 = vmatpush2.bf16.msra.mxu0 0
      %2958 = vmatprep.subr.bf16.mxu0 0
      %2959 = vmatpush2.bf16.msra.mxu0 0
      %2960 = vmatprep.subr.bf16.mxu0 0
      %2961 = vmatpush2.bf16.msra.mxu0 0
      %2962 = vmatprep.subr.bf16.mxu0 0
      %2963 = vmatpush2.bf16.msra.mxu0 0
      %2964 = vmatprep.subr.bf16.mxu0 0
      %2965 = vmatpush2.bf16.msra.mxu0 0
      %2966 = vmatprep.subr.bf16.mxu0 0
      %2967 = vmatpush2.bf16.msra.mxu0 0
      %2968 = vmatprep.subr.bf16.mxu0 0
      %2969 = vmatpush2.bf16.msra.mxu0 0
      %2970 = vmatprep.subr.bf16.mxu0 0
      %2971 = vmatpush2.bf16.msra.mxu0 0
      %2972 = vmatprep.mubr.bf16.mxu0 0
      %2973 = vmatmul.mubr.bf16.gmra.mxu0 %v2926
      %v2974 = vpop.f32.mrf.mxu0
      %v2975 = vadd.f32 0.0, %v2974
      %v2976 = vpop.f32.mrf.mxu0
      %v2977 = vpop.f32.mrf.mxu0
      %v2978 = vadd.f32 0.0, %v2977
      %v2979 = vpop.f32.mrf.mxu0
      %2980 = vmatprep.mubr.bf16.mxu0 0
      %2981 = vmatmul.mubr.bf16.gmra.mxu0 %v2929
      %v2982 = vpop.f32.mrf.mxu0
      %v2983 = vadd.f32 0.0, %v2982
      %v2984 = vpop.f32.mrf.mxu0
      %v2985 = vpop.f32.mrf.mxu0
      %v2986 = vadd.f32 0.0, %v2985
      %v2987 = vpop.f32.mrf.mxu0
      %2988 = vmatprep.mubr.bf16.mxu0 0
      %2989 = vmatmul.mubr.bf16.gmra.mxu0 %v2932
      %v2990 = vpop.f32.mrf.mxu0
      %v2991 = vadd.f32 0.0, %v2990
      %v2992 = vpop.f32.mrf.mxu0
      %v2993 = vpop.f32.mrf.mxu0
      %v2994 = vadd.f32 0.0, %v2993
      %v2995 = vpop.f32.mrf.mxu0
      %2996 = vmatprep.mubr.bf16.mxu0 0
      %2997 = vmatmul.mubr.bf16.gmra.mxu0 %v2935
      %v2998 = vpop.f32.mrf.mxu0
      %v2999 = vadd.f32 0.0, %v2998
      %v3000 = vpop.f32.mrf.mxu0
      %v3001 = vpop.f32.mrf.mxu0
      %v3002 = vadd.f32 0.0, %v3001
      %v3003 = vpop.f32.mrf.mxu0
      %3004 = vdwg.mxu0
      %v3005 = vadd.f32 %v2904, %v2975
      %v3006 = vadd.f32 %v2905, %v2978
      %v3007 = vadd.f32 %v2906, %v2983
      %v3008 = vadd.f32 %v2907, %v2986
      %v3009 = vadd.f32 %v2908, %v2991
      %v3010 = vadd.f32 %v2909, %v2994
      %v3011 = vadd.f32 %v2910, %v2999
      %v3012 = vadd.f32 %v2911, %v3002
      %v3013 = vld [vmem:[%s2202] sm:$0xff]
      %v3014 = vld [vmem:[%s2202 + $0x10] sm:$0xff]
      %v3015 = vld [vmem:[%s2202 + $0x20] sm:$0xff]
      %v3016 = vld [vmem:[%s2202 + $0x30] sm:$0xff]
      %v3017 = vld [vmem:[%s2202 + $0x40] sm:$0xff]
      %v3018 = vld [vmem:[%s2202 + $0x50] sm:$0xff]
      %v3019 = vld [vmem:[%s2202 + $0x60] sm:$0xff]
      %v3020 = vld [vmem:[%s2202 + $0x70] sm:$0xff]
      %v3021 = vpack.c.bf16 %v3014, %v3013
      %v3022 = vpack.c.bf16 %v3016, %v3015
      %v3023 = vpack.c.bf16 %v3018, %v3017
      %v3024 = vpack.c.bf16 %v3020, %v3019
      %v3025 = vld [vmem:[%s580] sm:$0x3]
      %v3027 = vsel %vm200, %v3021, 0
      %v3030 = vsel %vm200, %v3022, 0
      %v3033 = vsel %vm200, %v3023, 0
      %v3036 = vsel %vm200, %v3024, 0
      %v3039 = vsel %vm213, %v3025, 0
      %3041 = vmatprep.subr.bf16.mxu0 0
      %3042 = vmatpush1.bf16.msra.mxu0 0
      %3043 = vmatprep.subr.bf16.mxu0 0
      %3044 = vmatpush1.bf16.msra.mxu0 0
      %3045 = vmatprep.subr.bf16.mxu0 0
      %3046 = vmatpush1.bf16.msra.mxu0 0
      %3047 = vmatprep.subr.bf16.mxu0 0
      %3048 = vmatpush1.bf16.msra.mxu0 0
      %3049 = vmatprep.subr.bf16.mxu0 0
      %3050 = vmatpush1.bf16.msra.mxu0 0
      %3051 = vmatprep.subr.bf16.mxu0 0
      %3052 = vmatpush1.bf16.msra.mxu0 0
      %3053 = vmatprep.subr.bf16.mxu0 0
      %3054 = vmatpush1.bf16.msra.mxu0 0
      %3055 = vmatprep.subr.bf16.mxu0 0
      %3056 = vmatpush1.bf16.msra.mxu0 %v3039
      %3057 = vmatprep.subr.bf16.mxu0 0
      %3058 = vmatpush2.bf16.msra.mxu0 0
      %3059 = vmatprep.subr.bf16.mxu0 0
      %3060 = vmatpush2.bf16.msra.mxu0 0
      %3061 = vmatprep.subr.bf16.mxu0 0
      %3062 = vmatpush2.bf16.msra.mxu0 0
      %3063 = vmatprep.subr.bf16.mxu0 0
      %3064 = vmatpush2.bf16.msra.mxu0 0
      %3065 = vmatprep.subr.bf16.mxu0 0
      %3066 = vmatpush2.bf16.msra.mxu0 0
      %3067 = vmatprep.subr.bf16.mxu0 0
      %3068 = vmatpush2.bf16.msra.mxu0 0
      %3069 = vmatprep.subr.bf16.mxu0 0
      %3070 = vmatpush2.bf16.msra.mxu0 0
      %3071 = vmatprep.subr.bf16.mxu0 0
      %3072 = vmatpush2.bf16.msra.mxu0 0
      %3073 = vmatprep.mubr.bf16.mxu0 0
      %3074 = vmatmul.mubr.bf16.gmra.mxu0 %v3027
      %v3075 = vpop.f32.mrf.mxu0
      %v3076 = vadd.f32 0.0, %v3075
      %v3077 = vpop.f32.mrf.mxu0
      %v3078 = vpop.f32.mrf.mxu0
      %v3079 = vadd.f32 0.0, %v3078
      %v3080 = vpop.f32.mrf.mxu0
      %3081 = vmatprep.mubr.bf16.mxu0 0
      %3082 = vmatmul.mubr.bf16.gmra.mxu0 %v3030
      %v3083 = vpop.f32.mrf.mxu0
      %v3084 = vadd.f32 0.0, %v3083
      %v3085 = vpop.f32.mrf.mxu0
      %v3086 = vpop.f32.mrf.mxu0
      %v3087 = vadd.f32 0.0, %v3086
      %v3088 = vpop.f32.mrf.mxu0
      %3089 = vmatprep.mubr.bf16.mxu0 0
      %3090 = vmatmul.mubr.bf16.gmra.mxu0 %v3033
      %v3091 = vpop.f32.mrf.mxu0
      %v3092 = vadd.f32 0.0, %v3091
      %v3093 = vpop.f32.mrf.mxu0
      %v3094 = vpop.f32.mrf.mxu0
      %v3095 = vadd.f32 0.0, %v3094
      %v3096 = vpop.f32.mrf.mxu0
      %3097 = vmatprep.mubr.bf16.mxu0 0
      %3098 = vmatmul.mubr.bf16.gmra.mxu0 %v3036
      %v3099 = vpop.f32.mrf.mxu0
      %v3100 = vadd.f32 0.0, %v3099
      %v3101 = vpop.f32.mrf.mxu0
      %v3102 = vpop.f32.mrf.mxu0
      %v3103 = vadd.f32 0.0, %v3102
      %v3104 = vpop.f32.mrf.mxu0
      %3105 = vdwg.mxu0
      %v3106 = vadd.f32 %v3005, %v3076
      %v3107 = vadd.f32 %v3006, %v3079
      %v3108 = vadd.f32 %v3007, %v3084
      %v3109 = vadd.f32 %v3008, %v3087
      %v3110 = vadd.f32 %v3009, %v3092
      %v3111 = vadd.f32 %v3010, %v3095
      %v3112 = vadd.f32 %v3011, %v3100
      %v3113 = vadd.f32 %v3012, %v3103
      %v3114 = vld [vmem:[%s2202 + $0x1] sm:$0xff]
      %v3115 = vld [vmem:[%s2202 + $0x11] sm:$0xff]
      %v3116 = vld [vmem:[%s2202 + $0x21] sm:$0xff]
      %v3117 = vld [vmem:[%s2202 + $0x31] sm:$0xff]
      %v3118 = vld [vmem:[%s2202 + $0x41] sm:$0xff]
      %v3119 = vld [vmem:[%s2202 + $0x51] sm:$0xff]
      %v3120 = vld [vmem:[%s2202 + $0x61] sm:$0xff]
      %v3121 = vld [vmem:[%s2202 + $0x71] sm:$0xff]
      %v3122 = vpack.c.bf16 %v3115, %v3114
      %v3123 = vpack.c.bf16 %v3117, %v3116
      %v3124 = vpack.c.bf16 %v3119, %v3118
      %v3125 = vpack.c.bf16 %v3121, %v3120
      %v3126 = vld [vmem:[%s682] sm:$0x3]
      %v3128 = vsel %vm200, %v3122, 0
      %v3131 = vsel %vm200, %v3123, 0
      %v3134 = vsel %vm200, %v3124, 0
      %v3137 = vsel %vm200, %v3125, 0
      %v3140 = vsel %vm213, %v3126, 0
      %3142 = vmatprep.subr.bf16.mxu0 0
      %3143 = vmatpush1.bf16.msra.mxu0 0
      %3144 = vmatprep.subr.bf16.mxu0 0
      %3145 = vmatpush1.bf16.msra.mxu0 0
      %3146 = vmatprep.subr.bf16.mxu0 0
      %3147 = vmatpush1.bf16.msra.mxu0 0
      %3148 = vmatprep.subr.bf16.mxu0 0
      %3149 = vmatpush1.bf16.msra.mxu0 0
      %3150 = vmatprep.subr.bf16.mxu0 0
      %3151 = vmatpush1.bf16.msra.mxu0 0
      %3152 = vmatprep.subr.bf16.mxu0 0
      %3153 = vmatpush1.bf16.msra.mxu0 0
      %3154 = vmatprep.subr.bf16.mxu0 0
      %3155 = vmatpush1.bf16.msra.mxu0 0
      %3156 = vmatprep.subr.bf16.mxu0 0
      %3157 = vmatpush1.bf16.msra.mxu0 %v3140
      %3158 = vmatprep.subr.bf16.mxu0 0
      %3159 = vmatpush2.bf16.msra.mxu0 0
      %3160 = vmatprep.subr.bf16.mxu0 0
      %3161 = vmatpush2.bf16.msra.mxu0 0
      %3162 = vmatprep.subr.bf16.mxu0 0
      %3163 = vmatpush2.bf16.msra.mxu0 0
      %3164 = vmatprep.subr.bf16.mxu0 0
      %3165 = vmatpush2.bf16.msra.mxu0 0
      %3166 = vmatprep.subr.bf16.mxu0 0
      %3167 = vmatpush2.bf16.msra.mxu0 0
      %3168 = vmatprep.subr.bf16.mxu0 0
      %3169 = vmatpush2.bf16.msra.mxu0 0
      %3170 = vmatprep.subr.bf16.mxu0 0
      %3171 = vmatpush2.bf16.msra.mxu0 0
      %3172 = vmatprep.subr.bf16.mxu0 0
      %3173 = vmatpush2.bf16.msra.mxu0 0
      %3174 = vmatprep.mubr.bf16.mxu0 0
      %3175 = vmatmul.mubr.bf16.gmra.mxu0 %v3128
      %v3176 = vpop.f32.mrf.mxu0
      %v3177 = vadd.f32 0.0, %v3176
      %v3178 = vpop.f32.mrf.mxu0
      %v3179 = vpop.f32.mrf.mxu0
      %v3180 = vadd.f32 0.0, %v3179
      %v3181 = vpop.f32.mrf.mxu0
      %3182 = vmatprep.mubr.bf16.mxu0 0
      %3183 = vmatmul.mubr.bf16.gmra.mxu0 %v3131
      %v3184 = vpop.f32.mrf.mxu0
      %v3185 = vadd.f32 0.0, %v3184
      %v3186 = vpop.f32.mrf.mxu0
      %v3187 = vpop.f32.mrf.mxu0
      %v3188 = vadd.f32 0.0, %v3187
      %v3189 = vpop.f32.mrf.mxu0
      %3190 = vmatprep.mubr.bf16.mxu0 0
      %3191 = vmatmul.mubr.bf16.gmra.mxu0 %v3134
      %v3192 = vpop.f32.mrf.mxu0
      %v3193 = vadd.f32 0.0, %v3192
      %v3194 = vpop.f32.mrf.mxu0
      %v3195 = vpop.f32.mrf.mxu0
      %v3196 = vadd.f32 0.0, %v3195
      %v3197 = vpop.f32.mrf.mxu0
      %3198 = vmatprep.mubr.bf16.mxu0 0
      %3199 = vmatmul.mubr.bf16.gmra.mxu0 %v3137
      %v3200 = vpop.f32.mrf.mxu0
      %v3201 = vadd.f32 0.0, %v3200
      %v3202 = vpop.f32.mrf.mxu0
      %v3203 = vpop.f32.mrf.mxu0
      %v3204 = vadd.f32 0.0, %v3203
      %v3205 = vpop.f32.mrf.mxu0
      %3206 = vdwg.mxu0
      %v3207 = vadd.f32 %v3106, %v3177
      %v3208 = vadd.f32 %v3107, %v3180
      %v3209 = vadd.f32 %v3108, %v3185
      %v3210 = vadd.f32 %v3109, %v3188
      %v3211 = vadd.f32 %v3110, %v3193
      %v3212 = vadd.f32 %v3111, %v3196
      %v3213 = vadd.f32 %v3112, %v3201
      %v3214 = vadd.f32 %v3113, %v3204
      %v3215 = vld [vmem:[%s2405] sm:$0xff]
      %v3216 = vld [vmem:[%s2405 + $0x10] sm:$0xff]
      %v3217 = vld [vmem:[%s2405 + $0x20] sm:$0xff]
      %v3218 = vld [vmem:[%s2405 + $0x30] sm:$0xff]
      %v3219 = vld [vmem:[%s2405 + $0x40] sm:$0xff]
      %v3220 = vld [vmem:[%s2405 + $0x50] sm:$0xff]
      %v3221 = vld [vmem:[%s2405 + $0x60] sm:$0xff]
      %v3222 = vld [vmem:[%s2405 + $0x70] sm:$0xff]
      %v3223 = vpack.c.bf16 %v3216, %v3215
      %v3224 = vpack.c.bf16 %v3218, %v3217
      %v3225 = vpack.c.bf16 %v3220, %v3219
      %v3226 = vpack.c.bf16 %v3222, %v3221
      %v3227 = vld [vmem:[%s785] sm:$0x3]
      %v3229 = vsel %vm200, %v3223, 0
      %v3232 = vsel %vm200, %v3224, 0
      %v3235 = vsel %vm200, %v3225, 0
      %v3238 = vsel %vm200, %v3226, 0
      %v3241 = vsel %vm213, %v3227, 0
      %3243 = vmatprep.subr.bf16.mxu0 0
      %3244 = vmatpush1.bf16.msra.mxu0 0
      %3245 = vmatprep.subr.bf16.mxu0 0
      %3246 = vmatpush1.bf16.msra.mxu0 0
      %3247 = vmatprep.subr.bf16.mxu0 0
      %3248 = vmatpush1.bf16.msra.mxu0 0
      %3249 = vmatprep.subr.bf16.mxu0 0
      %3250 = vmatpush1.bf16.msra.mxu0 0
      %3251 = vmatprep.subr.bf16.mxu0 0
      %3252 = vmatpush1.bf16.msra.mxu0 0
      %3253 = vmatprep.subr.bf16.mxu0 0
      %3254 = vmatpush1.bf16.msra.mxu0 0
      %3255 = vmatprep.subr.bf16.mxu0 0
      %3256 = vmatpush1.bf16.msra.mxu0 0
      %3257 = vmatprep.subr.bf16.mxu0 0
      %3258 = vmatpush1.bf16.msra.mxu0 %v3241
      %3259 = vmatprep.subr.bf16.mxu0 0
      %3260 = vmatpush2.bf16.msra.mxu0 0
      %3261 = vmatprep.subr.bf16.mxu0 0
      %3262 = vmatpush2.bf16.msra.mxu0 0
      %3263 = vmatprep.subr.bf16.mxu0 0
      %3264 = vmatpush2.bf16.msra.mxu0 0
      %3265 = vmatprep.subr.bf16.mxu0 0
      %3266 = vmatpush2.bf16.msra.mxu0 0
      %3267 = vmatprep.subr.bf16.mxu0 0
      %3268 = vmatpush2.bf16.msra.mxu0 0
      %3269 = vmatprep.subr.bf16.mxu0 0
      %3270 = vmatpush2.bf16.msra.mxu0 0
      %3271 = vmatprep.subr.bf16.mxu0 0
      %3272 = vmatpush2.bf16.msra.mxu0 0
      %3273 = vmatprep.subr.bf16.mxu0 0
      %3274 = vmatpush2.bf16.msra.mxu0 0
      %3275 = vmatprep.mubr.bf16.mxu0 0
      %3276 = vmatmul.mubr.bf16.gmra.mxu0 %v3229
      %v3277 = vpop.f32.mrf.mxu0
      %v3278 = vadd.f32 0.0, %v3277
      %v3279 = vpop.f32.mrf.mxu0
      %v3280 = vpop.f32.mrf.mxu0
      %v3281 = vadd.f32 0.0, %v3280
      %v3282 = vpop.f32.mrf.mxu0
      %3283 = vmatprep.mubr.bf16.mxu0 0
      %3284 = vmatmul.mubr.bf16.gmra.mxu0 %v3232
      %v3285 = vpop.f32.mrf.mxu0
      %v3286 = vadd.f32 0.0, %v3285
      %v3287 = vpop.f32.mrf.mxu0
      %v3288 = vpop.f32.mrf.mxu0
      %v3289 = vadd.f32 0.0, %v3288
      %v3290 = vpop.f32.mrf.mxu0
      %3291 = vmatprep.mubr.bf16.mxu0 0
      %3292 = vmatmul.mubr.bf16.gmra.mxu0 %v3235
      %v3293 = vpop.f32.mrf.mxu0
      %v3294 = vadd.f32 0.0, %v3293
      %v3295 = vpop.f32.mrf.mxu0
      %v3296 = vpop.f32.mrf.mxu0
      %v3297 = vadd.f32 0.0, %v3296
      %v3298 = vpop.f32.mrf.mxu0
      %3299 = vmatprep.mubr.bf16.mxu0 0
      %3300 = vmatmul.mubr.bf16.gmra.mxu0 %v3238
      %v3301 = vpop.f32.mrf.mxu0
      %v3302 = vadd.f32 0.0, %v3301
      %v3303 = vpop.f32.mrf.mxu0
      %v3304 = vpop.f32.mrf.mxu0
      %v3305 = vadd.f32 0.0, %v3304
      %v3306 = vpop.f32.mrf.mxu0
      %3307 = vdwg.mxu0
      %v3308 = vadd.f32 %v3207, %v3278
      %v3309 = vadd.f32 %v3208, %v3281
      %v3310 = vadd.f32 %v3209, %v3286
      %v3311 = vadd.f32 %v3210, %v3289
      %v3312 = vadd.f32 %v3211, %v3294
      %v3313 = vadd.f32 %v3212, %v3297
      %v3314 = vadd.f32 %v3213, %v3302
      %v3315 = vadd.f32 %v3214, %v3305
      %v3316 = vld [vmem:[%s2405 + $0x1] sm:$0xff]
      %v3317 = vld [vmem:[%s2405 + $0x11] sm:$0xff]
      %v3318 = vld [vmem:[%s2405 + $0x21] sm:$0xff]
      %v3319 = vld [vmem:[%s2405 + $0x31] sm:$0xff]
      %v3320 = vld [vmem:[%s2405 + $0x41] sm:$0xff]
      %v3321 = vld [vmem:[%s2405 + $0x51] sm:$0xff]
      %v3322 = vld [vmem:[%s2405 + $0x61] sm:$0xff]
      %v3323 = vld [vmem:[%s2405 + $0x71] sm:$0xff]
      %v3324 = vpack.c.bf16 %v3317, %v3316
      %v3325 = vpack.c.bf16 %v3319, %v3318
      %v3326 = vpack.c.bf16 %v3321, %v3320
      %v3327 = vpack.c.bf16 %v3323, %v3322
      %v3328 = vld [vmem:[%s887] sm:$0x3]
      %v3330 = vsel %vm200, %v3324, 0
      %v3333 = vsel %vm200, %v3325, 0
      %v3336 = vsel %vm200, %v3326, 0
      %v3339 = vsel %vm200, %v3327, 0
      %v3342 = vsel %vm213, %v3328, 0
      %3344 = vmatprep.subr.bf16.mxu0 0
      %3345 = vmatpush1.bf16.msra.mxu0 0
      %3346 = vmatprep.subr.bf16.mxu0 0
      %3347 = vmatpush1.bf16.msra.mxu0 0
      %3348 = vmatprep.subr.bf16.mxu0 0
      %3349 = vmatpush1.bf16.msra.mxu0 0
      %3350 = vmatprep.subr.bf16.mxu0 0
      %3351 = vmatpush1.bf16.msra.mxu0 0
      %3352 = vmatprep.subr.bf16.mxu0 0
      %3353 = vmatpush1.bf16.msra.mxu0 0
      %3354 = vmatprep.subr.bf16.mxu0 0
      %3355 = vmatpush1.bf16.msra.mxu0 0
      %3356 = vmatprep.subr.bf16.mxu0 0
      %3357 = vmatpush1.bf16.msra.mxu0 0
      %3358 = vmatprep.subr.bf16.mxu0 0
      %3359 = vmatpush1.bf16.msra.mxu0 %v3342
      %3360 = vmatprep.subr.bf16.mxu0 0
      %3361 = vmatpush2.bf16.msra.mxu0 0
      %3362 = vmatprep.subr.bf16.mxu0 0
      %3363 = vmatpush2.bf16.msra.mxu0 0
      %3364 = vmatprep.subr.bf16.mxu0 0
      %3365 = vmatpush2.bf16.msra.mxu0 0
      %3366 = vmatprep.subr.bf16.mxu0 0
      %3367 = vmatpush2.bf16.msra.mxu0 0
      %3368 = vmatprep.subr.bf16.mxu0 0
      %3369 = vmatpush2.bf16.msra.mxu0 0
      %3370 = vmatprep.subr.bf16.mxu0 0
      %3371 = vmatpush2.bf16.msra.mxu0 0
      %3372 = vmatprep.subr.bf16.mxu0 0
      %3373 = vmatpush2.bf16.msra.mxu0 0
      %3374 = vmatprep.subr.bf16.mxu0 0
      %3375 = vmatpush2.bf16.msra.mxu0 0
      %3376 = vmatprep.mubr.bf16.mxu0 0
      %3377 = vmatmul.mubr.bf16.gmra.mxu0 %v3330
      %v3378 = vpop.f32.mrf.mxu0
      %v3379 = vadd.f32 0.0, %v3378
      %v3380 = vpop.f32.mrf.mxu0
      %v3381 = vpop.f32.mrf.mxu0
      %v3382 = vadd.f32 0.0, %v3381
      %v3383 = vpop.f32.mrf.mxu0
      %3384 = vmatprep.mubr.bf16.mxu0 0
      %3385 = vmatmul.mubr.bf16.gmra.mxu0 %v3333
      %v3386 = vpop.f32.mrf.mxu0
      %v3387 = vadd.f32 0.0, %v3386
      %v3388 = vpop.f32.mrf.mxu0
      %v3389 = vpop.f32.mrf.mxu0
      %v3390 = vadd.f32 0.0, %v3389
      %v3391 = vpop.f32.mrf.mxu0
      %3392 = vmatprep.mubr.bf16.mxu0 0
      %3393 = vmatmul.mubr.bf16.gmra.mxu0 %v3336
      %v3394 = vpop.f32.mrf.mxu0
      %v3395 = vadd.f32 0.0, %v3394
      %v3396 = vpop.f32.mrf.mxu0
      %v3397 = vpop.f32.mrf.mxu0
      %v3398 = vadd.f32 0.0, %v3397
      %v3399 = vpop.f32.mrf.mxu0
      %3400 = vmatprep.mubr.bf16.mxu0 0
      %3401 = vmatmul.mubr.bf16.gmra.mxu0 %v3339
      %v3402 = vpop.f32.mrf.mxu0
      %v3403 = vadd.f32 0.0, %v3402
      %v3404 = vpop.f32.mrf.mxu0
      %v3405 = vpop.f32.mrf.mxu0
      %v3406 = vadd.f32 0.0, %v3405
      %v3407 = vpop.f32.mrf.mxu0
      %3408 = vdwg.mxu0
      %v3409 = vadd.f32 %v3308, %v3379
      %v3410 = vadd.f32 %v3309, %v3382
      %v3411 = vadd.f32 %v3310, %v3387
      %v3412 = vadd.f32 %v3311, %v3390
      %v3413 = vadd.f32 %v3312, %v3395
      %v3414 = vadd.f32 %v3313, %v3398
      %v3415 = vadd.f32 %v3314, %v3403
      %v3416 = vadd.f32 %v3315, %v3406
      %s3417 = scalar_lea.vmem %s165, 576
      %v3418 = vld [vmem:[%s3417] sm:$0xff]
      %v3419 = vld [vmem:[%s3417 + $0x10] sm:$0xff]
      %v3420 = vld [vmem:[%s3417 + $0x20] sm:$0xff]
      %v3421 = vld [vmem:[%s3417 + $0x30] sm:$0xff]
      %v3422 = vld [vmem:[%s3417 + $0x40] sm:$0xff]
      %v3423 = vld [vmem:[%s3417 + $0x50] sm:$0xff]
      %v3424 = vld [vmem:[%s3417 + $0x60] sm:$0xff]
      %v3425 = vld [vmem:[%s3417 + $0x70] sm:$0xff]
      %v3426 = vpack.c.bf16 %v3419, %v3418
      %v3427 = vpack.c.bf16 %v3421, %v3420
      %v3428 = vpack.c.bf16 %v3423, %v3422
      %v3429 = vpack.c.bf16 %v3425, %v3424
      %v3430 = vld [vmem:[%s990] sm:$0x3]
      %v3432 = vsel %vm200, %v3426, 0
      %v3435 = vsel %vm200, %v3427, 0
      %v3438 = vsel %vm200, %v3428, 0
      %v3441 = vsel %vm200, %v3429, 0
      %v3444 = vsel %vm213, %v3430, 0
      %3446 = vmatprep.subr.bf16.mxu0 0
      %3447 = vmatpush1.bf16.msra.mxu0 0
      %3448 = vmatprep.subr.bf16.mxu0 0
      %3449 = vmatpush1.bf16.msra.mxu0 0
      %3450 = vmatprep.subr.bf16.mxu0 0
      %3451 = vmatpush1.bf16.msra.mxu0 0
      %3452 = vmatprep.subr.bf16.mxu0 0
      %3453 = vmatpush1.bf16.msra.mxu0 0
      %3454 = vmatprep.subr.bf16.mxu0 0
      %3455 = vmatpush1.bf16.msra.mxu0 0
      %3456 = vmatprep.subr.bf16.mxu0 0
      %3457 = vmatpush1.bf16.msra.mxu0 0
      %3458 = vmatprep.subr.bf16.mxu0 0
      %3459 = vmatpush1.bf16.msra.mxu0 0
      %3460 = vmatprep.subr.bf16.mxu0 0
      %3461 = vmatpush1.bf16.msra.mxu0 %v3444
      %3462 = vmatprep.subr.bf16.mxu0 0
      %3463 = vmatpush2.bf16.msra.mxu0 0
      %3464 = vmatprep.subr.bf16.mxu0 0
      %3465 = vmatpush2.bf16.msra.mxu0 0
      %3466 = vmatprep.subr.bf16.mxu0 0
      %3467 = vmatpush2.bf16.msra.mxu0 0
      %3468 = vmatprep.subr.bf16.mxu0 0
      %3469 = vmatpush2.bf16.msra.mxu0 0
      %3470 = vmatprep.subr.bf16.mxu0 0
      %3471 = vmatpush2.bf16.msra.mxu0 0
      %3472 = vmatprep.subr.bf16.mxu0 0
      %3473 = vmatpush2.bf16.msra.mxu0 0
      %3474 = vmatprep.subr.bf16.mxu0 0
      %3475 = vmatpush2.bf16.msra.mxu0 0
      %3476 = vmatprep.subr.bf16.mxu0 0
      %3477 = vmatpush2.bf16.msra.mxu0 0
      %3478 = vmatprep.mubr.bf16.mxu0 0
      %3479 = vmatmul.mubr.bf16.gmra.mxu0 %v3432
      %v3480 = vpop.f32.mrf.mxu0
      %v3481 = vadd.f32 0.0, %v3480
      %v3482 = vpop.f32.mrf.mxu0
      %v3483 = vpop.f32.mrf.mxu0
      %v3484 = vadd.f32 0.0, %v3483
      %v3485 = vpop.f32.mrf.mxu0
      %3486 = vmatprep.mubr.bf16.mxu0 0
      %3487 = vmatmul.mubr.bf16.gmra.mxu0 %v3435
      %v3488 = vpop.f32.mrf.mxu0
      %v3489 = vadd.f32 0.0, %v3488
      %v3490 = vpop.f32.mrf.mxu0
      %v3491 = vpop.f32.mrf.mxu0
      %v3492 = vadd.f32 0.0, %v3491
      %v3493 = vpop.f32.mrf.mxu0
      %3494 = vmatprep.mubr.bf16.mxu0 0
      %3495 = vmatmul.mubr.bf16.gmra.mxu0 %v3438
      %v3496 = vpop.f32.mrf.mxu0
      %v3497 = vadd.f32 0.0, %v3496
      %v3498 = vpop.f32.mrf.mxu0
      %v3499 = vpop.f32.mrf.mxu0
      %v3500 = vadd.f32 0.0, %v3499
      %v3501 = vpop.f32.mrf.mxu0
      %3502 = vmatprep.mubr.bf16.mxu0 0
      %3503 = vmatmul.mubr.bf16.gmra.mxu0 %v3441
      %v3504 = vpop.f32.mrf.mxu0
      %v3505 = vadd.f32 0.0, %v3504
      %v3506 = vpop.f32.mrf.mxu0
      %v3507 = vpop.f32.mrf.mxu0
      %v3508 = vadd.f32 0.0, %v3507
      %v3509 = vpop.f32.mrf.mxu0
      %3510 = vdwg.mxu0
      %v3511 = vadd.f32 %v3409, %v3481
      %v3512 = vadd.f32 %v3410, %v3484
      %v3513 = vadd.f32 %v3411, %v3489
      %v3514 = vadd.f32 %v3412, %v3492
      %v3515 = vadd.f32 %v3413, %v3497
      %v3516 = vadd.f32 %v3414, %v3500
      %v3517 = vadd.f32 %v3415, %v3505
      %v3518 = vadd.f32 %v3416, %v3508
      %v3519 = vld [vmem:[%s3417 + $0x1] sm:$0xff]
      %v3520 = vld [vmem:[%s3417 + $0x11] sm:$0xff]
      %v3521 = vld [vmem:[%s3417 + $0x21] sm:$0xff]
      %v3522 = vld [vmem:[%s3417 + $0x31] sm:$0xff]
      %v3523 = vld [vmem:[%s3417 + $0x41] sm:$0xff]
      %v3524 = vld [vmem:[%s3417 + $0x51] sm:$0xff]
      %v3525 = vld [vmem:[%s3417 + $0x61] sm:$0xff]
      %v3526 = vld [vmem:[%s3417 + $0x71] sm:$0xff]
      %v3527 = vpack.c.bf16 %v3520, %v3519
      %v3528 = vpack.c.bf16 %v3522, %v3521
      %v3529 = vpack.c.bf16 %v3524, %v3523
      %v3530 = vpack.c.bf16 %v3526, %v3525
      %v3531 = vld [vmem:[%s1092] sm:$0x3]
      %v3533 = vsel %vm200, %v3527, 0
      %v3536 = vsel %vm200, %v3528, 0
      %v3539 = vsel %vm200, %v3529, 0
      %v3542 = vsel %vm200, %v3530, 0
      %v3545 = vsel %vm213, %v3531, 0
      %3547 = vmatprep.subr.bf16.mxu0 0
      %3548 = vmatpush1.bf16.msra.mxu0 0
      %3549 = vmatprep.subr.bf16.mxu0 0
      %3550 = vmatpush1.bf16.msra.mxu0 0
      %3551 = vmatprep.subr.bf16.mxu0 0
      %3552 = vmatpush1.bf16.msra.mxu0 0
      %3553 = vmatprep.subr.bf16.mxu0 0
      %3554 = vmatpush1.bf16.msra.mxu0 0
      %3555 = vmatprep.subr.bf16.mxu0 0
      %3556 = vmatpush1.bf16.msra.mxu0 0
      %3557 = vmatprep.subr.bf16.mxu0 0
      %3558 = vmatpush1.bf16.msra.mxu0 0
      %3559 = vmatprep.subr.bf16.mxu0 0
      %3560 = vmatpush1.bf16.msra.mxu0 0
      %3561 = vmatprep.subr.bf16.mxu0 0
      %3562 = vmatpush1.bf16.msra.mxu0 %v3545
      %3563 = vmatprep.subr.bf16.mxu0 0
      %3564 = vmatpush2.bf16.msra.mxu0 0
      %3565 = vmatprep.subr.bf16.mxu0 0
      %3566 = vmatpush2.bf16.msra.mxu0 0
      %3567 = vmatprep.subr.bf16.mxu0 0
      %3568 = vmatpush2.bf16.msra.mxu0 0
      %3569 = vmatprep.subr.bf16.mxu0 0
      %3570 = vmatpush2.bf16.msra.mxu0 0
      %3571 = vmatprep.subr.bf16.mxu0 0
      %3572 = vmatpush2.bf16.msra.mxu0 0
      %3573 = vmatprep.subr.bf16.mxu0 0
      %3574 = vmatpush2.bf16.msra.mxu0 0
      %3575 = vmatprep.subr.bf16.mxu0 0
      %3576 = vmatpush2.bf16.msra.mxu0 0
      %3577 = vmatprep.subr.bf16.mxu0 0
      %3578 = vmatpush2.bf16.msra.mxu0 0
      %3579 = vmatprep.mubr.bf16.mxu0 0
      %3580 = vmatmul.mubr.bf16.gmra.mxu0 %v3533
      %v3581 = vpop.f32.mrf.mxu0
      %v3582 = vadd.f32 0.0, %v3581
      %v3583 = vpop.f32.mrf.mxu0
      %v3584 = vpop.f32.mrf.mxu0
      %v3585 = vadd.f32 0.0, %v3584
      %v3586 = vpop.f32.mrf.mxu0
      %3587 = vmatprep.mubr.bf16.mxu0 0
      %3588 = vmatmul.mubr.bf16.gmra.mxu0 %v3536
      %v3589 = vpop.f32.mrf.mxu0
      %v3590 = vadd.f32 0.0, %v3589
      %v3591 = vpop.f32.mrf.mxu0
      %v3592 = vpop.f32.mrf.mxu0
      %v3593 = vadd.f32 0.0, %v3592
      %v3594 = vpop.f32.mrf.mxu0
      %3595 = vmatprep.mubr.bf16.mxu0 0
      %3596 = vmatmul.mubr.bf16.gmra.mxu0 %v3539
      %v3597 = vpop.f32.mrf.mxu0
      %v3598 = vadd.f32 0.0, %v3597
      %v3599 = vpop.f32.mrf.mxu0
      %v3600 = vpop.f32.mrf.mxu0
      %v3601 = vadd.f32 0.0, %v3600
      %v3602 = vpop.f32.mrf.mxu0
      %3603 = vmatprep.mubr.bf16.mxu0 0
      %3604 = vmatmul.mubr.bf16.gmra.mxu0 %v3542
      %v3605 = vpop.f32.mrf.mxu0
      %v3606 = vadd.f32 0.0, %v3605
      %v3607 = vpop.f32.mrf.mxu0
      %v3608 = vpop.f32.mrf.mxu0
      %v3609 = vadd.f32 0.0, %v3608
      %v3610 = vpop.f32.mrf.mxu0
      %3611 = vdwg.mxu0
      %v3612 = vadd.f32 %v3511, %v3582
      %v3613 = vadd.f32 %v3512, %v3585
      %v3614 = vadd.f32 %v3513, %v3590
      %v3615 = vadd.f32 %v3514, %v3593
      %v3616 = vadd.f32 %v3515, %v3598
      %v3617 = vadd.f32 %v3516, %v3601
      %v3618 = vadd.f32 %v3517, %v3606
      %v3619 = vadd.f32 %v3518, %v3609
      %s3620 = scalar_lea.vmem %s165, 592
      %v3621 = vld [vmem:[%s3620] sm:$0xff]
      %v3622 = vld [vmem:[%s3620 + $0x10] sm:$0xff]
      %v3623 = vld [vmem:[%s3620 + $0x20] sm:$0xff]
      %v3624 = vld [vmem:[%s3620 + $0x30] sm:$0xff]
      %v3625 = vld [vmem:[%s3620 + $0x40] sm:$0xff]
      %v3626 = vld [vmem:[%s3620 + $0x50] sm:$0xff]
      %v3627 = vld [vmem:[%s3620 + $0x60] sm:$0xff]
      %v3628 = vld [vmem:[%s3620 + $0x70] sm:$0xff]
      %v3629 = vpack.c.bf16 %v3622, %v3621
      %v3630 = vpack.c.bf16 %v3624, %v3623
      %v3631 = vpack.c.bf16 %v3626, %v3625
      %v3632 = vpack.c.bf16 %v3628, %v3627
      %v3633 = vld [vmem:[%s1195] sm:$0x3]
      %v3635 = vsel %vm200, %v3629, 0
      %v3638 = vsel %vm200, %v3630, 0
      %v3641 = vsel %vm200, %v3631, 0
      %v3644 = vsel %vm200, %v3632, 0
      %v3647 = vsel %vm213, %v3633, 0
      %3649 = vmatprep.subr.bf16.mxu0 0
      %3650 = vmatpush1.bf16.msra.mxu0 0
      %3651 = vmatprep.subr.bf16.mxu0 0
      %3652 = vmatpush1.bf16.msra.mxu0 0
      %3653 = vmatprep.subr.bf16.mxu0 0
      %3654 = vmatpush1.bf16.msra.mxu0 0
      %3655 = vmatprep.subr.bf16.mxu0 0
      %3656 = vmatpush1.bf16.msra.mxu0 0
      %3657 = vmatprep.subr.bf16.mxu0 0
      %3658 = vmatpush1.bf16.msra.mxu0 0
      %3659 = vmatprep.subr.bf16.mxu0 0
      %3660 = vmatpush1.bf16.msra.mxu0 0
      %3661 = vmatprep.subr.bf16.mxu0 0
      %3662 = vmatpush1.bf16.msra.mxu0 0
      %3663 = vmatprep.subr.bf16.mxu0 0
      %3664 = vmatpush1.bf16.msra.mxu0 %v3647
      %3665 = vmatprep.subr.bf16.mxu0 0
      %3666 = vmatpush2.bf16.msra.mxu0 0
      %3667 = vmatprep.subr.bf16.mxu0 0
      %3668 = vmatpush2.bf16.msra.mxu0 0
      %3669 = vmatprep.subr.bf16.mxu0 0
      %3670 = vmatpush2.bf16.msra.mxu0 0
      %3671 = vmatprep.subr.bf16.mxu0 0
      %3672 = vmatpush2.bf16.msra.mxu0 0
      %3673 = vmatprep.subr.bf16.mxu0 0
      %3674 = vmatpush2.bf16.msra.mxu0 0
      %3675 = vmatprep.subr.bf16.mxu0 0
      %3676 = vmatpush2.bf16.msra.mxu0 0
      %3677 = vmatprep.subr.bf16.mxu0 0
      %3678 = vmatpush2.bf16.msra.mxu0 0
      %3679 = vmatprep.subr.bf16.mxu0 0
      %3680 = vmatpush2.bf16.msra.mxu0 0
      %3681 = vmatprep.mubr.bf16.mxu0 0
      %3682 = vmatmul.mubr.bf16.gmra.mxu0 %v3635
      %v3683 = vpop.f32.mrf.mxu0
      %v3684 = vadd.f32 0.0, %v3683
      %v3685 = vpop.f32.mrf.mxu0
      %v3686 = vpop.f32.mrf.mxu0
      %v3687 = vadd.f32 0.0, %v3686
      %v3688 = vpop.f32.mrf.mxu0
      %3689 = vmatprep.mubr.bf16.mxu0 0
      %3690 = vmatmul.mubr.bf16.gmra.mxu0 %v3638
      %v3691 = vpop.f32.mrf.mxu0
      %v3692 = vadd.f32 0.0, %v3691
      %v3693 = vpop.f32.mrf.mxu0
      %v3694 = vpop.f32.mrf.mxu0
      %v3695 = vadd.f32 0.0, %v3694
      %v3696 = vpop.f32.mrf.mxu0
      %3697 = vmatprep.mubr.bf16.mxu0 0
      %3698 = vmatmul.mubr.bf16.gmra.mxu0 %v3641
      %v3699 = vpop.f32.mrf.mxu0
      %v3700 = vadd.f32 0.0, %v3699
      %v3701 = vpop.f32.mrf.mxu0
      %v3702 = vpop.f32.mrf.mxu0
      %v3703 = vadd.f32 0.0, %v3702
      %v3704 = vpop.f32.mrf.mxu0
      %3705 = vmatprep.mubr.bf16.mxu0 0
      %3706 = vmatmul.mubr.bf16.gmra.mxu0 %v3644
      %v3707 = vpop.f32.mrf.mxu0
      %v3708 = vadd.f32 0.0, %v3707
      %v3709 = vpop.f32.mrf.mxu0
      %v3710 = vpop.f32.mrf.mxu0
      %v3711 = vadd.f32 0.0, %v3710
      %v3712 = vpop.f32.mrf.mxu0
      %3713 = vdwg.mxu0
      %v3714 = vadd.f32 %v3612, %v3684
      %v3715 = vadd.f32 %v3613, %v3687
      %v3716 = vadd.f32 %v3614, %v3692
      %v3717 = vadd.f32 %v3615, %v3695
      %v3718 = vadd.f32 %v3616, %v3700
      %v3719 = vadd.f32 %v3617, %v3703
      %v3720 = vadd.f32 %v3618, %v3708
      %v3721 = vadd.f32 %v3619, %v3711
      %v3722 = vld [vmem:[%s3620 + $0x1] sm:$0xff]
      %v3723 = vld [vmem:[%s3620 + $0x11] sm:$0xff]
      %v3724 = vld [vmem:[%s3620 + $0x21] sm:$0xff]
      %v3725 = vld [vmem:[%s3620 + $0x31] sm:$0xff]
      %v3726 = vld [vmem:[%s3620 + $0x41] sm:$0xff]
      %v3727 = vld [vmem:[%s3620 + $0x51] sm:$0xff]
      %v3728 = vld [vmem:[%s3620 + $0x61] sm:$0xff]
      %v3729 = vld [vmem:[%s3620 + $0x71] sm:$0xff]
      %v3730 = vpack.c.bf16 %v3723, %v3722
      %v3731 = vpack.c.bf16 %v3725, %v3724
      %v3732 = vpack.c.bf16 %v3727, %v3726
      %v3733 = vpack.c.bf16 %v3729, %v3728
      %v3734 = vld [vmem:[%s1297] sm:$0x3]
      %v3736 = vsel %vm200, %v3730, 0
      %v3739 = vsel %vm200, %v3731, 0
      %v3742 = vsel %vm200, %v3732, 0
      %v3745 = vsel %vm200, %v3733, 0
      %v3748 = vsel %vm213, %v3734, 0
      %3750 = vmatprep.subr.bf16.mxu0 0
      %3751 = vmatpush1.bf16.msra.mxu0 0
      %3752 = vmatprep.subr.bf16.mxu0 0
      %3753 = vmatpush1.bf16.msra.mxu0 0
      %3754 = vmatprep.subr.bf16.mxu0 0
      %3755 = vmatpush1.bf16.msra.mxu0 0
      %3756 = vmatprep.subr.bf16.mxu0 0
      %3757 = vmatpush1.bf16.msra.mxu0 0
      %3758 = vmatprep.subr.bf16.mxu0 0
      %3759 = vmatpush1.bf16.msra.mxu0 0
      %3760 = vmatprep.subr.bf16.mxu0 0
      %3761 = vmatpush1.bf16.msra.mxu0 0
      %3762 = vmatprep.subr.bf16.mxu0 0
      %3763 = vmatpush1.bf16.msra.mxu0 0
      %3764 = vmatprep.subr.bf16.mxu0 0
      %3765 = vmatpush1.bf16.msra.mxu0 %v3748
      %3766 = vmatprep.subr.bf16.mxu0 0
      %3767 = vmatpush2.bf16.msra.mxu0 0
      %3768 = vmatprep.subr.bf16.mxu0 0
      %3769 = vmatpush2.bf16.msra.mxu0 0
      %3770 = vmatprep.subr.bf16.mxu0 0
      %3771 = vmatpush2.bf16.msra.mxu0 0
      %3772 = vmatprep.subr.bf16.mxu0 0
      %3773 = vmatpush2.bf16.msra.mxu0 0
      %3774 = vmatprep.subr.bf16.mxu0 0
      %3775 = vmatpush2.bf16.msra.mxu0 0
      %3776 = vmatprep.subr.bf16.mxu0 0
      %3777 = vmatpush2.bf16.msra.mxu0 0
      %3778 = vmatprep.subr.bf16.mxu0 0
      %3779 = vmatpush2.bf16.msra.mxu0 0
      %3780 = vmatprep.subr.bf16.mxu0 0
      %3781 = vmatpush2.bf16.msra.mxu0 0
      %3782 = vmatprep.mubr.bf16.mxu0 0
      %3783 = vmatmul.mubr.bf16.gmra.mxu0 %v3736
      %v3784 = vpop.f32.mrf.mxu0
      %v3785 = vadd.f32 0.0, %v3784
      %v3786 = vpop.f32.mrf.mxu0
      %v3787 = vpop.f32.mrf.mxu0
      %v3788 = vadd.f32 0.0, %v3787
      %v3789 = vpop.f32.mrf.mxu0
      %3790 = vmatprep.mubr.bf16.mxu0 0
      %3791 = vmatmul.mubr.bf16.gmra.mxu0 %v3739
      %v3792 = vpop.f32.mrf.mxu0
      %v3793 = vadd.f32 0.0, %v3792
      %v3794 = vpop.f32.mrf.mxu0
      %v3795 = vpop.f32.mrf.mxu0
      %v3796 = vadd.f32 0.0, %v3795
      %v3797 = vpop.f32.mrf.mxu0
      %3798 = vmatprep.mubr.bf16.mxu0 0
      %3799 = vmatmul.mubr.bf16.gmra.mxu0 %v3742
      %v3800 = vpop.f32.mrf.mxu0
      %v3801 = vadd.f32 0.0, %v3800
      %v3802 = vpop.f32.mrf.mxu0
      %v3803 = vpop.f32.mrf.mxu0
      %v3804 = vadd.f32 0.0, %v3803
      %v3805 = vpop.f32.mrf.mxu0
      %3806 = vmatprep.mubr.bf16.mxu0 0
      %3807 = vmatmul.mubr.bf16.gmra.mxu0 %v3745
      %v3808 = vpop.f32.mrf.mxu0
      %v3809 = vadd.f32 0.0, %v3808
      %v3810 = vpop.f32.mrf.mxu0
      %v3811 = vpop.f32.mrf.mxu0
      %v3812 = vadd.f32 0.0, %v3811
      %v3813 = vpop.f32.mrf.mxu0
      %3814 = vdwg.mxu0
      %v3815 = vadd.f32 %v3714, %v3785
      %v3816 = vadd.f32 %v3715, %v3788
      %v3817 = vadd.f32 %v3716, %v3793
      %v3818 = vadd.f32 %v3717, %v3796
      %v3819 = vadd.f32 %v3718, %v3801
      %v3820 = vadd.f32 %v3719, %v3804
      %v3821 = vadd.f32 %v3720, %v3809
      %v3822 = vadd.f32 %v3721, %v3812
      %v3823 = vadd.f32 %v3815, %v1391
      %v3824 = vadd.f32 %v3816, %v1391
      %v3825 = vadd.f32 %v3817, %v1391
      %v3826 = vadd.f32 %v3818, %v1391
      %v3827 = vadd.f32 %v3819, %v1391
      %v3828 = vadd.f32 %v3820, %v1391
      %v3829 = vadd.f32 %v3821, %v1391
      %v3830 = vadd.f32 %v3822, %v1391
      %s3831 = scalar_lea.vmem %s170, 128
      %3832 = vst.msk [vmem:[%s3831] sm:$0xff] %vm1401, %v3823
      %3833 = vst.msk [vmem:[%s3831 + $0x8] sm:$0xff] %vm1401, %v3824
      %3834 = vst.msk [vmem:[%s3831 + $0x10] sm:$0xff] %vm1401, %v3825
      %3835 = vst.msk [vmem:[%s3831 + $0x18] sm:$0xff] %vm1401, %v3826
      %3836 = vst.msk [vmem:[%s3831 + $0x20] sm:$0xff] %vm1401, %v3827
      %3837 = vst.msk [vmem:[%s3831 + $0x28] sm:$0xff] %vm1401, %v3828
      %3838 = vst.msk [vmem:[%s3831 + $0x30] sm:$0xff] %vm1401, %v3829
      %3839 = vst.msk [vmem:[%s3831 + $0x38] sm:$0xff] %vm1401, %v3830
      %v3840 = vld [vmem:[%s2202] sm:$0xff]
      %v3841 = vld [vmem:[%s2202 + $0x10] sm:$0xff]
      %v3842 = vld [vmem:[%s2202 + $0x20] sm:$0xff]
      %v3843 = vld [vmem:[%s2202 + $0x30] sm:$0xff]
      %v3844 = vld [vmem:[%s2202 + $0x40] sm:$0xff]
      %v3845 = vld [vmem:[%s2202 + $0x50] sm:$0xff]
      %v3846 = vld [vmem:[%s2202 + $0x60] sm:$0xff]
      %v3847 = vld [vmem:[%s2202 + $0x70] sm:$0xff]
      %v3848 = vpack.c.bf16 %v3841, %v3840
      %v3849 = vpack.c.bf16 %v3843, %v3842
      %v3850 = vpack.c.bf16 %v3845, %v3844
      %v3851 = vpack.c.bf16 %v3847, %v3846
      %v3852 = vld [vmem:[%s1] sm:$0x3]
      %v3853 = vld [vmem:[%s2202 + $0x1] sm:$0xff]
      %v3854 = vld [vmem:[%s2202 + $0x11] sm:$0xff]
      %v3855 = vld [vmem:[%s2202 + $0x21] sm:$0xff]
      %v3856 = vld [vmem:[%s2202 + $0x31] sm:$0xff]
      %v3857 = vld [vmem:[%s2202 + $0x41] sm:$0xff]
      %v3858 = vld [vmem:[%s2202 + $0x51] sm:$0xff]
      %v3859 = vld [vmem:[%s2202 + $0x61] sm:$0xff]
      %v3860 = vld [vmem:[%s2202 + $0x71] sm:$0xff]
      %v3861 = vpack.c.bf16 %v3854, %v3853
      %v3862 = vpack.c.bf16 %v3856, %v3855
      %v3863 = vpack.c.bf16 %v3858, %v3857
      %v3864 = vpack.c.bf16 %v3860, %v3859
      %v3865 = vld [vmem:[%s198] sm:$0x3]
      %v3867 = vsel %vm200, %v3861, 0
      %v3870 = vsel %vm200, %v3862, 0
      %v3873 = vsel %vm200, %v3863, 0
      %v3876 = vsel %vm200, %v3864, 0
      %v3879 = vsel %vm213, %v3865, 0
      %3881 = vmatprep.subr.bf16.mxu0 0
      %3882 = vmatpush1.bf16.msra.mxu0 0
      %3883 = vmatprep.subr.bf16.mxu0 0
      %3884 = vmatpush1.bf16.msra.mxu0 0
      %3885 = vmatprep.subr.bf16.mxu0 0
      %3886 = vmatpush1.bf16.msra.mxu0 0
      %3887 = vmatprep.subr.bf16.mxu0 0
      %3888 = vmatpush1.bf16.msra.mxu0 0
      %3889 = vmatprep.subr.bf16.mxu0 0
      %3890 = vmatpush1.bf16.msra.mxu0 0
      %3891 = vmatprep.subr.bf16.mxu0 0
      %3892 = vmatpush1.bf16.msra.mxu0 0
      %3893 = vmatprep.subr.bf16.mxu0 0
      %3894 = vmatpush1.bf16.msra.mxu0 0
      %3895 = vmatprep.subr.bf16.mxu0 0
      %3896 = vmatpush1.bf16.msra.mxu0 %v3879
      %3897 = vmatprep.subr.bf16.mxu0 0
      %3898 = vmatpush2.bf16.msra.mxu0 0
      %3899 = vmatprep.subr.bf16.mxu0 0
      %3900 = vmatpush2.bf16.msra.mxu0 0
      %3901 = vmatprep.subr.bf16.mxu0 0
      %3902 = vmatpush2.bf16.msra.mxu0 0
      %3903 = vmatprep.subr.bf16.mxu0 0
      %3904 = vmatpush2.bf16.msra.mxu0 0
      %3905 = vmatprep.subr.bf16.mxu0 0
      %3906 = vmatpush2.bf16.msra.mxu0 0
      %3907 = vmatprep.subr.bf16.mxu0 0
      %3908 = vmatpush2.bf16.msra.mxu0 0
      %3909 = vmatprep.subr.bf16.mxu0 0
      %3910 = vmatpush2.bf16.msra.mxu0 0
      %3911 = vmatprep.subr.bf16.mxu0 0
      %3912 = vmatpush2.bf16.msra.mxu0 0
      %3913 = vmatprep.mubr.bf16.mxu0 0
      %3914 = vmatmul.mubr.bf16.gmra.mxu0 %v3867
      %v3915 = vpop.f32.mrf.mxu0
      %v3916 = vadd.f32 0.0, %v3915
      %v3917 = vpop.f32.mrf.mxu0
      %v3918 = vpop.f32.mrf.mxu0
      %v3919 = vadd.f32 0.0, %v3918
      %v3920 = vpop.f32.mrf.mxu0
      %3921 = vmatprep.mubr.bf16.mxu0 0
      %3922 = vmatmul.mubr.bf16.gmra.mxu0 %v3870
      %v3923 = vpop.f32.mrf.mxu0
      %v3924 = vadd.f32 0.0, %v3923
      %v3925 = vpop.f32.mrf.mxu0
      %v3926 = vpop.f32.mrf.mxu0
      %v3927 = vadd.f32 0.0, %v3926
      %v3928 = vpop.f32.mrf.mxu0
      %3929 = vmatprep.mubr.bf16.mxu0 0
      %3930 = vmatmul.mubr.bf16.gmra.mxu0 %v3873
      %v3931 = vpop.f32.mrf.mxu0
      %v3932 = vadd.f32 0.0, %v3931
      %v3933 = vpop.f32.mrf.mxu0
      %v3934 = vpop.f32.mrf.mxu0
      %v3935 = vadd.f32 0.0, %v3934
      %v3936 = vpop.f32.mrf.mxu0
      %3937 = vmatprep.mubr.bf16.mxu0 0
      %3938 = vmatmul.mubr.bf16.gmra.mxu0 %v3876
      %v3939 = vpop.f32.mrf.mxu0
      %v3940 = vadd.f32 0.0, %v3939
      %v3941 = vpop.f32.mrf.mxu0
      %v3942 = vpop.f32.mrf.mxu0
      %v3943 = vadd.f32 0.0, %v3942
      %v3944 = vpop.f32.mrf.mxu0
      %3945 = vdwg.mxu0
      %v3947 = vsel %vm200, %v3848, 0
      %v3950 = vsel %vm200, %v3849, 0
      %v3953 = vsel %vm200, %v3850, 0
      %v3956 = vsel %vm200, %v3851, 0
      %v3959 = vsel %vm213, %v3852, 0
      %3961 = vmatprep.subr.bf16.mxu0 0
      %3962 = vmatpush1.bf16.msra.mxu0 0
      %3963 = vmatprep.subr.bf16.mxu0 0
      %3964 = vmatpush1.bf16.msra.mxu0 0
      %3965 = vmatprep.subr.bf16.mxu0 0
      %3966 = vmatpush1.bf16.msra.mxu0 0
      %3967 = vmatprep.subr.bf16.mxu0 0
      %3968 = vmatpush1.bf16.msra.mxu0 0
      %3969 = vmatprep.subr.bf16.mxu0 0
      %3970 = vmatpush1.bf16.msra.mxu0 0
      %3971 = vmatprep.subr.bf16.mxu0 0
      %3972 = vmatpush1.bf16.msra.mxu0 0
      %3973 = vmatprep.subr.bf16.mxu0 0
      %3974 = vmatpush1.bf16.msra.mxu0 0
      %3975 = vmatprep.subr.bf16.mxu0 0
      %3976 = vmatpush1.bf16.msra.mxu0 %v3959
      %3977 = vmatprep.subr.bf16.mxu0 0
      %3978 = vmatpush2.bf16.msra.mxu0 0
      %3979 = vmatprep.subr.bf16.mxu0 0
      %3980 = vmatpush2.bf16.msra.mxu0 0
      %3981 = vmatprep.subr.bf16.mxu0 0
      %3982 = vmatpush2.bf16.msra.mxu0 0
      %3983 = vmatprep.subr.bf16.mxu0 0
      %3984 = vmatpush2.bf16.msra.mxu0 0
      %3985 = vmatprep.subr.bf16.mxu0 0
      %3986 = vmatpush2.bf16.msra.mxu0 0
      %3987 = vmatprep.subr.bf16.mxu0 0
      %3988 = vmatpush2.bf16.msra.mxu0 0
      %3989 = vmatprep.subr.bf16.mxu0 0
      %3990 = vmatpush2.bf16.msra.mxu0 0
      %3991 = vmatprep.subr.bf16.mxu0 0
      %3992 = vmatpush2.bf16.msra.mxu0 0
      %3993 = vmatprep.mubr.bf16.mxu0 0
      %3994 = vmatmul.mubr.bf16.gmra.mxu0 %v3947
      %v3995 = vpop.f32.mrf.mxu0
      %v3996 = vadd.f32 %v3916, %v3995
      %v3997 = vpop.f32.mrf.mxu0
      %v3998 = vpop.f32.mrf.mxu0
      %v3999 = vadd.f32 %v3919, %v3998
      %v4000 = vpop.f32.mrf.mxu0
      %4001 = vmatprep.mubr.bf16.mxu0 0
      %4002 = vmatmul.mubr.bf16.gmra.mxu0 %v3950
      %v4003 = vpop.f32.mrf.mxu0
      %v4004 = vadd.f32 %v3924, %v4003
      %v4005 = vpop.f32.mrf.mxu0
      %v4006 = vpop.f32.mrf.mxu0
      %v4007 = vadd.f32 %v3927, %v4006
      %v4008 = vpop.f32.mrf.mxu0
      %4009 = vmatprep.mubr.bf16.mxu0 0
      %4010 = vmatmul.mubr.bf16.gmra.mxu0 %v3953
      %v4011 = vpop.f32.mrf.mxu0
      %v4012 = vadd.f32 %v3932, %v4011
      %v4013 = vpop.f32.mrf.mxu0
      %v4014 = vpop.f32.mrf.mxu0
      %v4015 = vadd.f32 %v3935, %v4014
      %v4016 = vpop.f32.mrf.mxu0
      %4017 = vmatprep.mubr.bf16.mxu0 0
      %4018 = vmatmul.mubr.bf16.gmra.mxu0 %v3956
      %v4019 = vpop.f32.mrf.mxu0
      %v4020 = vadd.f32 %v3940, %v4019
      %v4021 = vpop.f32.mrf.mxu0
      %v4022 = vpop.f32.mrf.mxu0
      %v4023 = vadd.f32 %v3943, %v4022
      %v4024 = vpop.f32.mrf.mxu0
      %4025 = vdwg.mxu0
      %v4026 = vld [vmem:[%s2405] sm:$0xff]
      %v4027 = vld [vmem:[%s2405 + $0x10] sm:$0xff]
      %v4028 = vld [vmem:[%s2405 + $0x20] sm:$0xff]
      %v4029 = vld [vmem:[%s2405 + $0x30] sm:$0xff]
      %v4030 = vld [vmem:[%s2405 + $0x40] sm:$0xff]
      %v4031 = vld [vmem:[%s2405 + $0x50] sm:$0xff]
      %v4032 = vld [vmem:[%s2405 + $0x60] sm:$0xff]
      %v4033 = vld [vmem:[%s2405 + $0x70] sm:$0xff]
      %v4034 = vpack.c.bf16 %v4027, %v4026
      %v4035 = vpack.c.bf16 %v4029, %v4028
      %v4036 = vpack.c.bf16 %v4031, %v4030
      %v4037 = vpack.c.bf16 %v4033, %v4032
      %v4038 = vld [vmem:[%s375] sm:$0x3]
      %v4040 = vsel %vm200, %v4034, 0
      %v4043 = vsel %vm200, %v4035, 0
      %v4046 = vsel %vm200, %v4036, 0
      %v4049 = vsel %vm200, %v4037, 0
      %v4052 = vsel %vm213, %v4038, 0
      %4054 = vmatprep.subr.bf16.mxu0 0
      %4055 = vmatpush1.bf16.msra.mxu0 0
      %4056 = vmatprep.subr.bf16.mxu0 0
      %4057 = vmatpush1.bf16.msra.mxu0 0
      %4058 = vmatprep.subr.bf16.mxu0 0
      %4059 = vmatpush1.bf16.msra.mxu0 0
      %4060 = vmatprep.subr.bf16.mxu0 0
      %4061 = vmatpush1.bf16.msra.mxu0 0
      %4062 = vmatprep.subr.bf16.mxu0 0
      %4063 = vmatpush1.bf16.msra.mxu0 0
      %4064 = vmatprep.subr.bf16.mxu0 0
      %4065 = vmatpush1.bf16.msra.mxu0 0
      %4066 = vmatprep.subr.bf16.mxu0 0
      %4067 = vmatpush1.bf16.msra.mxu0 0
      %4068 = vmatprep.subr.bf16.mxu0 0
      %4069 = vmatpush1.bf16.msra.mxu0 %v4052
      %4070 = vmatprep.subr.bf16.mxu0 0
      %4071 = vmatpush2.bf16.msra.mxu0 0
      %4072 = vmatprep.subr.bf16.mxu0 0
      %4073 = vmatpush2.bf16.msra.mxu0 0
      %4074 = vmatprep.subr.bf16.mxu0 0
      %4075 = vmatpush2.bf16.msra.mxu0 0
      %4076 = vmatprep.subr.bf16.mxu0 0
      %4077 = vmatpush2.bf16.msra.mxu0 0
      %4078 = vmatprep.subr.bf16.mxu0 0
      %4079 = vmatpush2.bf16.msra.mxu0 0
      %4080 = vmatprep.subr.bf16.mxu0 0
      %4081 = vmatpush2.bf16.msra.mxu0 0
      %4082 = vmatprep.subr.bf16.mxu0 0
      %4083 = vmatpush2.bf16.msra.mxu0 0
      %4084 = vmatprep.subr.bf16.mxu0 0
      %4085 = vmatpush2.bf16.msra.mxu0 0
      %4086 = vmatprep.mubr.bf16.mxu0 0
      %4087 = vmatmul.mubr.bf16.gmra.mxu0 %v4040
      %v4088 = vpop.f32.mrf.mxu0
      %v4089 = vadd.f32 0.0, %v4088
      %v4090 = vpop.f32.mrf.mxu0
      %v4091 = vpop.f32.mrf.mxu0
      %v4092 = vadd.f32 0.0, %v4091
      %v4093 = vpop.f32.mrf.mxu0
      %4094 = vmatprep.mubr.bf16.mxu0 0
      %4095 = vmatmul.mubr.bf16.gmra.mxu0 %v4043
      %v4096 = vpop.f32.mrf.mxu0
      %v4097 = vadd.f32 0.0, %v4096
      %v4098 = vpop.f32.mrf.mxu0
      %v4099 = vpop.f32.mrf.mxu0
      %v4100 = vadd.f32 0.0, %v4099
      %v4101 = vpop.f32.mrf.mxu0
      %4102 = vmatprep.mubr.bf16.mxu0 0
      %4103 = vmatmul.mubr.bf16.gmra.mxu0 %v4046
      %v4104 = vpop.f32.mrf.mxu0
      %v4105 = vadd.f32 0.0, %v4104
      %v4106 = vpop.f32.mrf.mxu0
      %v4107 = vpop.f32.mrf.mxu0
      %v4108 = vadd.f32 0.0, %v4107
      %v4109 = vpop.f32.mrf.mxu0
      %4110 = vmatprep.mubr.bf16.mxu0 0
      %4111 = vmatmul.mubr.bf16.gmra.mxu0 %v4049
      %v4112 = vpop.f32.mrf.mxu0
      %v4113 = vadd.f32 0.0, %v4112
      %v4114 = vpop.f32.mrf.mxu0
      %v4115 = vpop.f32.mrf.mxu0
      %v4116 = vadd.f32 0.0, %v4115
      %v4117 = vpop.f32.mrf.mxu0
      %4118 = vdwg.mxu0
      %v4119 = vadd.f32 %v3996, %v4089
      %v4120 = vadd.f32 %v3999, %v4092
      %v4121 = vadd.f32 %v4004, %v4097
      %v4122 = vadd.f32 %v4007, %v4100
      %v4123 = vadd.f32 %v4012, %v4105
      %v4124 = vadd.f32 %v4015, %v4108
      %v4125 = vadd.f32 %v4020, %v4113
      %v4126 = vadd.f32 %v4023, %v4116
      %v4127 = vld [vmem:[%s2405 + $0x1] sm:$0xff]
      %v4128 = vld [vmem:[%s2405 + $0x11] sm:$0xff]
      %v4129 = vld [vmem:[%s2405 + $0x21] sm:$0xff]
      %v4130 = vld [vmem:[%s2405 + $0x31] sm:$0xff]
      %v4131 = vld [vmem:[%s2405 + $0x41] sm:$0xff]
      %v4132 = vld [vmem:[%s2405 + $0x51] sm:$0xff]
      %v4133 = vld [vmem:[%s2405 + $0x61] sm:$0xff]
      %v4134 = vld [vmem:[%s2405 + $0x71] sm:$0xff]
      %v4135 = vpack.c.bf16 %v4128, %v4127
      %v4136 = vpack.c.bf16 %v4130, %v4129
      %v4137 = vpack.c.bf16 %v4132, %v4131
      %v4138 = vpack.c.bf16 %v4134, %v4133
      %v4139 = vld [vmem:[%s477] sm:$0x3]
      %v4141 = vsel %vm200, %v4135, 0
      %v4144 = vsel %vm200, %v4136, 0
      %v4147 = vsel %vm200, %v4137, 0
      %v4150 = vsel %vm200, %v4138, 0
      %v4153 = vsel %vm213, %v4139, 0
      %4155 = vmatprep.subr.bf16.mxu0 0
      %4156 = vmatpush1.bf16.msra.mxu0 0
      %4157 = vmatprep.subr.bf16.mxu0 0
      %4158 = vmatpush1.bf16.msra.mxu0 0
      %4159 = vmatprep.subr.bf16.mxu0 0
      %4160 = vmatpush1.bf16.msra.mxu0 0
      %4161 = vmatprep.subr.bf16.mxu0 0
      %4162 = vmatpush1.bf16.msra.mxu0 0
      %4163 = vmatprep.subr.bf16.mxu0 0
      %4164 = vmatpush1.bf16.msra.mxu0 0
      %4165 = vmatprep.subr.bf16.mxu0 0
      %4166 = vmatpush1.bf16.msra.mxu0 0
      %4167 = vmatprep.subr.bf16.mxu0 0
      %4168 = vmatpush1.bf16.msra.mxu0 0
      %4169 = vmatprep.subr.bf16.mxu0 0
      %4170 = vmatpush1.bf16.msra.mxu0 %v4153
      %4171 = vmatprep.subr.bf16.mxu0 0
      %4172 = vmatpush2.bf16.msra.mxu0 0
      %4173 = vmatprep.subr.bf16.mxu0 0
      %4174 = vmatpush2.bf16.msra.mxu0 0
      %4175 = vmatprep.subr.bf16.mxu0 0
      %4176 = vmatpush2.bf16.msra.mxu0 0
      %4177 = vmatprep.subr.bf16.mxu0 0
      %4178 = vmatpush2.bf16.msra.mxu0 0
      %4179 = vmatprep.subr.bf16.mxu0 0
      %4180 = vmatpush2.bf16.msra.mxu0 0
      %4181 = vmatprep.subr.bf16.mxu0 0
      %4182 = vmatpush2.bf16.msra.mxu0 0
      %4183 = vmatprep.subr.bf16.mxu0 0
      %4184 = vmatpush2.bf16.msra.mxu0 0
      %4185 = vmatprep.subr.bf16.mxu0 0
      %4186 = vmatpush2.bf16.msra.mxu0 0
      %4187 = vmatprep.mubr.bf16.mxu0 0
      %4188 = vmatmul.mubr.bf16.gmra.mxu0 %v4141
      %v4189 = vpop.f32.mrf.mxu0
      %v4190 = vadd.f32 0.0, %v4189
      %v4191 = vpop.f32.mrf.mxu0
      %v4192 = vpop.f32.mrf.mxu0
      %v4193 = vadd.f32 0.0, %v4192
      %v4194 = vpop.f32.mrf.mxu0
      %4195 = vmatprep.mubr.bf16.mxu0 0
      %4196 = vmatmul.mubr.bf16.gmra.mxu0 %v4144
      %v4197 = vpop.f32.mrf.mxu0
      %v4198 = vadd.f32 0.0, %v4197
      %v4199 = vpop.f32.mrf.mxu0
      %v4200 = vpop.f32.mrf.mxu0
      %v4201 = vadd.f32 0.0, %v4200
      %v4202 = vpop.f32.mrf.mxu0
      %4203 = vmatprep.mubr.bf16.mxu0 0
      %4204 = vmatmul.mubr.bf16.gmra.mxu0 %v4147
      %v4205 = vpop.f32.mrf.mxu0
      %v4206 = vadd.f32 0.0, %v4205
      %v4207 = vpop.f32.mrf.mxu0
      %v4208 = vpop.f32.mrf.mxu0
      %v4209 = vadd.f32 0.0, %v4208
      %v4210 = vpop.f32.mrf.mxu0
      %4211 = vmatprep.mubr.bf16.mxu0 0
      %4212 = vmatmul.mubr.bf16.gmra.mxu0 %v4150
      %v4213 = vpop.f32.mrf.mxu0
      %v4214 = vadd.f32 0.0, %v4213
      %v4215 = vpop.f32.mrf.mxu0
      %v4216 = vpop.f32.mrf.mxu0
      %v4217 = vadd.f32 0.0, %v4216
      %v4218 = vpop.f32.mrf.mxu0
      %4219 = vdwg.mxu0
      %v4220 = vadd.f32 %v4119, %v4190
      %v4221 = vadd.f32 %v4120, %v4193
      %v4222 = vadd.f32 %v4121, %v4198
      %v4223 = vadd.f32 %v4122, %v4201
      %v4224 = vadd.f32 %v4123, %v4206
      %v4225 = vadd.f32 %v4124, %v4209
      %v4226 = vadd.f32 %v4125, %v4214
      %v4227 = vadd.f32 %v4126, %v4217
      %v4228 = vld [vmem:[%s3417] sm:$0xff]
      %v4229 = vld [vmem:[%s3417 + $0x10] sm:$0xff]
      %v4230 = vld [vmem:[%s3417 + $0x20] sm:$0xff]
      %v4231 = vld [vmem:[%s3417 + $0x30] sm:$0xff]
      %v4232 = vld [vmem:[%s3417 + $0x40] sm:$0xff]
      %v4233 = vld [vmem:[%s3417 + $0x50] sm:$0xff]
      %v4234 = vld [vmem:[%s3417 + $0x60] sm:$0xff]
      %v4235 = vld [vmem:[%s3417 + $0x70] sm:$0xff]
      %v4236 = vpack.c.bf16 %v4229, %v4228
      %v4237 = vpack.c.bf16 %v4231, %v4230
      %v4238 = vpack.c.bf16 %v4233, %v4232
      %v4239 = vpack.c.bf16 %v4235, %v4234
      %v4240 = vld [vmem:[%s580] sm:$0x3]
      %v4242 = vsel %vm200, %v4236, 0
      %v4245 = vsel %vm200, %v4237, 0
      %v4248 = vsel %vm200, %v4238, 0
      %v4251 = vsel %vm200, %v4239, 0
      %v4254 = vsel %vm213, %v4240, 0
      %4256 = vmatprep.subr.bf16.mxu0 0
      %4257 = vmatpush1.bf16.msra.mxu0 0
      %4258 = vmatprep.subr.bf16.mxu0 0
      %4259 = vmatpush1.bf16.msra.mxu0 0
      %4260 = vmatprep.subr.bf16.mxu0 0
      %4261 = vmatpush1.bf16.msra.mxu0 0
      %4262 = vmatprep.subr.bf16.mxu0 0
      %4263 = vmatpush1.bf16.msra.mxu0 0
      %4264 = vmatprep.subr.bf16.mxu0 0
      %4265 = vmatpush1.bf16.msra.mxu0 0
      %4266 = vmatprep.subr.bf16.mxu0 0
      %4267 = vmatpush1.bf16.msra.mxu0 0
      %4268 = vmatprep.subr.bf16.mxu0 0
      %4269 = vmatpush1.bf16.msra.mxu0 0
      %4270 = vmatprep.subr.bf16.mxu0 0
      %4271 = vmatpush1.bf16.msra.mxu0 %v4254
      %4272 = vmatprep.subr.bf16.mxu0 0
      %4273 = vmatpush2.bf16.msra.mxu0 0
      %4274 = vmatprep.subr.bf16.mxu0 0
      %4275 = vmatpush2.bf16.msra.mxu0 0
      %4276 = vmatprep.subr.bf16.mxu0 0
      %4277 = vmatpush2.bf16.msra.mxu0 0
      %4278 = vmatprep.subr.bf16.mxu0 0
      %4279 = vmatpush2.bf16.msra.mxu0 0
      %4280 = vmatprep.subr.bf16.mxu0 0
      %4281 = vmatpush2.bf16.msra.mxu0 0
      %4282 = vmatprep.subr.bf16.mxu0 0
      %4283 = vmatpush2.bf16.msra.mxu0 0
      %4284 = vmatprep.subr.bf16.mxu0 0
      %4285 = vmatpush2.bf16.msra.mxu0 0
      %4286 = vmatprep.subr.bf16.mxu0 0
      %4287 = vmatpush2.bf16.msra.mxu0 0
      %4288 = vmatprep.mubr.bf16.mxu0 0
      %4289 = vmatmul.mubr.bf16.gmra.mxu0 %v4242
      %v4290 = vpop.f32.mrf.mxu0
      %v4291 = vadd.f32 0.0, %v4290
      %v4292 = vpop.f32.mrf.mxu0
      %v4293 = vpop.f32.mrf.mxu0
      %v4294 = vadd.f32 0.0, %v4293
      %v4295 = vpop.f32.mrf.mxu0
      %4296 = vmatprep.mubr.bf16.mxu0 0
      %4297 = vmatmul.mubr.bf16.gmra.mxu0 %v4245
      %v4298 = vpop.f32.mrf.mxu0
      %v4299 = vadd.f32 0.0, %v4298
      %v4300 = vpop.f32.mrf.mxu0
      %v4301 = vpop.f32.mrf.mxu0
      %v4302 = vadd.f32 0.0, %v4301
      %v4303 = vpop.f32.mrf.mxu0
      %4304 = vmatprep.mubr.bf16.mxu0 0
      %4305 = vmatmul.mubr.bf16.gmra.mxu0 %v4248
      %v4306 = vpop.f32.mrf.mxu0
      %v4307 = vadd.f32 0.0, %v4306
      %v4308 = vpop.f32.mrf.mxu0
      %v4309 = vpop.f32.mrf.mxu0
      %v4310 = vadd.f32 0.0, %v4309
      %v4311 = vpop.f32.mrf.mxu0
      %4312 = vmatprep.mubr.bf16.mxu0 0
      %4313 = vmatmul.mubr.bf16.gmra.mxu0 %v4251
      %v4314 = vpop.f32.mrf.mxu0
      %v4315 = vadd.f32 0.0, %v4314
      %v4316 = vpop.f32.mrf.mxu0
      %v4317 = vpop.f32.mrf.mxu0
      %v4318 = vadd.f32 0.0, %v4317
      %v4319 = vpop.f32.mrf.mxu0
      %4320 = vdwg.mxu0
      %v4321 = vadd.f32 %v4220, %v4291
      %v4322 = vadd.f32 %v4221, %v4294
      %v4323 = vadd.f32 %v4222, %v4299
      %v4324 = vadd.f32 %v4223, %v4302
      %v4325 = vadd.f32 %v4224, %v4307
      %v4326 = vadd.f32 %v4225, %v4310
      %v4327 = vadd.f32 %v4226, %v4315
      %v4328 = vadd.f32 %v4227, %v4318
      %v4329 = vld [vmem:[%s3417 + $0x1] sm:$0xff]
      %v4330 = vld [vmem:[%s3417 + $0x11] sm:$0xff]
      %v4331 = vld [vmem:[%s3417 + $0x21] sm:$0xff]
      %v4332 = vld [vmem:[%s3417 + $0x31] sm:$0xff]
      %v4333 = vld [vmem:[%s3417 + $0x41] sm:$0xff]
      %v4334 = vld [vmem:[%s3417 + $0x51] sm:$0xff]
      %v4335 = vld [vmem:[%s3417 + $0x61] sm:$0xff]
      %v4336 = vld [vmem:[%s3417 + $0x71] sm:$0xff]
      %v4337 = vpack.c.bf16 %v4330, %v4329
      %v4338 = vpack.c.bf16 %v4332, %v4331
      %v4339 = vpack.c.bf16 %v4334, %v4333
      %v4340 = vpack.c.bf16 %v4336, %v4335
      %v4341 = vld [vmem:[%s682] sm:$0x3]
      %v4343 = vsel %vm200, %v4337, 0
      %v4346 = vsel %vm200, %v4338, 0
      %v4349 = vsel %vm200, %v4339, 0
      %v4352 = vsel %vm200, %v4340, 0
      %v4355 = vsel %vm213, %v4341, 0
      %4357 = vmatprep.subr.bf16.mxu0 0
      %4358 = vmatpush1.bf16.msra.mxu0 0
      %4359 = vmatprep.subr.bf16.mxu0 0
      %4360 = vmatpush1.bf16.msra.mxu0 0
      %4361 = vmatprep.subr.bf16.mxu0 0
      %4362 = vmatpush1.bf16.msra.mxu0 0
      %4363 = vmatprep.subr.bf16.mxu0 0
      %4364 = vmatpush1.bf16.msra.mxu0 0
      %4365 = vmatprep.subr.bf16.mxu0 0
      %4366 = vmatpush1.bf16.msra.mxu0 0
      %4367 = vmatprep.subr.bf16.mxu0 0
      %4368 = vmatpush1.bf16.msra.mxu0 0
      %4369 = vmatprep.subr.bf16.mxu0 0
      %4370 = vmatpush1.bf16.msra.mxu0 0
      %4371 = vmatprep.subr.bf16.mxu0 0
      %4372 = vmatpush1.bf16.msra.mxu0 %v4355
      %4373 = vmatprep.subr.bf16.mxu0 0
      %4374 = vmatpush2.bf16.msra.mxu0 0
      %4375 = vmatprep.subr.bf16.mxu0 0
      %4376 = vmatpush2.bf16.msra.mxu0 0
      %4377 = vmatprep.subr.bf16.mxu0 0
      %4378 = vmatpush2.bf16.msra.mxu0 0
      %4379 = vmatprep.subr.bf16.mxu0 0
      %4380 = vmatpush2.bf16.msra.mxu0 0
      %4381 = vmatprep.subr.bf16.mxu0 0
      %4382 = vmatpush2.bf16.msra.mxu0 0
      %4383 = vmatprep.subr.bf16.mxu0 0
      %4384 = vmatpush2.bf16.msra.mxu0 0
      %4385 = vmatprep.subr.bf16.mxu0 0
      %4386 = vmatpush2.bf16.msra.mxu0 0
      %4387 = vmatprep.subr.bf16.mxu0 0
      %4388 = vmatpush2.bf16.msra.mxu0 0
      %4389 = vmatprep.mubr.bf16.mxu0 0
      %4390 = vmatmul.mubr.bf16.gmra.mxu0 %v4343
      %v4391 = vpop.f32.mrf.mxu0
      %v4392 = vadd.f32 0.0, %v4391
      %v4393 = vpop.f32.mrf.mxu0
      %v4394 = vpop.f32.mrf.mxu0
      %v4395 = vadd.f32 0.0, %v4394
      %v4396 = vpop.f32.mrf.mxu0
      %4397 = vmatprep.mubr.bf16.mxu0 0
      %4398 = vmatmul.mubr.bf16.gmra.mxu0 %v4346
      %v4399 = vpop.f32.mrf.mxu0
      %v4400 = vadd.f32 0.0, %v4399
      %v4401 = vpop.f32.mrf.mxu0
      %v4402 = vpop.f32.mrf.mxu0
      %v4403 = vadd.f32 0.0, %v4402
      %v4404 = vpop.f32.mrf.mxu0
      %4405 = vmatprep.mubr.bf16.mxu0 0
      %4406 = vmatmul.mubr.bf16.gmra.mxu0 %v4349
      %v4407 = vpop.f32.mrf.mxu0
      %v4408 = vadd.f32 0.0, %v4407
      %v4409 = vpop.f32.mrf.mxu0
      %v4410 = vpop.f32.mrf.mxu0
      %v4411 = vadd.f32 0.0, %v4410
      %v4412 = vpop.f32.mrf.mxu0
      %4413 = vmatprep.mubr.bf16.mxu0 0
      %4414 = vmatmul.mubr.bf16.gmra.mxu0 %v4352
      %v4415 = vpop.f32.mrf.mxu0
      %v4416 = vadd.f32 0.0, %v4415
      %v4417 = vpop.f32.mrf.mxu0
      %v4418 = vpop.f32.mrf.mxu0
      %v4419 = vadd.f32 0.0, %v4418
      %v4420 = vpop.f32.mrf.mxu0
      %4421 = vdwg.mxu0
      %v4422 = vadd.f32 %v4321, %v4392
      %v4423 = vadd.f32 %v4322, %v4395
      %v4424 = vadd.f32 %v4323, %v4400
      %v4425 = vadd.f32 %v4324, %v4403
      %v4426 = vadd.f32 %v4325, %v4408
      %v4427 = vadd.f32 %v4326, %v4411
      %v4428 = vadd.f32 %v4327, %v4416
      %v4429 = vadd.f32 %v4328, %v4419
      %v4430 = vld [vmem:[%s3620] sm:$0xff]
      %v4431 = vld [vmem:[%s3620 + $0x10] sm:$0xff]
      %v4432 = vld [vmem:[%s3620 + $0x20] sm:$0xff]
      %v4433 = vld [vmem:[%s3620 + $0x30] sm:$0xff]
      %v4434 = vld [vmem:[%s3620 + $0x40] sm:$0xff]
      %v4435 = vld [vmem:[%s3620 + $0x50] sm:$0xff]
      %v4436 = vld [vmem:[%s3620 + $0x60] sm:$0xff]
      %v4437 = vld [vmem:[%s3620 + $0x70] sm:$0xff]
      %v4438 = vpack.c.bf16 %v4431, %v4430
      %v4439 = vpack.c.bf16 %v4433, %v4432
      %v4440 = vpack.c.bf16 %v4435, %v4434
      %v4441 = vpack.c.bf16 %v4437, %v4436
      %v4442 = vld [vmem:[%s785] sm:$0x3]
      %v4444 = vsel %vm200, %v4438, 0
      %v4447 = vsel %vm200, %v4439, 0
      %v4450 = vsel %vm200, %v4440, 0
      %v4453 = vsel %vm200, %v4441, 0
      %v4456 = vsel %vm213, %v4442, 0
      %4458 = vmatprep.subr.bf16.mxu0 0
      %4459 = vmatpush1.bf16.msra.mxu0 0
      %4460 = vmatprep.subr.bf16.mxu0 0
      %4461 = vmatpush1.bf16.msra.mxu0 0
      %4462 = vmatprep.subr.bf16.mxu0 0
      %4463 = vmatpush1.bf16.msra.mxu0 0
      %4464 = vmatprep.subr.bf16.mxu0 0
      %4465 = vmatpush1.bf16.msra.mxu0 0
      %4466 = vmatprep.subr.bf16.mxu0 0
      %4467 = vmatpush1.bf16.msra.mxu0 0
      %4468 = vmatprep.subr.bf16.mxu0 0
      %4469 = vmatpush1.bf16.msra.mxu0 0
      %4470 = vmatprep.subr.bf16.mxu0 0
      %4471 = vmatpush1.bf16.msra.mxu0 0
      %4472 = vmatprep.subr.bf16.mxu0 0
      %4473 = vmatpush1.bf16.msra.mxu0 %v4456
      %4474 = vmatprep.subr.bf16.mxu0 0
      %4475 = vmatpush2.bf16.msra.mxu0 0
      %4476 = vmatprep.subr.bf16.mxu0 0
      %4477 = vmatpush2.bf16.msra.mxu0 0
      %4478 = vmatprep.subr.bf16.mxu0 0
      %4479 = vmatpush2.bf16.msra.mxu0 0
      %4480 = vmatprep.subr.bf16.mxu0 0
      %4481 = vmatpush2.bf16.msra.mxu0 0
      %4482 = vmatprep.subr.bf16.mxu0 0
      %4483 = vmatpush2.bf16.msra.mxu0 0
      %4484 = vmatprep.subr.bf16.mxu0 0
      %4485 = vmatpush2.bf16.msra.mxu0 0
      %4486 = vmatprep.subr.bf16.mxu0 0
      %4487 = vmatpush2.bf16.msra.mxu0 0
      %4488 = vmatprep.subr.bf16.mxu0 0
      %4489 = vmatpush2.bf16.msra.mxu0 0
      %4490 = vmatprep.mubr.bf16.mxu0 0
      %4491 = vmatmul.mubr.bf16.gmra.mxu0 %v4444
      %v4492 = vpop.f32.mrf.mxu0
      %v4493 = vadd.f32 0.0, %v4492
      %v4494 = vpop.f32.mrf.mxu0
      %v4495 = vpop.f32.mrf.mxu0
      %v4496 = vadd.f32 0.0, %v4495
      %v4497 = vpop.f32.mrf.mxu0
      %4498 = vmatprep.mubr.bf16.mxu0 0
      %4499 = vmatmul.mubr.bf16.gmra.mxu0 %v4447
      %v4500 = vpop.f32.mrf.mxu0
      %v4501 = vadd.f32 0.0, %v4500
      %v4502 = vpop.f32.mrf.mxu0
      %v4503 = vpop.f32.mrf.mxu0
      %v4504 = vadd.f32 0.0, %v4503
      %v4505 = vpop.f32.mrf.mxu0
      %4506 = vmatprep.mubr.bf16.mxu0 0
      %4507 = vmatmul.mubr.bf16.gmra.mxu0 %v4450
      %v4508 = vpop.f32.mrf.mxu0
      %v4509 = vadd.f32 0.0, %v4508
      %v4510 = vpop.f32.mrf.mxu0
      %v4511 = vpop.f32.mrf.mxu0
      %v4512 = vadd.f32 0.0, %v4511
      %v4513 = vpop.f32.mrf.mxu0
      %4514 = vmatprep.mubr.bf16.mxu0 0
      %4515 = vmatmul.mubr.bf16.gmra.mxu0 %v4453
      %v4516 = vpop.f32.mrf.mxu0
      %v4517 = vadd.f32 0.0, %v4516
      %v4518 = vpop.f32.mrf.mxu0
      %v4519 = vpop.f32.mrf.mxu0
      %v4520 = vadd.f32 0.0, %v4519
      %v4521 = vpop.f32.mrf.mxu0
      %4522 = vdwg.mxu0
      %v4523 = vadd.f32 %v4422, %v4493
      %v4524 = vadd.f32 %v4423, %v4496
      %v4525 = vadd.f32 %v4424, %v4501
      %v4526 = vadd.f32 %v4425, %v4504
      %v4527 = vadd.f32 %v4426, %v4509
      %v4528 = vadd.f32 %v4427, %v4512
      %v4529 = vadd.f32 %v4428, %v4517
      %v4530 = vadd.f32 %v4429, %v4520
      %v4531 = vld [vmem:[%s3620 + $0x1] sm:$0xff]
      %v4532 = vld [vmem:[%s3620 + $0x11] sm:$0xff]
      %v4533 = vld [vmem:[%s3620 + $0x21] sm:$0xff]
      %v4534 = vld [vmem:[%s3620 + $0x31] sm:$0xff]
      %v4535 = vld [vmem:[%s3620 + $0x41] sm:$0xff]
      %v4536 = vld [vmem:[%s3620 + $0x51] sm:$0xff]
      %v4537 = vld [vmem:[%s3620 + $0x61] sm:$0xff]
      %v4538 = vld [vmem:[%s3620 + $0x71] sm:$0xff]
      %v4539 = vpack.c.bf16 %v4532, %v4531
      %v4540 = vpack.c.bf16 %v4534, %v4533
      %v4541 = vpack.c.bf16 %v4536, %v4535
      %v4542 = vpack.c.bf16 %v4538, %v4537
      %v4543 = vld [vmem:[%s887] sm:$0x3]
      %v4545 = vsel %vm200, %v4539, 0
      %v4548 = vsel %vm200, %v4540, 0
      %v4551 = vsel %vm200, %v4541, 0
      %v4554 = vsel %vm200, %v4542, 0
      %v4557 = vsel %vm213, %v4543, 0
      %4559 = vmatprep.subr.bf16.mxu0 0
      %4560 = vmatpush1.bf16.msra.mxu0 0
      %4561 = vmatprep.subr.bf16.mxu0 0
      %4562 = vmatpush1.bf16.msra.mxu0 0
      %4563 = vmatprep.subr.bf16.mxu0 0
      %4564 = vmatpush1.bf16.msra.mxu0 0
      %4565 = vmatprep.subr.bf16.mxu0 0
      %4566 = vmatpush1.bf16.msra.mxu0 0
      %4567 = vmatprep.subr.bf16.mxu0 0
      %4568 = vmatpush1.bf16.msra.mxu0 0
      %4569 = vmatprep.subr.bf16.mxu0 0
      %4570 = vmatpush1.bf16.msra.mxu0 0
      %4571 = vmatprep.subr.bf16.mxu0 0
      %4572 = vmatpush1.bf16.msra.mxu0 0
      %4573 = vmatprep.subr.bf16.mxu0 0
      %4574 = vmatpush1.bf16.msra.mxu0 %v4557
      %4575 = vmatprep.subr.bf16.mxu0 0
      %4576 = vmatpush2.bf16.msra.mxu0 0
      %4577 = vmatprep.subr.bf16.mxu0 0
      %4578 = vmatpush2.bf16.msra.mxu0 0
      %4579 = vmatprep.subr.bf16.mxu0 0
      %4580 = vmatpush2.bf16.msra.mxu0 0
      %4581 = vmatprep.subr.bf16.mxu0 0
      %4582 = vmatpush2.bf16.msra.mxu0 0
      %4583 = vmatprep.subr.bf16.mxu0 0
      %4584 = vmatpush2.bf16.msra.mxu0 0
      %4585 = vmatprep.subr.bf16.mxu0 0
      %4586 = vmatpush2.bf16.msra.mxu0 0
      %4587 = vmatprep.subr.bf16.mxu0 0
      %4588 = vmatpush2.bf16.msra.mxu0 0
      %4589 = vmatprep.subr.bf16.mxu0 0
      %4590 = vmatpush2.bf16.msra.mxu0 0
      %4591 = vmatprep.mubr.bf16.mxu0 0
      %4592 = vmatmul.mubr.bf16.gmra.mxu0 %v4545
      %v4593 = vpop.f32.mrf.mxu0
      %v4594 = vadd.f32 0.0, %v4593
      %v4595 = vpop.f32.mrf.mxu0
      %v4596 = vpop.f32.mrf.mxu0
      %v4597 = vadd.f32 0.0, %v4596
      %v4598 = vpop.f32.mrf.mxu0
      %4599 = vmatprep.mubr.bf16.mxu0 0
      %4600 = vmatmul.mubr.bf16.gmra.mxu0 %v4548
      %v4601 = vpop.f32.mrf.mxu0
      %v4602 = vadd.f32 0.0, %v4601
      %v4603 = vpop.f32.mrf.mxu0
      %v4604 = vpop.f32.mrf.mxu0
      %v4605 = vadd.f32 0.0, %v4604
      %v4606 = vpop.f32.mrf.mxu0
      %4607 = vmatprep.mubr.bf16.mxu0 0
      %4608 = vmatmul.mubr.bf16.gmra.mxu0 %v4551
      %v4609 = vpop.f32.mrf.mxu0
      %v4610 = vadd.f32 0.0, %v4609
      %v4611 = vpop.f32.mrf.mxu0
      %v4612 = vpop.f32.mrf.mxu0
      %v4613 = vadd.f32 0.0, %v4612
      %v4614 = vpop.f32.mrf.mxu0
      %4615 = vmatprep.mubr.bf16.mxu0 0
      %4616 = vmatmul.mubr.bf16.gmra.mxu0 %v4554
      %v4617 = vpop.f32.mrf.mxu0
      %v4618 = vadd.f32 0.0, %v4617
      %v4619 = vpop.f32.mrf.mxu0
      %v4620 = vpop.f32.mrf.mxu0
      %v4621 = vadd.f32 0.0, %v4620
      %v4622 = vpop.f32.mrf.mxu0
      %4623 = vdwg.mxu0
      %v4624 = vadd.f32 %v4523, %v4594
      %v4625 = vadd.f32 %v4524, %v4597
      %v4626 = vadd.f32 %v4525, %v4602
      %v4627 = vadd.f32 %v4526, %v4605
      %v4628 = vadd.f32 %v4527, %v4610
      %v4629 = vadd.f32 %v4528, %v4613
      %v4630 = vadd.f32 %v4529, %v4618
      %v4631 = vadd.f32 %v4530, %v4621
      %s4632 = scalar_lea.vmem %s165, 720
      %v4633 = vld [vmem:[%s4632] sm:$0xff]
      %v4634 = vld [vmem:[%s4632 + $0x10] sm:$0xff]
      %v4635 = vld [vmem:[%s4632 + $0x20] sm:$0xff]
      %v4636 = vld [vmem:[%s4632 + $0x30] sm:$0xff]
      %v4637 = vld [vmem:[%s4632 + $0x40] sm:$0xff]
      %v4638 = vld [vmem:[%s4632 + $0x50] sm:$0xff]
      %v4639 = vld [vmem:[%s4632 + $0x60] sm:$0xff]
      %v4640 = vld [vmem:[%s4632 + $0x70] sm:$0xff]
      %v4641 = vpack.c.bf16 %v4634, %v4633
      %v4642 = vpack.c.bf16 %v4636, %v4635
      %v4643 = vpack.c.bf16 %v4638, %v4637
      %v4644 = vpack.c.bf16 %v4640, %v4639
      %v4645 = vld [vmem:[%s990] sm:$0x3]
      %v4647 = vsel %vm200, %v4641, 0
      %v4650 = vsel %vm200, %v4642, 0
      %v4653 = vsel %vm200, %v4643, 0
      %v4656 = vsel %vm200, %v4644, 0
      %v4659 = vsel %vm213, %v4645, 0
      %4661 = vmatprep.subr.bf16.mxu0 0
      %4662 = vmatpush1.bf16.msra.mxu0 0
      %4663 = vmatprep.subr.bf16.mxu0 0
      %4664 = vmatpush1.bf16.msra.mxu0 0
      %4665 = vmatprep.subr.bf16.mxu0 0
      %4666 = vmatpush1.bf16.msra.mxu0 0
      %4667 = vmatprep.subr.bf16.mxu0 0
      %4668 = vmatpush1.bf16.msra.mxu0 0
      %4669 = vmatprep.subr.bf16.mxu0 0
      %4670 = vmatpush1.bf16.msra.mxu0 0
      %4671 = vmatprep.subr.bf16.mxu0 0
      %4672 = vmatpush1.bf16.msra.mxu0 0
      %4673 = vmatprep.subr.bf16.mxu0 0
      %4674 = vmatpush1.bf16.msra.mxu0 0
      %4675 = vmatprep.subr.bf16.mxu0 0
      %4676 = vmatpush1.bf16.msra.mxu0 %v4659
      %4677 = vmatprep.subr.bf16.mxu0 0
      %4678 = vmatpush2.bf16.msra.mxu0 0
      %4679 = vmatprep.subr.bf16.mxu0 0
      %4680 = vmatpush2.bf16.msra.mxu0 0
      %4681 = vmatprep.subr.bf16.mxu0 0
      %4682 = vmatpush2.bf16.msra.mxu0 0
      %4683 = vmatprep.subr.bf16.mxu0 0
      %4684 = vmatpush2.bf16.msra.mxu0 0
      %4685 = vmatprep.subr.bf16.mxu0 0
      %4686 = vmatpush2.bf16.msra.mxu0 0
      %4687 = vmatprep.subr.bf16.mxu0 0
      %4688 = vmatpush2.bf16.msra.mxu0 0
      %4689 = vmatprep.subr.bf16.mxu0 0
      %4690 = vmatpush2.bf16.msra.mxu0 0
      %4691 = vmatprep.subr.bf16.mxu0 0
      %4692 = vmatpush2.bf16.msra.mxu0 0
      %4693 = vmatprep.mubr.bf16.mxu0 0
      %4694 = vmatmul.mubr.bf16.gmra.mxu0 %v4647
      %v4695 = vpop.f32.mrf.mxu0
      %v4696 = vadd.f32 0.0, %v4695
      %v4697 = vpop.f32.mrf.mxu0
      %v4698 = vpop.f32.mrf.mxu0
      %v4699 = vadd.f32 0.0, %v4698
      %v4700 = vpop.f32.mrf.mxu0
      %4701 = vmatprep.mubr.bf16.mxu0 0
      %4702 = vmatmul.mubr.bf16.gmra.mxu0 %v4650
      %v4703 = vpop.f32.mrf.mxu0
      %v4704 = vadd.f32 0.0, %v4703
      %v4705 = vpop.f32.mrf.mxu0
      %v4706 = vpop.f32.mrf.mxu0
      %v4707 = vadd.f32 0.0, %v4706
      %v4708 = vpop.f32.mrf.mxu0
      %4709 = vmatprep.mubr.bf16.mxu0 0
      %4710 = vmatmul.mubr.bf16.gmra.mxu0 %v4653
      %v4711 = vpop.f32.mrf.mxu0
      %v4712 = vadd.f32 0.0, %v4711
      %v4713 = vpop.f32.mrf.mxu0
      %v4714 = vpop.f32.mrf.mxu0
      %v4715 = vadd.f32 0.0, %v4714
      %v4716 = vpop.f32.mrf.mxu0
      %4717 = vmatprep.mubr.bf16.mxu0 0
      %4718 = vmatmul.mubr.bf16.gmra.mxu0 %v4656
      %v4719 = vpop.f32.mrf.mxu0
      %v4720 = vadd.f32 0.0, %v4719
      %v4721 = vpop.f32.mrf.mxu0
      %v4722 = vpop.f32.mrf.mxu0
      %v4723 = vadd.f32 0.0, %v4722
      %v4724 = vpop.f32.mrf.mxu0
      %4725 = vdwg.mxu0
      %v4726 = vadd.f32 %v4624, %v4696
      %v4727 = vadd.f32 %v4625, %v4699
      %v4728 = vadd.f32 %v4626, %v4704
      %v4729 = vadd.f32 %v4627, %v4707
      %v4730 = vadd.f32 %v4628, %v4712
      %v4731 = vadd.f32 %v4629, %v4715
      %v4732 = vadd.f32 %v4630, %v4720
      %v4733 = vadd.f32 %v4631, %v4723
      %v4734 = vld [vmem:[%s4632 + $0x1] sm:$0xff]
      %v4735 = vld [vmem:[%s4632 + $0x11] sm:$0xff]
      %v4736 = vld [vmem:[%s4632 + $0x21] sm:$0xff]
      %v4737 = vld [vmem:[%s4632 + $0x31] sm:$0xff]
      %v4738 = vld [vmem:[%s4632 + $0x41] sm:$0xff]
      %v4739 = vld [vmem:[%s4632 + $0x51] sm:$0xff]
      %v4740 = vld [vmem:[%s4632 + $0x61] sm:$0xff]
      %v4741 = vld [vmem:[%s4632 + $0x71] sm:$0xff]
      %v4742 = vpack.c.bf16 %v4735, %v4734
      %v4743 = vpack.c.bf16 %v4737, %v4736
      %v4744 = vpack.c.bf16 %v4739, %v4738
      %v4745 = vpack.c.bf16 %v4741, %v4740
      %v4746 = vld [vmem:[%s1092] sm:$0x3]
      %v4748 = vsel %vm200, %v4742, 0
      %v4751 = vsel %vm200, %v4743, 0
      %v4754 = vsel %vm200, %v4744, 0
      %v4757 = vsel %vm200, %v4745, 0
      %v4760 = vsel %vm213, %v4746, 0
      %4762 = vmatprep.subr.bf16.mxu0 0
      %4763 = vmatpush1.bf16.msra.mxu0 0
      %4764 = vmatprep.subr.bf16.mxu0 0
      %4765 = vmatpush1.bf16.msra.mxu0 0
      %4766 = vmatprep.subr.bf16.mxu0 0
      %4767 = vmatpush1.bf16.msra.mxu0 0
      %4768 = vmatprep.subr.bf16.mxu0 0
      %4769 = vmatpush1.bf16.msra.mxu0 0
      %4770 = vmatprep.subr.bf16.mxu0 0
      %4771 = vmatpush1.bf16.msra.mxu0 0
      %4772 = vmatprep.subr.bf16.mxu0 0
      %4773 = vmatpush1.bf16.msra.mxu0 0
      %4774 = vmatprep.subr.bf16.mxu0 0
      %4775 = vmatpush1.bf16.msra.mxu0 0
      %4776 = vmatprep.subr.bf16.mxu0 0
      %4777 = vmatpush1.bf16.msra.mxu0 %v4760
      %4778 = vmatprep.subr.bf16.mxu0 0
      %4779 = vmatpush2.bf16.msra.mxu0 0
      %4780 = vmatprep.subr.bf16.mxu0 0
      %4781 = vmatpush2.bf16.msra.mxu0 0
      %4782 = vmatprep.subr.bf16.mxu0 0
      %4783 = vmatpush2.bf16.msra.mxu0 0
      %4784 = vmatprep.subr.bf16.mxu0 0
      %4785 = vmatpush2.bf16.msra.mxu0 0
      %4786 = vmatprep.subr.bf16.mxu0 0
      %4787 = vmatpush2.bf16.msra.mxu0 0
      %4788 = vmatprep.subr.bf16.mxu0 0
      %4789 = vmatpush2.bf16.msra.mxu0 0
      %4790 = vmatprep.subr.bf16.mxu0 0
      %4791 = vmatpush2.bf16.msra.mxu0 0
      %4792 = vmatprep.subr.bf16.mxu0 0
      %4793 = vmatpush2.bf16.msra.mxu0 0
      %4794 = vmatprep.mubr.bf16.mxu0 0
      %4795 = vmatmul.mubr.bf16.gmra.mxu0 %v4748
      %v4796 = vpop.f32.mrf.mxu0
      %v4797 = vadd.f32 0.0, %v4796
      %v4798 = vpop.f32.mrf.mxu0
      %v4799 = vpop.f32.mrf.mxu0
      %v4800 = vadd.f32 0.0, %v4799
      %v4801 = vpop.f32.mrf.mxu0
      %4802 = vmatprep.mubr.bf16.mxu0 0
      %4803 = vmatmul.mubr.bf16.gmra.mxu0 %v4751
      %v4804 = vpop.f32.mrf.mxu0
      %v4805 = vadd.f32 0.0, %v4804
      %v4806 = vpop.f32.mrf.mxu0
      %v4807 = vpop.f32.mrf.mxu0
      %v4808 = vadd.f32 0.0, %v4807
      %v4809 = vpop.f32.mrf.mxu0
      %4810 = vmatprep.mubr.bf16.mxu0 0
      %4811 = vmatmul.mubr.bf16.gmra.mxu0 %v4754
      %v4812 = vpop.f32.mrf.mxu0
      %v4813 = vadd.f32 0.0, %v4812
      %v4814 = vpop.f32.mrf.mxu0
      %v4815 = vpop.f32.mrf.mxu0
      %v4816 = vadd.f32 0.0, %v4815
      %v4817 = vpop.f32.mrf.mxu0
      %4818 = vmatprep.mubr.bf16.mxu0 0
      %4819 = vmatmul.mubr.bf16.gmra.mxu0 %v4757
      %v4820 = vpop.f32.mrf.mxu0
      %v4821 = vadd.f32 0.0, %v4820
      %v4822 = vpop.f32.mrf.mxu0
      %v4823 = vpop.f32.mrf.mxu0
      %v4824 = vadd.f32 0.0, %v4823
      %v4825 = vpop.f32.mrf.mxu0
      %4826 = vdwg.mxu0
      %v4827 = vadd.f32 %v4726, %v4797
      %v4828 = vadd.f32 %v4727, %v4800
      %v4829 = vadd.f32 %v4728, %v4805
      %v4830 = vadd.f32 %v4729, %v4808
      %v4831 = vadd.f32 %v4730, %v4813
      %v4832 = vadd.f32 %v4731, %v4816
      %v4833 = vadd.f32 %v4732, %v4821
      %v4834 = vadd.f32 %v4733, %v4824
      %s4835 = scalar_lea.vmem %s165, 736
      %v4836 = vld [vmem:[%s4835] sm:$0xff]
      %v4837 = vld [vmem:[%s4835 + $0x10] sm:$0xff]
      %v4838 = vld [vmem:[%s4835 + $0x20] sm:$0xff]
      %v4839 = vld [vmem:[%s4835 + $0x30] sm:$0xff]
      %v4840 = vld [vmem:[%s4835 + $0x40] sm:$0xff]
      %v4841 = vld [vmem:[%s4835 + $0x50] sm:$0xff]
      %v4842 = vld [vmem:[%s4835 + $0x60] sm:$0xff]
      %v4843 = vld [vmem:[%s4835 + $0x70] sm:$0xff]
      %v4844 = vpack.c.bf16 %v4837, %v4836
      %v4845 = vpack.c.bf16 %v4839, %v4838
      %v4846 = vpack.c.bf16 %v4841, %v4840
      %v4847 = vpack.c.bf16 %v4843, %v4842
      %v4848 = vld [vmem:[%s1195] sm:$0x3]
      %v4850 = vsel %vm200, %v4844, 0
      %v4853 = vsel %vm200, %v4845, 0
      %v4856 = vsel %vm200, %v4846, 0
      %v4859 = vsel %vm200, %v4847, 0
      %v4862 = vsel %vm213, %v4848, 0
      %4864 = vmatprep.subr.bf16.mxu0 0
      %4865 = vmatpush1.bf16.msra.mxu0 0
      %4866 = vmatprep.subr.bf16.mxu0 0
      %4867 = vmatpush1.bf16.msra.mxu0 0
      %4868 = vmatprep.subr.bf16.mxu0 0
      %4869 = vmatpush1.bf16.msra.mxu0 0
      %4870 = vmatprep.subr.bf16.mxu0 0
      %4871 = vmatpush1.bf16.msra.mxu0 0
      %4872 = vmatprep.subr.bf16.mxu0 0
      %4873 = vmatpush1.bf16.msra.mxu0 0
      %4874 = vmatprep.subr.bf16.mxu0 0
      %4875 = vmatpush1.bf16.msra.mxu0 0
      %4876 = vmatprep.subr.bf16.mxu0 0
      %4877 = vmatpush1.bf16.msra.mxu0 0
      %4878 = vmatprep.subr.bf16.mxu0 0
      %4879 = vmatpush1.bf16.msra.mxu0 %v4862
      %4880 = vmatprep.subr.bf16.mxu0 0
      %4881 = vmatpush2.bf16.msra.mxu0 0
      %4882 = vmatprep.subr.bf16.mxu0 0
      %4883 = vmatpush2.bf16.msra.mxu0 0
      %4884 = vmatprep.subr.bf16.mxu0 0
      %4885 = vmatpush2.bf16.msra.mxu0 0
      %4886 = vmatprep.subr.bf16.mxu0 0
      %4887 = vmatpush2.bf16.msra.mxu0 0
      %4888 = vmatprep.subr.bf16.mxu0 0
      %4889 = vmatpush2.bf16.msra.mxu0 0
      %4890 = vmatprep.subr.bf16.mxu0 0
      %4891 = vmatpush2.bf16.msra.mxu0 0
      %4892 = vmatprep.subr.bf16.mxu0 0
      %4893 = vmatpush2.bf16.msra.mxu0 0
      %4894 = vmatprep.subr.bf16.mxu0 0
      %4895 = vmatpush2.bf16.msra.mxu0 0
      %4896 = vmatprep.mubr.bf16.mxu0 0
      %4897 = vmatmul.mubr.bf16.gmra.mxu0 %v4850
      %v4898 = vpop.f32.mrf.mxu0
      %v4899 = vadd.f32 0.0, %v4898
      %v4900 = vpop.f32.mrf.mxu0
      %v4901 = vpop.f32.mrf.mxu0
      %v4902 = vadd.f32 0.0, %v4901
      %v4903 = vpop.f32.mrf.mxu0
      %4904 = vmatprep.mubr.bf16.mxu0 0
      %4905 = vmatmul.mubr.bf16.gmra.mxu0 %v4853
      %v4906 = vpop.f32.mrf.mxu0
      %v4907 = vadd.f32 0.0, %v4906
      %v4908 = vpop.f32.mrf.mxu0
      %v4909 = vpop.f32.mrf.mxu0
      %v4910 = vadd.f32 0.0, %v4909
      %v4911 = vpop.f32.mrf.mxu0
      %4912 = vmatprep.mubr.bf16.mxu0 0
      %4913 = vmatmul.mubr.bf16.gmra.mxu0 %v4856
      %v4914 = vpop.f32.mrf.mxu0
      %v4915 = vadd.f32 0.0, %v4914
      %v4916 = vpop.f32.mrf.mxu0
      %v4917 = vpop.f32.mrf.mxu0
      %v4918 = vadd.f32 0.0, %v4917
      %v4919 = vpop.f32.mrf.mxu0
      %4920 = vmatprep.mubr.bf16.mxu0 0
      %4921 = vmatmul.mubr.bf16.gmra.mxu0 %v4859
      %v4922 = vpop.f32.mrf.mxu0
      %v4923 = vadd.f32 0.0, %v4922
      %v4924 = vpop.f32.mrf.mxu0
      %v4925 = vpop.f32.mrf.mxu0
      %v4926 = vadd.f32 0.0, %v4925
      %v4927 = vpop.f32.mrf.mxu0
      %4928 = vdwg.mxu0
      %v4929 = vadd.f32 %v4827, %v4899
      %v4930 = vadd.f32 %v4828, %v4902
      %v4931 = vadd.f32 %v4829, %v4907
      %v4932 = vadd.f32 %v4830, %v4910
      %v4933 = vadd.f32 %v4831, %v4915
      %v4934 = vadd.f32 %v4832, %v4918
      %v4935 = vadd.f32 %v4833, %v4923
      %v4936 = vadd.f32 %v4834, %v4926
      %v4937 = vld [vmem:[%s4835 + $0x1] sm:$0xff]
      %v4938 = vld [vmem:[%s4835 + $0x11] sm:$0xff]
      %v4939 = vld [vmem:[%s4835 + $0x21] sm:$0xff]
      %v4940 = vld [vmem:[%s4835 + $0x31] sm:$0xff]
      %v4941 = vld [vmem:[%s4835 + $0x41] sm:$0xff]
      %v4942 = vld [vmem:[%s4835 + $0x51] sm:$0xff]
      %v4943 = vld [vmem:[%s4835 + $0x61] sm:$0xff]
      %v4944 = vld [vmem:[%s4835 + $0x71] sm:$0xff]
      %v4945 = vpack.c.bf16 %v4938, %v4937
      %v4946 = vpack.c.bf16 %v4940, %v4939
      %v4947 = vpack.c.bf16 %v4942, %v4941
      %v4948 = vpack.c.bf16 %v4944, %v4943
      %v4949 = vld [vmem:[%s1297] sm:$0x3]
      %v4951 = vsel %vm200, %v4945, 0
      %v4954 = vsel %vm200, %v4946, 0
      %v4957 = vsel %vm200, %v4947, 0
      %v4960 = vsel %vm200, %v4948, 0
      %v4963 = vsel %vm213, %v4949, 0
      %4965 = vmatprep.subr.bf16.mxu0 0
      %4966 = vmatpush1.bf16.msra.mxu0 0
      %4967 = vmatprep.subr.bf16.mxu0 0
      %4968 = vmatpush1.bf16.msra.mxu0 0
      %4969 = vmatprep.subr.bf16.mxu0 0
      %4970 = vmatpush1.bf16.msra.mxu0 0
      %4971 = vmatprep.subr.bf16.mxu0 0
      %4972 = vmatpush1.bf16.msra.mxu0 0
      %4973 = vmatprep.subr.bf16.mxu0 0
      %4974 = vmatpush1.bf16.msra.mxu0 0
      %4975 = vmatprep.subr.bf16.mxu0 0
      %4976 = vmatpush1.bf16.msra.mxu0 0
      %4977 = vmatprep.subr.bf16.mxu0 0
      %4978 = vmatpush1.bf16.msra.mxu0 0
      %4979 = vmatprep.subr.bf16.mxu0 0
      %4980 = vmatpush1.bf16.msra.mxu0 %v4963
      %4981 = vmatprep.subr.bf16.mxu0 0
      %4982 = vmatpush2.bf16.msra.mxu0 0
      %4983 = vmatprep.subr.bf16.mxu0 0
      %4984 = vmatpush2.bf16.msra.mxu0 0
      %4985 = vmatprep.subr.bf16.mxu0 0
      %4986 = vmatpush2.bf16.msra.mxu0 0
      %4987 = vmatprep.subr.bf16.mxu0 0
      %4988 = vmatpush2.bf16.msra.mxu0 0
      %4989 = vmatprep.subr.bf16.mxu0 0
      %4990 = vmatpush2.bf16.msra.mxu0 0
      %4991 = vmatprep.subr.bf16.mxu0 0
      %4992 = vmatpush2.bf16.msra.mxu0 0
      %4993 = vmatprep.subr.bf16.mxu0 0
      %4994 = vmatpush2.bf16.msra.mxu0 0
      %4995 = vmatprep.subr.bf16.mxu0 0
      %4996 = vmatpush2.bf16.msra.mxu0 0
      %4997 = vmatprep.mubr.bf16.mxu0 0
      %4998 = vmatmul.mubr.bf16.gmra.mxu0 %v4951
      %v4999 = vpop.f32.mrf.mxu0
      %v5000 = vadd.f32 0.0, %v4999
      %v5001 = vpop.f32.mrf.mxu0
      %v5002 = vpop.f32.mrf.mxu0
      %v5003 = vadd.f32 0.0, %v5002
      %v5004 = vpop.f32.mrf.mxu0
      %5005 = vmatprep.mubr.bf16.mxu0 0
      %5006 = vmatmul.mubr.bf16.gmra.mxu0 %v4954
      %v5007 = vpop.f32.mrf.mxu0
      %v5008 = vadd.f32 0.0, %v5007
      %v5009 = vpop.f32.mrf.mxu0
      %v5010 = vpop.f32.mrf.mxu0
      %v5011 = vadd.f32 0.0, %v5010
      %v5012 = vpop.f32.mrf.mxu0
      %5013 = vmatprep.mubr.bf16.mxu0 0
      %5014 = vmatmul.mubr.bf16.gmra.mxu0 %v4957
      %v5015 = vpop.f32.mrf.mxu0
      %v5016 = vadd.f32 0.0, %v5015
      %v5017 = vpop.f32.mrf.mxu0
      %v5018 = vpop.f32.mrf.mxu0
      %v5019 = vadd.f32 0.0, %v5018
      %v5020 = vpop.f32.mrf.mxu0
      %5021 = vmatprep.mubr.bf16.mxu0 0
      %5022 = vmatmul.mubr.bf16.gmra.mxu0 %v4960
      %v5023 = vpop.f32.mrf.mxu0
      %v5024 = vadd.f32 0.0, %v5023
      %v5025 = vpop.f32.mrf.mxu0
      %v5026 = vpop.f32.mrf.mxu0
      %v5027 = vadd.f32 0.0, %v5026
      %v5028 = vpop.f32.mrf.mxu0
      %5029 = vdwg.mxu0
      %v5030 = vadd.f32 %v4929, %v5000
      %v5031 = vadd.f32 %v4930, %v5003
      %v5032 = vadd.f32 %v4931, %v5008
      %v5033 = vadd.f32 %v4932, %v5011
      %v5034 = vadd.f32 %v4933, %v5016
      %v5035 = vadd.f32 %v4934, %v5019
      %v5036 = vadd.f32 %v4935, %v5024
      %v5037 = vadd.f32 %v4936, %v5027
      %v5038 = vadd.f32 %v5030, %v1391
      %v5039 = vadd.f32 %v5031, %v1391
      %v5040 = vadd.f32 %v5032, %v1391
      %v5041 = vadd.f32 %v5033, %v1391
      %v5042 = vadd.f32 %v5034, %v1391
      %v5043 = vadd.f32 %v5035, %v1391
      %v5044 = vadd.f32 %v5036, %v1391
      %v5045 = vadd.f32 %v5037, %v1391
      %s5046 = scalar_lea.vmem %s170, 192
      %5047 = vst.msk [vmem:[%s5046] sm:$0xff] %vm1401, %v5038
      %5048 = vst.msk [vmem:[%s5046 + $0x8] sm:$0xff] %vm1401, %v5039
      %5049 = vst.msk [vmem:[%s5046 + $0x10] sm:$0xff] %vm1401, %v5040
      %5050 = vst.msk [vmem:[%s5046 + $0x18] sm:$0xff] %vm1401, %v5041
      %5051 = vst.msk [vmem:[%s5046 + $0x20] sm:$0xff] %vm1401, %v5042
      %5052 = vst.msk [vmem:[%s5046 + $0x28] sm:$0xff] %vm1401, %v5043
      %5053 = vst.msk [vmem:[%s5046 + $0x30] sm:$0xff] %vm1401, %v5044
      %5054 = vst.msk [vmem:[%s5046 + $0x38] sm:$0xff] %vm1401, %v5045
      %p5055 = scmp.lt.s32.totalorder %s14, 1
      %s5056 = scalar_select %p5055, %s14, 1
      %s5057 = smul.addr %s5056, 32
      %s5058 = smul.addr %s5057, 8
      %s5059 = scalar_lea.vmem %s3, %s5058
      // Predicated region
      $region33: #{conv_transpose3d_up221.1} parent=31 // pred_check
        %p5060 = pneg %p100
      $region34: #{conv_transpose3d_up221.1} parent=31 // pred_check_branch
        %5062 = sbr.rel (%p5060) target = $region36
      $region35: #{conv_transpose3d_up221.1} parent=31 // pred_region
        _
      $region36: #{conv_transpose3d_up221.1} parent=31 // pred_fallthru
        _
    $region32: #{conv_transpose3d_up221.1} parent=5 // pred_fallthru
      _
    %p5063 = scmp.le.s32.totalorder 2, %s9
    // Predicated region
    $region37: #{conv_transpose3d_up221.1} parent=5 // pred_check
      %p5064 = pneg %p5063
    $region38: #{conv_transpose3d_up221.1} parent=5 // pred_check_branch
      %5066 = sbr.rel (%p5064) target = $region40
    $region39: #{conv_transpose3d_up221.1} parent=5 // pred_region
      %s5067 = ssub.s32 %s9, 2
      // Predicated region
      $region41: #{conv_transpose3d_up221.1} parent=39 // pred_check
        %p5068 = pneg %p106
      $region42: #{conv_transpose3d_up221.1} parent=39 // pred_check_branch
        %5070 = sbr.rel (%p5068) target = $region44
      $region43: #{conv_transpose3d_up221.1} parent=39 // pred_region
        %p5071 = scmp.lt.s32.totalorder %s15, 1
        %s5072 = scalar_select %p5071, %s15, 1
        %s5073 = smul.addr %s5072, 32
        %s5074 = smul.addr %s5073, 8
        %s5075 = scalar_lea.vmem %s3, %s5074
      $region44: #{conv_transpose3d_up221.1} parent=39 // pred_fallthru
        _
    $region40: #{conv_transpose3d_up221.1} parent=5 // pred_fallthru
      _
  $region6: #{conv_transpose3d_up221.1} parent=0 // loop_footer
    %s13 = sadd.s32 1, %s9
  $region7: #{conv_transpose3d_up221.1} parent=0 // loop_footer_branch
    %8 = sbr.rel target = $region3
  $region8: #{conv_transpose3d_up221.1} parent=0 // loop_exit
    _

</llo_original>
